<compile_context>
chip_gen: v7x
topology: tpu7x:2x2x1
jax: 0.10.0
libtpu: 0.0.40
codegen_flags: <defaults>
</compile_context>

<pallas_src>
import jax
import jax.numpy as jnp
from jax import lax
from jax.experimental import pallas as pl
from jax.experimental.pallas import tpu as pltpu

# ----------------------- small configuration ------------------------------
LOSS_FUNCTION = "sMAPE"
TARGET_DIM = 2               # target_dim
CONTEXT_LEN = 16             # context_length
PRED_LEN = 8                 # prediction_length
LAGS_SEQ = [1, 2, 3]         # lags_seq
HISTORY_LEN = 24             # history_length (>= max(lag) + context_length)
NUM_TIME_FEAT = 4            # num time features
EMBED_DIM = 1                # nn.Embedding(target_dim, 1)
BATCH = 64                   # larger M so the MXU does real work (perf review)

STACKS = 4                   # (module default 30; kept small here)
LINEAR_LAYERS = 2            # (module default 4)
LAYER_SIZE = 128             # lane-aligned width (module default 512)

F_TS = len(LAGS_SEQ) * TARGET_DIM
F_TF = NUM_TIME_FEAT
F_S = TARGET_DIM * EMBED_DIM
F_TOTAL = F_TS + F_TF + F_S
D_IN = CONTEXT_LEN * F_TOTAL           # flattened model input length (192)
PD = PRED_LEN * TARGET_DIM             # flattened forecast length (16)

B_PAD = ((BATCH + 7) // 8) * 8         # sublane-aligned batch

# ---- stack blocking: K stacks per grid step (all resident at toy size) ----
K_STACKS = STACKS                      # cap ~8-10 on v7x, ~20-30 on v5e/v6e at 512-width
assert STACKS % K_STACKS == 0
GRID_STACKS = STACKS // K_STACKS


# --------------------------- Pallas kernel --------------------------------
def nbeats_loss_kernel(x_ref, scale_ref, ft_ref,
                       w0_ref, wh_ref, wb_ref, wf_ref,
                       bfc_ref, bb_ref, bf_ref,
                       loss_ref, x_sc, fc_sc):
    """K_STACKS N-BEATS stacks per grid step; sMAPE loss on the last step.

    x_ref     : (B_PAD, D_IN)                  flattened, pad-masked input
    scale_ref : (B_PAD, PD)                    per-sample/per-dim scale (broadcast over P)
    ft_ref    : (B_PAD, PD)                    flattened future_target
    w0_ref    : (K, D_IN, H)       bf16        first FC layer of each stack in the block
    wh_ref    : (K, L-1, H, H)     bf16        remaining hidden FC layers
    wb_ref    : (K, H, D_IN)       bf16        backcast head (true width, no padding)
    wf_ref    : (K, H, PD)         bf16        forecast head (true width, no padding)
    bfc_ref   : (K, L, 1, H)       f32         first + hidden FC biases (packed)
    bb_ref    : (K, 1, D_IN)       f32         backcast bias
    bf_ref    : (K, 1, PD)         f32         forecast bias
    loss_ref  : (1, 1) SMEM                    scalar sMAPE training loss
    x_sc/fc_sc: VMEM scratch                   residual input / summed forecast
    """
    g = pl.program_id(0)

    @pl.when(g == 0)
    def _init():
        x_sc[...] = x_ref[...]
        fc_sc[...] = jnp.zeros_like(fc_sc)

    # ---- unrolled loop over the K stacks of this grid step ----------------
    # TODO(synk): generate_model / NBeatsBlock internals (attention layers,
    # interpretable trend/seasonality bases, dropout) are not in the provided
    # source; a generic FC N-BEATS stack is used instead.
    for j in range(K_STACKS):
        x = x_sc[...]
        h = jnp.maximum(
            jnp.dot(x.astype(jnp.bfloat16), w0_ref[j],
                    preferred_element_type=jnp.float32) + bfc_ref[j, 0],
            0.0)
        for l in range(LINEAR_LAYERS - 1):
            h = jnp.maximum(
                jnp.dot(h.astype(jnp.bfloat16), wh_ref[j, l],
                        preferred_element_type=jnp.float32) + bfc_ref[j, l + 1],
                0.0)
        hb = h.astype(jnp.bfloat16)
        # two separate de-padded head matmuls (no non-aligned fused-head slice)
        backcast = (jnp.dot(hb, wb_ref[j], preferred_element_type=jnp.float32)
                    + bb_ref[j])
        block_fc = (jnp.dot(hb, wf_ref[j], preferred_element_type=jnp.float32)
                    + bf_ref[j])
        x_sc[...] = x - backcast            # doubly-residual backcast subtraction
        fc_sc[...] = fc_sc[...] + block_fc  # summed partial forecasts

    # ---- finalize: scale forecast + sMAPE loss -----------------------------
    @pl.when(g == pl.num_programs(0) - 1)
    def _finalize():
        forecast = fc_sc[...] * scale_ref[...]
        ft = ft_ref[...]

        # sMAPE (matches smape_loss + final .mean():
        #   200/P * mean_over_time then mean over (batch, dim)
        #   == 200/P * mean over all valid elements)
        denom = jnp.abs(ft) + jnp.abs(forecast)
        flag = (denom == 0.0).astype(jnp.float32)
        per = jnp.abs(ft - forecast) * (1.0 - flag) / (denom + flag)

        row_ids = lax.broadcasted_iota(jnp.int32, (B_PAD, PD), 0)
        valid = (row_ids < BATCH).astype(jnp.float32)   # mask padded batch rows

        total = jnp.sum(per * valid)
        loss = (200.0 / PRED_LEN) * total / float(BATCH * PD)
        loss_ref[0, 0] = loss


def run_nbeats_loss(x_flat, params, scale_flat, ft_flat):
    grid_spec = pltpu.PrefetchScalarGridSpec(
        num_scalar_prefetch=0,
        grid=(GRID_STACKS,),
        in_specs=[
            # activations / targets: whole arrays, resident across the grid
            pl.BlockSpec((B_PAD, D_IN), lambda g: (0, 0)),
            pl.BlockSpec((B_PAD, PD), lambda g: (0, 0)),
            pl.BlockSpec((B_PAD, PD), lambda g: (0, 0)),
            # K-stack weight blocks, streamed/double-buffered over the grid
            pl.BlockSpec((K_STACKS, D_IN, LAYER_SIZE), lambda g: (g, 0, 0)),
            pl.BlockSpec((K_STACKS, LINEAR_LAYERS - 1, LAYER_SIZE, LAYER_SIZE),
                         lambda g: (g, 0, 0, 0)),
            pl.BlockSpec((K_STACKS, LAYER_SIZE, D_IN), lambda g: (g, 0, 0)),
            pl.BlockSpec((K_STACKS, LAYER_SIZE, PD), lambda g: (g, 0, 0)),
            # packed biases: one small DMA per array per grid step
            pl.BlockSpec((K_STACKS, LINEAR_LAYERS, 1, LAYER_SIZE),
                         lambda g: (g, 0, 0, 0)),
            pl.BlockSpec((K_STACKS, 1, D_IN), lambda g: (g, 0, 0)),
            pl.BlockSpec((K_STACKS, 1, PD), lambda g: (g, 0, 0)),
        ],
        out_specs=pl.BlockSpec(memory_space=pltpu.MemorySpace.SMEM),
        scratch_shapes=[
            pltpu.VMEM((B_PAD, D_IN), jnp.float32),   # residual x
            pltpu.VMEM((B_PAD, PD), jnp.float32),     # summed forecast
        ],
    )
    return pl.pallas_call(
        nbeats_loss_kernel,
        out_shape=jax.ShapeDtypeStruct((1, 1), jnp.float32),
        grid_spec=grid_spec,
        compiler_params=pltpu.CompilerParams(
            dimension_semantics=("arbitrary",),       # carried residual/accumulator
            vmem_limit_bytes=32 * 1024 * 1024),       # keep <= ~48 MiB on v7x at defaults
    )(x_flat, scale_flat, ft_flat,
      params["w0"], params["wh"], params["wb"], params["wf"],
      params["b_fc"], params["bb"], params["bf"])


# ---------------------------- plain-JAX glue --------------------------------
def get_lagged_subsequences(sequence, sequence_length, indices, subsequences_length):
    """lagged[i, :, j, k] = sequence[i, -indices[k]-S+j, :]  -> (B, S, C, I)."""
    assert max(indices) + subsequences_length <= sequence_length
    lagged = []
    for lag in indices:
        begin = sequence_length - lag - subsequences_length
        end = sequence_length - lag
        lagged.append(sequence[:, begin:end, :][:, None])     # (B, 1, S, C)
    return jnp.concatenate(lagged, axis=1).transpose(0, 2, 3, 1)


def mean_scaler(data, observed, minimum_scale=1e-10):
    """GluonTS-style MeanScaler (keepdim=True): returns (B, 1, C)."""
    num_obs = observed.sum(axis=1)                         # (B, C)
    sum_abs = (jnp.abs(data) * observed).sum(axis=1)       # (B, C)
    total_obs = num_obs.sum(axis=0)                        # (C,)
    default_scale = sum_abs.sum(axis=0) / jnp.maximum(total_obs, 1.0)
    scale = sum_abs / jnp.maximum(num_obs, 1.0)
    scale = jnp.where(sum_abs > 0.0, scale, default_scale[None, :])
    scale = jnp.maximum(scale, minimum_scale)
    return scale[:, None, :]


def make_params(key):
    """Deterministic synthetic N-BEATS weights at their true (de-padded)
    widths; weight matrices in bf16, biases in f32 (packed FC biases)."""
    ks = jax.random.split(key, 8)
    scl = 0.05
    w0 = scl * jax.random.normal(ks[0], (STACKS, D_IN, LAYER_SIZE), jnp.float32)
    b0 = scl * jax.random.normal(ks[1], (STACKS, 1, 1, LAYER_SIZE), jnp.float32)
    wh = scl * jax.random.normal(
        ks[2], (STACKS, LINEAR_LAYERS - 1, LAYER_SIZE, LAYER_SIZE), jnp.float32)
    bh = scl * jax.random.normal(
        ks[3], (STACKS, LINEAR_LAYERS - 1, 1, LAYER_SIZE), jnp.float32)
    wb = scl * jax.random.normal(ks[4], (STACKS, LAYER_SIZE, D_IN), jnp.float32)
    bb = scl * jax.random.normal(ks[5], (STACKS, 1, D_IN), jnp.float32)
    wf = scl * jax.random.normal(ks[6], (STACKS, LAYER_SIZE, PD), jnp.float32)
    bf = scl * jax.random.normal(ks[7], (STACKS, 1, PD), jnp.float32)

    b_fc = jnp.concatenate([b0, bh], axis=1)               # (S, L, 1, H)

    return {
        "w0": w0.astype(jnp.bfloat16),
        "wh": wh.astype(jnp.bfloat16),
        "wb": wb.astype(jnp.bfloat16),
        "wf": wf.astype(jnp.bfloat16),
        "b_fc": b_fc.astype(jnp.float32),
        "bb": bb.astype(jnp.float32),
        "bf": bf.astype(jnp.float32),
    }


def nbeats_training_forward(params, embed_table,
                            past_target, future_target, past_is_pad,
                            past_time_feat, future_time_feat,
                            past_observed_values, future_observed_values,
                            target_dimension_indicator):
    """Mirrors NBEATSTrainingNetwork.forward (loss_function='sMAPE',
    stack_features_along_time=False; future_* passed as None internally)."""
    B = past_target.shape[0]
    T, P, C = CONTEXT_LEN, PRED_LEN, TARGET_DIM

    # ---- create_network_input (future_time_feat=None, future_target=None) ----
    past_observed = jnp.minimum(past_observed_values, 1.0 - past_is_pad[..., None])
    time_feat = past_time_feat[:, -T:, :]                               # (B, T, F_TF)
    lags = get_lagged_subsequences(past_target, HISTORY_LEN, LAGS_SEQ, T)  # (B,T,C,I)

    scale = mean_scaler(past_target[:, -T:, :], past_observed[:, -T:, :])  # (B,1,C)
    lags_scaled = lags / scale[..., None]                               # (B,T,C,I)
    input_lags = lags_scaled.reshape(B, T, len(LAGS_SEQ) * C)           # (B,T,F_TS)

    index_embeddings = embed_table[target_dimension_indicator]          # (B,C,1)
    static_inputs = jnp.broadcast_to(
        index_embeddings[:, None, :, :], (B, T, C, EMBED_DIM)
    ).reshape(B, T, C * EMBED_DIM)                                      # (B,T,F_S)

    past_is_pad_ctx = past_is_pad[:, -T:]                               # (B, T)
    pad_mask = jnp.where(past_is_pad_ctx == 1.0, 0.0, 1.0)              # (B, T)

    # nb_model input: pad-masked time-series lags + time features + static,
    # flattened (time-major, feature-minor).
    # TODO(synk): exact pad_mask handling inside generate_model is not shown;
    # here it zeroes padded time steps of the lagged inputs.
    x_ts = input_lags * pad_mask[..., None]
    x = jnp.concatenate([x_ts, time_feat, static_inputs], axis=-1)      # (B,T,F_TOTAL)
    x_flat = x.reshape(B, D_IN).astype(jnp.float32)

    # flattened scale / future_target matching the (P, C) row-major forecast layout
    scale_flat = jnp.broadcast_to(scale, (B, P, C)).reshape(B, PD).astype(jnp.float32)
    ft_flat = future_target.reshape(B, PD).astype(jnp.float32)

    # sublane-pad the batch (padded rows are masked out of the loss)
    x_pad = jnp.zeros((B_PAD, D_IN), jnp.float32).at[:B, :].set(x_flat)
    scale_pad = jnp.zeros((B_PAD, PD), jnp.float32).at[:B, :].set(scale_flat)
    ft_pad = jnp.zeros((B_PAD, PD), jnp.float32).at[:B, :].set(ft_flat)

    loss = run_nbeats_loss(x_pad, params, scale_pad, ft_pad)
    return loss[0, 0]


# --------------------------------- main --------------------------------------
if __name__ == "__main__":
    key = jax.random.PRNGKey(0)
    k_param, k_embed, k_pt, k_ft, k_tf1, k_tf2 = jax.random.split(key, 6)

    params = make_params(k_param)
    embed_table = 0.1 * jax.random.normal(k_embed, (TARGET_DIM, EMBED_DIM), jnp.float32)

    past_target = jnp.abs(
        jax.random.normal(k_pt, (BATCH, HISTORY_LEN, TARGET_DIM), jnp.float32)) + 0.5
    future_target = jnp.abs(
        jax.random.normal(k_ft, (BATCH, PRED_LEN, TARGET_DIM), jnp.float32)) + 0.5
    past_time_feat = jax.random.normal(
        k_tf1, (BATCH, HISTORY_LEN, NUM_TIME_FEAT), jnp.float32)
    future_time_feat = jax.random.normal(
        k_tf2, (BATCH, PRED_LEN, NUM_TIME_FEAT), jnp.float32)      # unused (as in forward)
    past_observed_values = jnp.ones((BATCH, HISTORY_LEN, TARGET_DIM), jnp.float32)
    future_observed_values = jnp.ones((BATCH, PRED_LEN, TARGET_DIM), jnp.float32)
    past_is_pad = jnp.zeros((BATCH, HISTORY_LEN), jnp.float32)
    past_is_pad = past_is_pad.at[0, :3].set(1.0)                    # some padded steps
    target_dimension_indicator = jnp.broadcast_to(
        jnp.arange(TARGET_DIM, dtype=jnp.int32)[None, :], (BATCH, TARGET_DIM))

    loss = nbeats_training_forward(
        params, embed_table,
        past_target, future_target, past_is_pad,
        past_time_feat, future_time_feat,
        past_observed_values, future_observed_values,
        target_dimension_indicator)
    loss = jax.block_until_ready(loss)
    assert jnp.isfinite(loss)
    print("KERNEL_OK")
</pallas_src>

<mosaic_0001>
module attributes {stable_mosaic.version = 11 : i64} {
  func.func @nbeats_loss_kernel(%arg0: i32, %arg1: memref<64x192xf32, #tpu.memory_space<vmem>>, %arg2: memref<64x16xf32, #tpu.memory_space<vmem>>, %arg3: memref<64x16xf32, #tpu.memory_space<vmem>>, %arg4: memref<4x192x128xbf16, #tpu.memory_space<vmem>>, %arg5: memref<4x1x128x128xbf16, #tpu.memory_space<vmem>>, %arg6: memref<4x128x192xbf16, #tpu.memory_space<vmem>>, %arg7: memref<4x128x16xbf16, #tpu.memory_space<vmem>>, %arg8: memref<4x2x1x128xf32, #tpu.memory_space<vmem>>, %arg9: memref<4x1x192xf32, #tpu.memory_space<vmem>>, %arg10: memref<4x1x16xf32, #tpu.memory_space<vmem>>, %arg11: memref<1x1xf32, #tpu.memory_space<smem>>, %arg12: memref<64x192xf32, #tpu.memory_space<vmem>>, %arg13: memref<64x16xf32, #tpu.memory_space<vmem>>) attributes {dimension_semantics = [#tpu.dimension_semantics<arbitrary>], iteration_bounds = array<i64: 1>, scalar_prefetch = 0 : i64, scratch_operands = 2 : i64, tpu.core_type = #tpu.core_type<tc>, window_params = [{pipeline_mode = #tpu.pipeline_mode<synchronous>, transform_indices = @transform_0, window_bounds = array<i64: 64, 192>}, {pipeline_mode = #tpu.pipeline_mode<synchronous>, transform_indices = @transform_1, window_bounds = array<i64: 64, 16>}, {pipeline_mode = #tpu.pipeline_mode<synchronous>, transform_indices = @transform_2, window_bounds = array<i64: 64, 16>}, {transform_indices = @transform_3, window_bounds = array<i64: 4, 192, 128>}, {transform_indices = @transform_4, window_bounds = array<i64: 4, 1, 128, 128>}, {transform_indices = @transform_5, window_bounds = array<i64: 4, 128, 192>}, {transform_indices = @transform_6, window_bounds = array<i64: 4, 128, 16>}, {transform_indices = @transform_7, window_bounds = array<i64: 4, 2, 1, 128>}, {transform_indices = @transform_8, window_bounds = array<i64: 4, 1, 192>}, {transform_indices = @transform_9, window_bounds = array<i64: 4, 1, 16>}, {transform_indices = @transform_10, window_bounds = array<i64: 1, 1>}]} {
    %c0_i32 = arith.constant 0 : i32
    %0 = arith.cmpi eq, %arg0, %c0_i32 : i32
    %1 = arith.extui %0 : i1 to i32
    %c0_i32_0 = arith.constant 0 : i32
    %2 = arith.cmpi ne, %1, %c0_i32_0 : i32
    scf.if %2 {
      %c0_162 = arith.constant 0 : index
      %c0_163 = arith.constant 0 : index
      %170 = vector.load %arg1[%c0_162, %c0_163] : memref<64x192xf32, #tpu.memory_space<vmem>>, vector<64x192xf32>
      %c0_164 = arith.constant 0 : index
      %c0_165 = arith.constant 0 : index
      %171 = vector.load %arg12[%c0_164, %c0_165] : memref<64x192xf32, #tpu.memory_space<vmem>>, vector<64x192xf32>
      tpu.vector_store %arg12[%c0_164, %c0_165], %170 {strides = array<i32>} : memref<64x192xf32, #tpu.memory_space<vmem>>, vector<64x192xf32>,
      %cst_166 = arith.constant 0.000000e+00 : f32
      %172 = vector.broadcast %cst_166 : f32 to vector<64x16xf32>
      %c0_167 = arith.constant 0 : index
      %c0_168 = arith.constant 0 : index
      %173 = vector.load %arg13[%c0_167, %c0_168] : memref<64x16xf32, #tpu.memory_space<vmem>>, vector<64x16xf32>
      tpu.vector_store %arg13[%c0_167, %c0_168], %172 {strides = array<i32>} : memref<64x16xf32, #tpu.memory_space<vmem>>, vector<64x16xf32>,
    } else {
    }
    %c0 = arith.constant 0 : index
    %c0_1 = arith.constant 0 : index
    %3 = vector.load %arg12[%c0, %c0_1] : memref<64x192xf32, #tpu.memory_space<vmem>>, vector<64x192xf32>
    %4 = arith.truncf %3 : vector<64x192xf32> to vector<64x192xbf16>
    %c0_2 = arith.constant 0 : index
    %c0_3 = arith.constant 0 : index
    %c0_4 = arith.constant 0 : index
    %5 = vector.load %arg4[%c0_2, %c0_3, %c0_4] : memref<4x192x128xbf16, #tpu.memory_space<vmem>>, vector<1x192x128xbf16>
    %6 = vector.shape_cast %5 : vector<1x192x128xbf16> to vector<192x128xbf16>
    %cst = arith.constant dense<0.000000e+00> : vector<64x128xf32>
    %7 = tpu.matmul %4, %6, %cst {dimension_numbers = #tpu.dot_dimension_numbers<[1], [0], [0], [1], [0, 0, 1, 1], [], []>} : vector<64x192xbf16>, vector<192x128xbf16>, vector<64x128xf32> -> vector<64x128xf32>
    %c0_5 = arith.constant 0 : index
    %c0_6 = arith.constant 0 : index
    %c0_7 = arith.constant 0 : index
    %c0_8 = arith.constant 0 : index
    %8 = vector.load %arg8[%c0_5, %c0_6, %c0_7, %c0_8] : memref<4x2x1x128xf32, #tpu.memory_space<vmem>>, vector<1x1x1x128xf32>
    %9 = vector.shape_cast %8 : vector<1x1x1x128xf32> to vector<1x128xf32>
    %10 = vector.broadcast %9 : vector<1x128xf32> to vector<64x128xf32>
    %11 = arith.addf %7, %10 : vector<64x128xf32>
    %cst_9 = arith.constant 0.000000e+00 : f32
    %12 = vector.broadcast %cst_9 : f32 to vector<64x128xf32>
    %13 = arith.maximumf %11, %12 : vector<64x128xf32>
    %14 = arith.truncf %13 : vector<64x128xf32> to vector<64x128xbf16>
    %c0_10 = arith.constant 0 : index
    %c0_11 = arith.constant 0 : index
    %c0_12 = arith.constant 0 : index
    %c0_13 = arith.constant 0 : index
    %15 = vector.load %arg5[%c0_10, %c0_11, %c0_12, %c0_13] : memref<4x1x128x128xbf16, #tpu.memory_space<vmem>>, vector<1x1x128x128xbf16>
    %16 = vector.shape_cast %15 : vector<1x1x128x128xbf16> to vector<128x128xbf16>
    %cst_14 = arith.constant dense<0.000000e+00> : vector<64x128xf32>
    %17 = tpu.matmul %14, %16, %cst_14 {dimension_numbers = #tpu.dot_dimension_numbers<[1], [0], [0], [1], [0, 0, 1, 1], [], []>} : vector<64x128xbf16>, vector<128x128xbf16>, vector<64x128xf32> -> vector<64x128xf32>
    %c0_15 = arith.constant 0 : index
    %c1 = arith.constant 1 : index
    %c0_16 = arith.constant 0 : index
    %c0_17 = arith.constant 0 : index
    %18 = vector.load %arg8[%c0_15, %c1, %c0_16, %c0_17] : memref<4x2x1x128xf32, #tpu.memory_space<vmem>>, vector<1x1x1x128xf32>
    %19 = vector.shape_cast %18 : vector<1x1x1x128xf32> to vector<1x128xf32>
    %20 = vector.broadcast %19 : vector<1x128xf32> to vector<64x128xf32>
    %21 = arith.addf %17, %20 : vector<64x128xf32>
    %cst_18 = arith.constant 0.000000e+00 : f32
    %22 = vector.broadcast %cst_18 : f32 to vector<64x128xf32>
    %23 = arith.maximumf %21, %22 : vector<64x128xf32>
    %24 = arith.truncf %23 : vector<64x128xf32> to vector<64x128xbf16>
    %c0_19 = arith.constant 0 : index
    %c0_20 = arith.constant 0 : index
    %c0_21 = arith.constant 0 : index
    %25 = vector.load %arg6[%c0_19, %c0_20, %c0_21] : memref<4x128x192xbf16, #tpu.memory_space<vmem>>, vector<1x128x192xbf16>
    %26 = vector.shape_cast %25 : vector<1x128x192xbf16> to vector<128x192xbf16>
    %cst_22 = arith.constant dense<0.000000e+00> : vector<64x192xf32>
    %27 = tpu.matmul %24, %26, %cst_22 {dimension_numbers = #tpu.dot_dimension_numbers<[1], [0], [0], [1], [0, 0, 1, 1], [], []>} : vector<64x128xbf16>, vector<128x192xbf16>, vector<64x192xf32> -> vector<64x192xf32>
    %c0_23 = arith.constant 0 : index
    %c0_24 = arith.constant 0 : index
    %c0_25 = arith.constant 0 : index
    %28 = vector.load %arg9[%c0_23, %c0_24, %c0_25] : memref<4x1x192xf32, #tpu.memory_space<vmem>>, vector<1x1x192xf32>
    %29 = vector.shape_cast %28 : vector<1x1x192xf32> to vector<1x192xf32>
    %30 = vector.broadcast %29 : vector<1x192xf32> to vector<64x192xf32>
    %31 = arith.addf %27, %30 : vector<64x192xf32>
    %c0_26 = arith.constant 0 : index
    %c0_27 = arith.constant 0 : index
    %c0_28 = arith.constant 0 : index
    %32 = vector.load %arg7[%c0_26, %c0_27, %c0_28] : memref<4x128x16xbf16, #tpu.memory_space<vmem>>, vector<1x128x16xbf16>
    %33 = vector.shape_cast %32 : vector<1x128x16xbf16> to vector<128x16xbf16>
    %cst_29 = arith.constant dense<0.000000e+00> : vector<64x16xf32>
    %34 = tpu.matmul %24, %33, %cst_29 {dimension_numbers = #tpu.dot_dimension_numbers<[1], [0], [0], [1], [0, 0, 1, 1], [], []>} : vector<64x128xbf16>, vector<128x16xbf16>, vector<64x16xf32> -> vector<64x16xf32>
    %c0_30 = arith.constant 0 : index
    %c0_31 = arith.constant 0 : index
    %c0_32 = arith.constant 0 : index
    %35 = vector.load %arg10[%c0_30, %c0_31, %c0_32] : memref<4x1x16xf32, #tpu.memory_space<vmem>>, vector<1x1x16xf32>
    %36 = vector.shape_cast %35 : vector<1x1x16xf32> to vector<1x16xf32>
    %37 = vector.broadcast %36 : vector<1x16xf32> to vector<64x16xf32>
    %38 = arith.addf %34, %37 : vector<64x16xf32>
    %39 = arith.subf %3, %31 : vector<64x192xf32>
    %c0_33 = arith.constant 0 : index
    %c0_34 = arith.constant 0 : index
    %40 = vector.load %arg12[%c0_33, %c0_34] : memref<64x192xf32, #tpu.memory_space<vmem>>, vector<64x192xf32>
    tpu.vector_store %arg12[%c0_33, %c0_34], %39 {strides = array<i32>} : memref<64x192xf32, #tpu.memory_space<vmem>>, vector<64x192xf32>,
    %c0_35 = arith.constant 0 : index
    %c0_36 = arith.constant 0 : index
    %41 = vector.load %arg13[%c0_35, %c0_36] : memref<64x16xf32, #tpu.memory_space<vmem>>, vector<64x16xf32>
    %42 = arith.addf %41, %38 : vector<64x16xf32>
    %c0_37 = arith.constant 0 : index
    %c0_38 = arith.constant 0 : index
    %43 = vector.load %arg13[%c0_37, %c0_38] : memref<64x16xf32, #tpu.memory_space<vmem>>, vector<64x16xf32>
    tpu.vector_store %arg13[%c0_37, %c0_38], %42 {strides = array<i32>} : memref<64x16xf32, #tpu.memory_space<vmem>>, vector<64x16xf32>,
    %c0_39 = arith.constant 0 : index
    %c0_40 = arith.constant 0 : index
    %44 = vector.load %arg12[%c0_39, %c0_40] : memref<64x192xf32, #tpu.memory_space<vmem>>, vector<64x192xf32>
    %45 = arith.truncf %44 : vector<64x192xf32> to vector<64x192xbf16>
    %c1_41 = arith.constant 1 : index
    %c0_42 = arith.constant 0 : index
    %c0_43 = arith.constant 0 : index
    %46 = vector.load %arg4[%c1_41, %c0_42, %c0_43] : memref<4x192x128xbf16, #tpu.memory_space<vmem>>, vector<1x192x128xbf16>
    %47 = vector.shape_cast %46 : vector<1x192x128xbf16> to vector<192x128xbf16>
    %cst_44 = arith.constant dense<0.000000e+00> : vector<64x128xf32>
    %48 = tpu.matmul %45, %47, %cst_44 {dimension_numbers = #tpu.dot_dimension_numbers<[1], [0], [0], [1], [0, 0, 1, 1], [], []>} : vector<64x192xbf16>, vector<192x128xbf16>, vector<64x128xf32> -> vector<64x128xf32>
    %c1_45 = arith.constant 1 : index
    %c0_46 = arith.constant 0 : index
    %c0_47 = arith.constant 0 : index
    %c0_48 = arith.constant 0 : index
    %49 = vector.load %arg8[%c1_45, %c0_46, %c0_47, %c0_48] : memref<4x2x1x128xf32, #tpu.memory_space<vmem>>, vector<1x1x1x128xf32>
    %50 = vector.shape_cast %49 : vector<1x1x1x128xf32> to vector<1x128xf32>
    %51 = vector.broadcast %50 : vector<1x128xf32> to vector<64x128xf32>
    %52 = arith.addf %48, %51 : vector<64x128xf32>
    %cst_49 = arith.constant 0.000000e+00 : f32
    %53 = vector.broadcast %cst_49 : f32 to vector<64x128xf32>
    %54 = arith.maximumf %52, %53 : vector<64x128xf32>
    %55 = arith.truncf %54 : vector<64x128xf32> to vector<64x128xbf16>
    %c1_50 = arith.constant 1 : index
    %c0_51 = arith.constant 0 : index
    %c0_52 = arith.constant 0 : index
    %c0_53 = arith.constant 0 : index
    %56 = vector.load %arg5[%c1_50, %c0_51, %c0_52, %c0_53] : memref<4x1x128x128xbf16, #tpu.memory_space<vmem>>, vector<1x1x128x128xbf16>
    %57 = vector.shape_cast %56 : vector<1x1x128x128xbf16> to vector<128x128xbf16>
    %cst_54 = arith.constant dense<0.000000e+00> : vector<64x128xf32>
    %58 = tpu.matmul %55, %57, %cst_54 {dimension_numbers = #tpu.dot_dimension_numbers<[1], [0], [0], [1], [0, 0, 1, 1], [], []>} : vector<64x128xbf16>, vector<128x128xbf16>, vector<64x128xf32> -> vector<64x128xf32>
    %c1_55 = arith.constant 1 : index
    %c1_56 = arith.constant 1 : index
    %c0_57 = arith.constant 0 : index
    %c0_58 = arith.constant 0 : index
    %59 = vector.load %arg8[%c1_55, %c1_56, %c0_57, %c0_58] : memref<4x2x1x128xf32, #tpu.memory_space<vmem>>, vector<1x1x1x128xf32>
    %60 = vector.shape_cast %59 : vector<1x1x1x128xf32> to vector<1x128xf32>
    %61 = vector.broadcast %60 : vector<1x128xf32> to vector<64x128xf32>
    %62 = arith.addf %58, %61 : vector<64x128xf32>
    %cst_59 = arith.constant 0.000000e+00 : f32
    %63 = vector.broadcast %cst_59 : f32 to vector<64x128xf32>
    %64 = arith.maximumf %62, %63 : vector<64x128xf32>
    %65 = arith.truncf %64 : vector<64x128xf32> to vector<64x128xbf16>
    %c1_60 = arith.constant 1 : index
    %c0_61 = arith.constant 0 : index
    %c0_62 = arith.constant 0 : index
    %66 = vector.load %arg6[%c1_60, %c0_61, %c0_62] : memref<4x128x192xbf16, #tpu.memory_space<vmem>>, vector<1x128x192xbf16>
    %67 = vector.shape_cast %66 : vector<1x128x192xbf16> to vector<128x192xbf16>
    %cst_63 = arith.constant dense<0.000000e+00> : vector<64x192xf32>
    %68 = tpu.matmul %65, %67, %cst_63 {dimension_numbers = #tpu.dot_dimension_numbers<[1], [0], [0], [1], [0, 0, 1, 1], [], []>} : vector<64x128xbf16>, vector<128x192xbf16>, vector<64x192xf32> -> vector<64x192xf32>
    %c1_64 = arith.constant 1 : index
    %c0_65 = arith.constant 0 : index
    %c0_66 = arith.constant 0 : index
    %69 = vector.load %arg9[%c1_64, %c0_65, %c0_66] : memref<4x1x192xf32, #tpu.memory_space<vmem>>, vector<1x1x192xf32>
    %70 = vector.shape_cast %69 : vector<1x1x192xf32> to vector<1x192xf32>
    %71 = vector.broadcast %70 : vector<1x192xf32> to vector<64x192xf32>
    %72 = arith.addf %68, %71 : vector<64x192xf32>
    %c1_67 = arith.constant 1 : index
    %c0_68 = arith.constant 0 : index
    %c0_69 = arith.constant 0 : index
    %73 = vector.load %arg7[%c1_67, %c0_68, %c0_69] : memref<4x128x16xbf16, #tpu.memory_space<vmem>>, vector<1x128x16xbf16>
    %74 = vector.shape_cast %73 : vector<1x128x16xbf16> to vector<128x16xbf16>
    %cst_70 = arith.constant dense<0.000000e+00> : vector<64x16xf32>
    %75 = tpu.matmul %65, %74, %cst_70 {dimension_numbers = #tpu.dot_dimension_numbers<[1], [0], [0], [1], [0, 0, 1, 1], [], []>} : vector<64x128xbf16>, vector<128x16xbf16>, vector<64x16xf32> -> vector<64x16xf32>
    %c1_71 = arith.constant 1 : index
    %c0_72 = arith.constant 0 : index
    %c0_73 = arith.constant 0 : index
    %76 = vector.load %arg10[%c1_71, %c0_72, %c0_73] : memref<4x1x16xf32, #tpu.memory_space<vmem>>, vector<1x1x16xf32>
    %77 = vector.shape_cast %76 : vector<1x1x16xf32> to vector<1x16xf32>
    %78 = vector.broadcast %77 : vector<1x16xf32> to vector<64x16xf32>
    %79 = arith.addf %75, %78 : vector<64x16xf32>
    %80 = arith.subf %44, %72 : vector<64x192xf32>
    %c0_74 = arith.constant 0 : index
    %c0_75 = arith.constant 0 : index
    %81 = vector.load %arg12[%c0_74, %c0_75] : memref<64x192xf32, #tpu.memory_space<vmem>>, vector<64x192xf32>
    tpu.vector_store %arg12[%c0_74, %c0_75], %80 {strides = array<i32>} : memref<64x192xf32, #tpu.memory_space<vmem>>, vector<64x192xf32>,
    %c0_76 = arith.constant 0 : index
    %c0_77 = arith.constant 0 : index
    %82 = vector.load %arg13[%c0_76, %c0_77] : memref<64x16xf32, #tpu.memory_space<vmem>>, vector<64x16xf32>
    %83 = arith.addf %82, %79 : vector<64x16xf32>
    %c0_78 = arith.constant 0 : index
    %c0_79 = arith.constant 0 : index
    %84 = vector.load %arg13[%c0_78, %c0_79] : memref<64x16xf32, #tpu.memory_space<vmem>>, vector<64x16xf32>
    tpu.vector_store %arg13[%c0_78, %c0_79], %83 {strides = array<i32>} : memref<64x16xf32, #tpu.memory_space<vmem>>, vector<64x16xf32>,
    %c0_80 = arith.constant 0 : index
    %c0_81 = arith.constant 0 : index
    %85 = vector.load %arg12[%c0_80, %c0_81] : memref<64x192xf32, #tpu.memory_space<vmem>>, vector<64x192xf32>
    %86 = arith.truncf %85 : vector<64x192xf32> to vector<64x192xbf16>
    %c2 = arith.constant 2 : index
    %c0_82 = arith.constant 0 : index
    %c0_83 = arith.constant 0 : index
    %87 = vector.load %arg4[%c2, %c0_82, %c0_83] : memref<4x192x128xbf16, #tpu.memory_space<vmem>>, vector<1x192x128xbf16>
    %88 = vector.shape_cast %87 : vector<1x192x128xbf16> to vector<192x128xbf16>
    %cst_84 = arith.constant dense<0.000000e+00> : vector<64x128xf32>
    %89 = tpu.matmul %86, %88, %cst_84 {dimension_numbers = #tpu.dot_dimension_numbers<[1], [0], [0], [1], [0, 0, 1, 1], [], []>} : vector<64x192xbf16>, vector<192x128xbf16>, vector<64x128xf32> -> vector<64x128xf32>
    %c2_85 = arith.constant 2 : index
    %c0_86 = arith.constant 0 : index
    %c0_87 = arith.constant 0 : index
    %c0_88 = arith.constant 0 : index
    %90 = vector.load %arg8[%c2_85, %c0_86, %c0_87, %c0_88] : memref<4x2x1x128xf32, #tpu.memory_space<vmem>>, vector<1x1x1x128xf32>
    %91 = vector.shape_cast %90 : vector<1x1x1x128xf32> to vector<1x128xf32>
    %92 = vector.broadcast %91 : vector<1x128xf32> to vector<64x128xf32>
    %93 = arith.addf %89, %92 : vector<64x128xf32>
    %cst_89 = arith.constant 0.000000e+00 : f32
    %94 = vector.broadcast %cst_89 : f32 to vector<64x128xf32>
    %95 = arith.maximumf %93, %94 : vector<64x128xf32>
    %96 = arith.truncf %95 : vector<64x128xf32> to vector<64x128xbf16>
    %c2_90 = arith.constant 2 : index
    %c0_91 = arith.constant 0 : index
    %c0_92 = arith.constant 0 : index
    %c0_93 = arith.constant 0 : index
    %97 = vector.load %arg5[%c2_90, %c0_91, %c0_92, %c0_93] : memref<4x1x128x128xbf16, #tpu.memory_space<vmem>>, vector<1x1x128x128xbf16>
    %98 = vector.shape_cast %97 : vector<1x1x128x128xbf16> to vector<128x128xbf16>
    %cst_94 = arith.constant dense<0.000000e+00> : vector<64x128xf32>
    %99 = tpu.matmul %96, %98, %cst_94 {dimension_numbers = #tpu.dot_dimension_numbers<[1], [0], [0], [1], [0, 0, 1, 1], [], []>} : vector<64x128xbf16>, vector<128x128xbf16>, vector<64x128xf32> -> vector<64x128xf32>
    %c2_95 = arith.constant 2 : index
    %c1_96 = arith.constant 1 : index
    %c0_97 = arith.constant 0 : index
    %c0_98 = arith.constant 0 : index
    %100 = vector.load %arg8[%c2_95, %c1_96, %c0_97, %c0_98] : memref<4x2x1x128xf32, #tpu.memory_space<vmem>>, vector<1x1x1x128xf32>
    %101 = vector.shape_cast %100 : vector<1x1x1x128xf32> to vector<1x128xf32>
    %102 = vector.broadcast %101 : vector<1x128xf32> to vector<64x128xf32>
    %103 = arith.addf %99, %102 : vector<64x128xf32>
    %cst_99 = arith.constant 0.000000e+00 : f32
    %104 = vector.broadcast %cst_99 : f32 to vector<64x128xf32>
    %105 = arith.maximumf %103, %104 : vector<64x128xf32>
    %106 = arith.truncf %105 : vector<64x128xf32> to vector<64x128xbf16>
    %c2_100 = arith.constant 2 : index
    %c0_101 = arith.constant 0 : index
    %c0_102 = arith.constant 0 : index
    %107 = vector.load %arg6[%c2_100, %c0_101, %c0_102] : memref<4x128x192xbf16, #tpu.memory_space<vmem>>, vector<1x128x192xbf16>
    %108 = vector.shape_cast %107 : vector<1x128x192xbf16> to vector<128x192xbf16>
    %cst_103 = arith.constant dense<0.000000e+00> : vector<64x192xf32>
    %109 = tpu.matmul %106, %108, %cst_103 {dimension_numbers = #tpu.dot_dimension_numbers<[1], [0], [0], [1], [0, 0, 1, 1], [], []>} : vector<64x128xbf16>, vector<128x192xbf16>, vector<64x192xf32> -> vector<64x192xf32>
    %c2_104 = arith.constant 2 : index
    %c0_105 = arith.constant 0 : index
    %c0_106 = arith.constant 0 : index
    %110 = vector.load %arg9[%c2_104, %c0_105, %c0_106] : memref<4x1x192xf32, #tpu.memory_space<vmem>>, vector<1x1x192xf32>
    %111 = vector.shape_cast %110 : vector<1x1x192xf32> to vector<1x192xf32>
    %112 = vector.broadcast %111 : vector<1x192xf32> to vector<64x192xf32>
    %113 = arith.addf %109, %112 : vector<64x192xf32>
    %c2_107 = arith.constant 2 : index
    %c0_108 = arith.constant 0 : index
    %c0_109 = arith.constant 0 : index
    %114 = vector.load %arg7[%c2_107, %c0_108, %c0_109] : memref<4x128x16xbf16, #tpu.memory_space<vmem>>, vector<1x128x16xbf16>
    %115 = vector.shape_cast %114 : vector<1x128x16xbf16> to vector<128x16xbf16>
    %cst_110 = arith.constant dense<0.000000e+00> : vector<64x16xf32>
    %116 = tpu.matmul %106, %115, %cst_110 {dimension_numbers = #tpu.dot_dimension_numbers<[1], [0], [0], [1], [0, 0, 1, 1], [], []>} : vector<64x128xbf16>, vector<128x16xbf16>, vector<64x16xf32> -> vector<64x16xf32>
    %c2_111 = arith.constant 2 : index
    %c0_112 = arith.constant 0 : index
    %c0_113 = arith.constant 0 : index
    %117 = vector.load %arg10[%c2_111, %c0_112, %c0_113] : memref<4x1x16xf32, #tpu.memory_space<vmem>>, vector<1x1x16xf32>
    %118 = vector.shape_cast %117 : vector<1x1x16xf32> to vector<1x16xf32>
    %119 = vector.broadcast %118 : vector<1x16xf32> to vector<64x16xf32>
    %120 = arith.addf %116, %119 : vector<64x16xf32>
    %121 = arith.subf %85, %113 : vector<64x192xf32>
    %c0_114 = arith.constant 0 : index
    %c0_115 = arith.constant 0 : index
    %122 = vector.load %arg12[%c0_114, %c0_115] : memref<64x192xf32, #tpu.memory_space<vmem>>, vector<64x192xf32>
    tpu.vector_store %arg12[%c0_114, %c0_115], %121 {strides = array<i32>} : memref<64x192xf32, #tpu.memory_space<vmem>>, vector<64x192xf32>,
    %c0_116 = arith.constant 0 : index
    %c0_117 = arith.constant 0 : index
    %123 = vector.load %arg13[%c0_116, %c0_117] : memref<64x16xf32, #tpu.memory_space<vmem>>, vector<64x16xf32>
    %124 = arith.addf %123, %120 : vector<64x16xf32>
    %c0_118 = arith.constant 0 : index
    %c0_119 = arith.constant 0 : index
    %125 = vector.load %arg13[%c0_118, %c0_119] : memref<64x16xf32, #tpu.memory_space<vmem>>, vector<64x16xf32>
    tpu.vector_store %arg13[%c0_118, %c0_119], %124 {strides = array<i32>} : memref<64x16xf32, #tpu.memory_space<vmem>>, vector<64x16xf32>,
    %c0_120 = arith.constant 0 : index
    %c0_121 = arith.constant 0 : index
    %126 = vector.load %arg12[%c0_120, %c0_121] : memref<64x192xf32, #tpu.memory_space<vmem>>, vector<64x192xf32>
    %127 = arith.truncf %126 : vector<64x192xf32> to vector<64x192xbf16>
    %c3 = arith.constant 3 : index
    %c0_122 = arith.constant 0 : index
    %c0_123 = arith.constant 0 : index
    %128 = vector.load %arg4[%c3, %c0_122, %c0_123] : memref<4x192x128xbf16, #tpu.memory_space<vmem>>, vector<1x192x128xbf16>
    %129 = vector.shape_cast %128 : vector<1x192x128xbf16> to vector<192x128xbf16>
    %cst_124 = arith.constant dense<0.000000e+00> : vector<64x128xf32>
    %130 = tpu.matmul %127, %129, %cst_124 {dimension_numbers = #tpu.dot_dimension_numbers<[1], [0], [0], [1], [0, 0, 1, 1], [], []>} : vector<64x192xbf16>, vector<192x128xbf16>, vector<64x128xf32> -> vector<64x128xf32>
    %c3_125 = arith.constant 3 : index
    %c0_126 = arith.constant 0 : index
    %c0_127 = arith.constant 0 : index
    %c0_128 = arith.constant 0 : index
    %131 = vector.load %arg8[%c3_125, %c0_126, %c0_127, %c0_128] : memref<4x2x1x128xf32, #tpu.memory_space<vmem>>, vector<1x1x1x128xf32>
    %132 = vector.shape_cast %131 : vector<1x1x1x128xf32> to vector<1x128xf32>
    %133 = vector.broadcast %132 : vector<1x128xf32> to vector<64x128xf32>
    %134 = arith.addf %130, %133 : vector<64x128xf32>
    %cst_129 = arith.constant 0.000000e+00 : f32
    %135 = vector.broadcast %cst_129 : f32 to vector<64x128xf32>
    %136 = arith.maximumf %134, %135 : vector<64x128xf32>
    %137 = arith.truncf %136 : vector<64x128xf32> to vector<64x128xbf16>
    %c3_130 = arith.constant 3 : index
    %c0_131 = arith.constant 0 : index
    %c0_132 = arith.constant 0 : index
    %c0_133 = arith.constant 0 : index
    %138 = vector.load %arg5[%c3_130, %c0_131, %c0_132, %c0_133] : memref<4x1x128x128xbf16, #tpu.memory_space<vmem>>, vector<1x1x128x128xbf16>
    %139 = vector.shape_cast %138 : vector<1x1x128x128xbf16> to vector<128x128xbf16>
    %cst_134 = arith.constant dense<0.000000e+00> : vector<64x128xf32>
    %140 = tpu.matmul %137, %139, %cst_134 {dimension_numbers = #tpu.dot_dimension_numbers<[1], [0], [0], [1], [0, 0, 1, 1], [], []>} : vector<64x128xbf16>, vector<128x128xbf16>, vector<64x128xf32> -> vector<64x128xf32>
    %c3_135 = arith.constant 3 : index
    %c1_136 = arith.constant 1 : index
    %c0_137 = arith.constant 0 : index
    %c0_138 = arith.constant 0 : index
    %141 = vector.load %arg8[%c3_135, %c1_136, %c0_137, %c0_138] : memref<4x2x1x128xf32, #tpu.memory_space<vmem>>, vector<1x1x1x128xf32>
    %142 = vector.shape_cast %141 : vector<1x1x1x128xf32> to vector<1x128xf32>
    %143 = vector.broadcast %142 : vector<1x128xf32> to vector<64x128xf32>
    %144 = arith.addf %140, %143 : vector<64x128xf32>
    %cst_139 = arith.constant 0.000000e+00 : f32
    %145 = vector.broadcast %cst_139 : f32 to vector<64x128xf32>
    %146 = arith.maximumf %144, %145 : vector<64x128xf32>
    %147 = arith.truncf %146 : vector<64x128xf32> to vector<64x128xbf16>
    %c3_140 = arith.constant 3 : index
    %c0_141 = arith.constant 0 : index
    %c0_142 = arith.constant 0 : index
    %148 = vector.load %arg6[%c3_140, %c0_141, %c0_142] : memref<4x128x192xbf16, #tpu.memory_space<vmem>>, vector<1x128x192xbf16>
    %149 = vector.shape_cast %148 : vector<1x128x192xbf16> to vector<128x192xbf16>
    %cst_143 = arith.constant dense<0.000000e+00> : vector<64x192xf32>
    %150 = tpu.matmul %147, %149, %cst_143 {dimension_numbers = #tpu.dot_dimension_numbers<[1], [0], [0], [1], [0, 0, 1, 1], [], []>} : vector<64x128xbf16>, vector<128x192xbf16>, vector<64x192xf32> -> vector<64x192xf32>
    %c3_144 = arith.constant 3 : index
    %c0_145 = arith.constant 0 : index
    %c0_146 = arith.constant 0 : index
    %151 = vector.load %arg9[%c3_144, %c0_145, %c0_146] : memref<4x1x192xf32, #tpu.memory_space<vmem>>, vector<1x1x192xf32>
    %152 = vector.shape_cast %151 : vector<1x1x192xf32> to vector<1x192xf32>
    %153 = vector.broadcast %152 : vector<1x192xf32> to vector<64x192xf32>
    %154 = arith.addf %150, %153 : vector<64x192xf32>
    %c3_147 = arith.constant 3 : index
    %c0_148 = arith.constant 0 : index
    %c0_149 = arith.constant 0 : index
    %155 = vector.load %arg7[%c3_147, %c0_148, %c0_149] : memref<4x128x16xbf16, #tpu.memory_space<vmem>>, vector<1x128x16xbf16>
    %156 = vector.shape_cast %155 : vector<1x128x16xbf16> to vector<128x16xbf16>
    %cst_150 = arith.constant dense<0.000000e+00> : vector<64x16xf32>
    %157 = tpu.matmul %147, %156, %cst_150 {dimension_numbers = #tpu.dot_dimension_numbers<[1], [0], [0], [1], [0, 0, 1, 1], [], []>} : vector<64x128xbf16>, vector<128x16xbf16>, vector<64x16xf32> -> vector<64x16xf32>
    %c3_151 = arith.constant 3 : index
    %c0_152 = arith.constant 0 : index
    %c0_153 = arith.constant 0 : index
    %158 = vector.load %arg10[%c3_151, %c0_152, %c0_153] : memref<4x1x16xf32, #tpu.memory_space<vmem>>, vector<1x1x16xf32>
    %159 = vector.shape_cast %158 : vector<1x1x16xf32> to vector<1x16xf32>
    %160 = vector.broadcast %159 : vector<1x16xf32> to vector<64x16xf32>
    %161 = arith.addf %157, %160 : vector<64x16xf32>
    %162 = arith.subf %126, %154 : vector<64x192xf32>
    %c0_154 = arith.constant 0 : index
    %c0_155 = arith.constant 0 : index
    %163 = vector.load %arg12[%c0_154, %c0_155] : memref<64x192xf32, #tpu.memory_space<vmem>>, vector<64x192xf32>
    tpu.vector_store %arg12[%c0_154, %c0_155], %162 {strides = array<i32>} : memref<64x192xf32, #tpu.memory_space<vmem>>, vector<64x192xf32>,
    %c0_156 = arith.constant 0 : index
    %c0_157 = arith.constant 0 : index
    %164 = vector.load %arg13[%c0_156, %c0_157] : memref<64x16xf32, #tpu.memory_space<vmem>>, vector<64x16xf32>
    %165 = arith.addf %164, %161 : vector<64x16xf32>
    %c0_158 = arith.constant 0 : index
    %c0_159 = arith.constant 0 : index
    %166 = vector.load %arg13[%c0_158, %c0_159] : memref<64x16xf32, #tpu.memory_space<vmem>>, vector<64x16xf32>
    tpu.vector_store %arg13[%c0_158, %c0_159], %165 {strides = array<i32>} : memref<64x16xf32, #tpu.memory_space<vmem>>, vector<64x16xf32>,
    %c0_i32_160 = arith.constant 0 : i32
    %167 = arith.cmpi eq, %arg0, %c0_i32_160 : i32
    %168 = arith.extui %167 : i1 to i32
    %c0_i32_161 = arith.constant 0 : i32
    %169 = arith.cmpi ne, %168, %c0_i32_161 : i32
    scf.if %169 {
      %c0_162 = arith.constant 0 : index
      %c0_163 = arith.constant 0 : index
      %170 = vector.load %arg13[%c0_162, %c0_163] : memref<64x16xf32, #tpu.memory_space<vmem>>, vector<64x16xf32>
      %c0_164 = arith.constant 0 : index
      %c0_165 = arith.constant 0 : index
      %171 = vector.load %arg2[%c0_164, %c0_165] : memref<64x16xf32, #tpu.memory_space<vmem>>, vector<64x16xf32>
      %172 = arith.mulf %170, %171 : vector<64x16xf32>
      %c0_166 = arith.constant 0 : index
      %c0_167 = arith.constant 0 : index
      %173 = vector.load %arg3[%c0_166, %c0_167] : memref<64x16xf32, #tpu.memory_space<vmem>>, vector<64x16xf32>
      %174 = math.absf %173 : vector<64x16xf32>
      %175 = math.absf %172 : vector<64x16xf32>
      %176 = arith.addf %174, %175 : vector<64x16xf32>
      %cst_168 = arith.constant 0.000000e+00 : f32
      %177 = vector.broadcast %cst_168 : f32 to vector<64x16xf32>
      %178 = arith.cmpf oeq, %176, %177 : vector<64x16xf32>
      %179 = arith.extui %178 : vector<64x16xi1> to vector<64x16xi32>
      %180 = arith.sitofp %179 : vector<64x16xi32> to vector<64x16xf32>
      %181 = arith.subf %173, %172 : vector<64x16xf32>
      %182 = math.absf %181 : vector<64x16xf32>
      %cst_169 = arith.constant 1.000000e+00 : f32
      %183 = vector.broadcast %cst_169 : f32 to vector<64x16xf32>
      %184 = arith.subf %183, %180 : vector<64x16xf32>
      %185 = arith.mulf %182, %184 : vector<64x16xf32>
      %186 = arith.addf %176, %180 : vector<64x16xf32>
      %187 = arith.divf %185, %186 : vector<64x16xf32>
      %188 = tpu.iota {dimensions = array<i32: 0>} : vector<64x16xi32>
      %c64_i32 = arith.constant 64 : i32
      %189 = vector.broadcast %c64_i32 : i32 to vector<64x16xi32>
      %190 = arith.cmpi slt, %188, %189 : vector<64x16xi32>
      %191 = arith.extui %190 : vector<64x16xi1> to vector<64x16xi32>
      %192 = arith.sitofp %191 : vector<64x16xi32> to vector<64x16xf32>
      %193 = arith.mulf %187, %192 : vector<64x16xf32>
      %194 = vector.shape_cast %193 : vector<64x16xf32> to vector<1x64x16xf32>
      %cst_170 = arith.constant dense<0.000000e+00> : vector<1xf32>
      %195 = vector.multi_reduction <add>, %194, %cst_170 [1, 2] : vector<1x64x16xf32> to vector<1xf32>
      %196 = vector.shape_cast %195 : vector<1xf32> to vector<1x1x1xf32>
      %197 = vector.extract %196[0, 0, 0] : f32 from vector<1x1x1xf32>
      %cst_171 = arith.constant 2.500000e+01 : f32
      %198 = arith.mulf %cst_171, %197 : f32
      %cst_172 = arith.constant 1.024000e+03 : f32
      %199 = arith.divf %198, %cst_172 : f32
      %c0_173 = arith.constant 0 : index
      %c0_174 = arith.constant 0 : index
      %200 = memref.load %arg11[%c0_173, %c0_174] : memref<1x1xf32, #tpu.memory_space<smem>>
      memref.store %199, %arg11[%c0_173, %c0_174] : memref<1x1xf32, #tpu.memory_space<smem>>
    } else {
    }
    return
  }
  func.func @transform_0(%arg0: i32) -> (i32, i32) {
    %c0_i32 = arith.constant 0 : i32
    %c0_i32_0 = arith.constant 0 : i32
    %c0_i32_1 = arith.constant 0 : i32
    return %c0_i32, %c0_i32_0 : i32, i32
  }
  func.func @transform_1(%arg0: i32) -> (i32, i32) {
    %c0_i32 = arith.constant 0 : i32
    %c0_i32_0 = arith.constant 0 : i32
    %c0_i32_1 = arith.constant 0 : i32
    return %c0_i32, %c0_i32_0 : i32, i32
  }
  func.func @transform_2(%arg0: i32) -> (i32, i32) {
    %c0_i32 = arith.constant 0 : i32
    %c0_i32_0 = arith.constant 0 : i32
    %c0_i32_1 = arith.constant 0 : i32
    return %c0_i32, %c0_i32_0 : i32, i32
  }
  func.func @transform_3(%arg0: i32) -> (i32, i32, i32) {
    %c0_i32 = arith.constant 0 : i32
    %c0_i32_0 = arith.constant 0 : i32
    %c0_i32_1 = arith.constant 0 : i32
    return %arg0, %c0_i32, %c0_i32_0 : i32, i32, i32
  }
  func.func @transform_4(%arg0: i32) -> (i32, i32, i32, i32) {
    %c0_i32 = arith.constant 0 : i32
    %c0_i32_0 = arith.constant 0 : i32
    %c0_i32_1 = arith.constant 0 : i32
    %c0_i32_2 = arith.constant 0 : i32
    return %arg0, %c0_i32, %c0_i32_0, %c0_i32_1 : i32, i32, i32, i32
  }
  func.func @transform_5(%arg0: i32) -> (i32, i32, i32) {
    %c0_i32 = arith.constant 0 : i32
    %c0_i32_0 = arith.constant 0 : i32
    %c0_i32_1 = arith.constant 0 : i32
    return %arg0, %c0_i32, %c0_i32_0 : i32, i32, i32
  }
  func.func @transform_6(%arg0: i32) -> (i32, i32, i32) {
    %c0_i32 = arith.constant 0 : i32
    %c0_i32_0 = arith.constant 0 : i32
    %c0_i32_1 = arith.constant 0 : i32
    return %arg0, %c0_i32, %c0_i32_0 : i32, i32, i32
  }
  func.func @transform_7(%arg0: i32) -> (i32, i32, i32, i32) {
    %c0_i32 = arith.constant 0 : i32
    %c0_i32_0 = arith.constant 0 : i32
    %c0_i32_1 = arith.constant 0 : i32
    %c0_i32_2 = arith.constant 0 : i32
    return %arg0, %c0_i32, %c0_i32_0, %c0_i32_1 : i32, i32, i32, i32
  }
  func.func @transform_8(%arg0: i32) -> (i32, i32, i32) {
    %c0_i32 = arith.constant 0 : i32
    %c0_i32_0 = arith.constant 0 : i32
    %c0_i32_1 = arith.constant 0 : i32
    return %arg0, %c0_i32, %c0_i32_0 : i32, i32, i32
  }
  func.func @transform_9(%arg0: i32) -> (i32, i32, i32) {
    %c0_i32 = arith.constant 0 : i32
    %c0_i32_0 = arith.constant 0 : i32
    %c0_i32_1 = arith.constant 0 : i32
    return %arg0, %c0_i32, %c0_i32_0 : i32, i32, i32
  }
  func.func @transform_10(%arg0: i32) -> (i32, i32) {
    %c0_i32 = arith.constant 0 : i32
    %c0_i32_0 = arith.constant 0 : i32
    %c0_i32_1 = arith.constant 0 : i32
    return %c0_i32, %c0_i32_0 : i32, i32
  }
}

</mosaic_0001>

<llo_original>
// kernel: tpu_custom_call.1
$region0: #{tpu_custom_call.1}
  #allocation0 [shape = 'u32[]', space=smem, size = 0x4, offset = 0x4, fixed_abs, tag = 'smem constant byte address 0x4 - core index']
  #allocation1 [shape = 'u32[144,128]{1,0:T(1,128)}', space=vmem, size = 0x12000, scoped, tag = 'internal scratch']
  #allocation2 [shape = 'f32[64,192]{1,0:T(8,128)}', space=vmem, size = 0x10000, scoped, tag = 'scratch operand']
  #allocation3 [shape = 'f32[64,16]{1,0:T(8,128)}', space=vmem, size = 0x8000, scoped, tag = 'scratch operand']
  %s0 = inlined_call_operand.vmem [shape: f32[64,192], index: 0, kind: input, shape index: {}]
  %s1 = inlined_call_operand.vmem [shape: f32[64,16], index: 1, kind: input, shape index: {}]
  %s2 = inlined_call_operand.vmem [shape: f32[64,16], index: 2, kind: input, shape index: {}]
  %s3 = inlined_call_operand.vmem [shape: bf16[4,192,128], index: 3, kind: input, shape index: {}]
  %s4 = inlined_call_operand.vmem [shape: bf16[4,1,128,128], index: 4, kind: input, shape index: {}]
  %s5 = inlined_call_operand.vmem [shape: bf16[4,128,192], index: 5, kind: input, shape index: {}]
  %s6 = inlined_call_operand.vmem [shape: bf16[4,128,16], index: 6, kind: input, shape index: {}]
  %s7 = inlined_call_operand.vmem [shape: f32[4,2,1,128], index: 7, kind: input, shape index: {}]
  %s8 = inlined_call_operand.vmem [shape: f32[4,1,192], index: 8, kind: input, shape index: {}]
  %s9 = inlined_call_operand.vmem [shape: f32[4,1,16], index: 9, kind: input, shape index: {}]
  %s10 = inlined_call_operand.hbm [shape: f32[1,1], index: 10, kind: output, shape index: {}]
  %s11 = sld [smem:[#allocation0]]
  $region58: #{tpu_custom_call.1} parent=0
    _
  %s13 = ssub.s32 1, %s11
  %s14 = scalar_select 0, %s13, %s11
  $region1: #{tpu_custom_call.1} parent=0
    #allocation4 [shape = 'u8[512]{0}', space=smem, size = 0x200, scoped, tag = 'output window, operand 0, single buffered']
    #allocation5 [shape = 's32[1]{0}', space=sflag, size = 0x4, scoped, tag = 'scoped memory for tpu_custom_call.1']
    %15 = vsyncpa [#allocation5], 0
    // Predicated region
    $region2: #{tpu_custom_call.1} parent=1 // pred_check
      _
    $region3: #{tpu_custom_call.1} parent=1 // pred_check_branch
      %17 = sbr.rel (0) target = $region5
    $region4: #{tpu_custom_call.1} parent=1 // pred_region
      _
    $region5: #{tpu_custom_call.1} parent=1 // pred_fallthru
      _
    // Predicated region
    $region6: #{tpu_custom_call.1} parent=1 // pred_check
      _
    $region7: #{tpu_custom_call.1} parent=1 // pred_check_branch
      %19 = sbr.rel (0) target = $region9
    $region8: #{tpu_custom_call.1} parent=1 // pred_region
      _
    $region9: #{tpu_custom_call.1} parent=1 // pred_fallthru
      _
    // Predicated region
    $region10: #{tpu_custom_call.1} parent=1 // pred_check
      _
    $region11: #{tpu_custom_call.1} parent=1 // pred_check_branch
      %21 = sbr.rel (0) target = $region13
    $region12: #{tpu_custom_call.1} parent=1 // pred_region
      _
    $region13: #{tpu_custom_call.1} parent=1 // pred_fallthru
      _
    // Predicated region
    $region14: #{tpu_custom_call.1} parent=1 // pred_check
      _
    $region15: #{tpu_custom_call.1} parent=1 // pred_check_branch
      %23 = sbr.rel (0) target = $region17
    $region16: #{tpu_custom_call.1} parent=1 // pred_region
      _
    $region17: #{tpu_custom_call.1} parent=1 // pred_fallthru
      _
    // Predicated region
    $region18: #{tpu_custom_call.1} parent=1 // pred_check
      _
    $region19: #{tpu_custom_call.1} parent=1 // pred_check_branch
      %25 = sbr.rel (0) target = $region21
    $region20: #{tpu_custom_call.1} parent=1 // pred_region
      _
    $region21: #{tpu_custom_call.1} parent=1 // pred_fallthru
      _
    // Predicated region
    $region22: #{tpu_custom_call.1} parent=1 // pred_check
      _
    $region23: #{tpu_custom_call.1} parent=1 // pred_check_branch
      %27 = sbr.rel (0) target = $region25
    $region24: #{tpu_custom_call.1} parent=1 // pred_region
      _
    $region25: #{tpu_custom_call.1} parent=1 // pred_fallthru
      _
    // Predicated region
    $region26: #{tpu_custom_call.1} parent=1 // pred_check
      _
    $region27: #{tpu_custom_call.1} parent=1 // pred_check_branch
      %29 = sbr.rel (0) target = $region29
    $region28: #{tpu_custom_call.1} parent=1 // pred_region
      _
    $region29: #{tpu_custom_call.1} parent=1 // pred_fallthru
      _
    // Predicated region
    $region30: #{tpu_custom_call.1} parent=1 // pred_check
      _
    $region31: #{tpu_custom_call.1} parent=1 // pred_check_branch
      %31 = sbr.rel (0) target = $region33
    $region32: #{tpu_custom_call.1} parent=1 // pred_region
      _
    $region33: #{tpu_custom_call.1} parent=1 // pred_fallthru
      _
    // Predicated region
    $region34: #{tpu_custom_call.1} parent=1 // pred_check
      _
    $region35: #{tpu_custom_call.1} parent=1 // pred_check_branch
      %33 = sbr.rel (0) target = $region37
    $region36: #{tpu_custom_call.1} parent=1 // pred_region
      _
    $region37: #{tpu_custom_call.1} parent=1 // pred_fallthru
      _
    // Predicated region
    $region38: #{tpu_custom_call.1} parent=1 // pred_check
      _
    $region39: #{tpu_custom_call.1} parent=1 // pred_check_branch
      %35 = sbr.rel (0) target = $region41
    $region40: #{tpu_custom_call.1} parent=1 // pred_region
      _
    $region41: #{tpu_custom_call.1} parent=1 // pred_fallthru
      _
    %p37 = scmp.eq.s32.totalorder 0, 0
    // Predicated region
    $region42: #{tpu_custom_call.1} parent=1 // pred_check
      %p38 = pneg %p37
    $region43: #{tpu_custom_call.1} parent=1 // pred_check_branch
      %40 = sbr.rel (%p38) target = $region45
    $region44: #{tpu_custom_call.1} parent=1 // pred_region
      %v41 = vld [vmem:[%s0] sm:$0xff]
      %v42 = vld [vmem:[%s0 + $0x8] sm:$0xff]
      %v43 = vld [vmem:[%s0 + $0x10] sm:$0xff]
      %v44 = vld [vmem:[%s0 + $0x18] sm:$0xff]
      %v45 = vld [vmem:[%s0 + $0x20] sm:$0xff]
      %v46 = vld [vmem:[%s0 + $0x28] sm:$0xff]
      %v47 = vld [vmem:[%s0 + $0x30] sm:$0xff]
      %v48 = vld [vmem:[%s0 + $0x38] sm:$0xff]
      %v49 = vld [vmem:[%s0 + $0x40] sm:$0xff]
      %v50 = vld [vmem:[%s0 + $0x48] sm:$0xff]
      %v51 = vld [vmem:[%s0 + $0x50] sm:$0xff]
      %v52 = vld [vmem:[%s0 + $0x58] sm:$0xff]
      %v53 = vld [vmem:[%s0 + $0x60] sm:$0xff]
      %v54 = vld [vmem:[%s0 + $0x68] sm:$0xff]
      %v55 = vld [vmem:[%s0 + $0x70] sm:$0xff]
      %v56 = vld [vmem:[%s0 + $0x78] sm:$0xff]
      %57 = vst [vmem:[#allocation2] sm:$0xff] %v41
      %vm58 = vcmask 523264
      %59 = vst.msk [vmem:[#allocation2 + $0x8] sm:$0xff] %vm58, %v42
      %60 = vst [vmem:[#allocation2 + $0x10] sm:$0xff] %v43
      %61 = vst.msk [vmem:[#allocation2 + $0x18] sm:$0xff] %vm58, %v44
      %62 = vst [vmem:[#allocation2 + $0x20] sm:$0xff] %v45
      %63 = vst.msk [vmem:[#allocation2 + $0x28] sm:$0xff] %vm58, %v46
      %64 = vst [vmem:[#allocation2 + $0x30] sm:$0xff] %v47
      %65 = vst.msk [vmem:[#allocation2 + $0x38] sm:$0xff] %vm58, %v48
      %66 = vst [vmem:[#allocation2 + $0x40] sm:$0xff] %v49
      %67 = vst.msk [vmem:[#allocation2 + $0x48] sm:$0xff] %vm58, %v50
      %68 = vst [vmem:[#allocation2 + $0x50] sm:$0xff] %v51
      %69 = vst.msk [vmem:[#allocation2 + $0x58] sm:$0xff] %vm58, %v52
      %70 = vst [vmem:[#allocation2 + $0x60] sm:$0xff] %v53
      %71 = vst.msk [vmem:[#allocation2 + $0x68] sm:$0xff] %vm58, %v54
      %72 = vst [vmem:[#allocation2 + $0x70] sm:$0xff] %v55
      %73 = vst.msk [vmem:[#allocation2 + $0x78] sm:$0xff] %vm58, %v56
      %vm74 = vcmask 130048
      %75 = vst.msk [vmem:[#allocation3] sm:$0xff] %vm74, 0.0
      %76 = vst.msk [vmem:[#allocation3 + $0x8] sm:$0xff] %vm74, 0.0
      %77 = vst.msk [vmem:[#allocation3 + $0x10] sm:$0xff] %vm74, 0.0
      %78 = vst.msk [vmem:[#allocation3 + $0x18] sm:$0xff] %vm74, 0.0
      %79 = vst.msk [vmem:[#allocation3 + $0x20] sm:$0xff] %vm74, 0.0
      %80 = vst.msk [vmem:[#allocation3 + $0x28] sm:$0xff] %vm74, 0.0
      %81 = vst.msk [vmem:[#allocation3 + $0x30] sm:$0xff] %vm74, 0.0
      %82 = vst.msk [vmem:[#allocation3 + $0x38] sm:$0xff] %vm74, 0.0
    $region45: #{tpu_custom_call.1} parent=1 // pred_fallthru
      _
    %v83 = vld [vmem:[#allocation2] sm:$0xff]
    %v84 = vld [vmem:[#allocation2 + $0x8] sm:$0xff]
    %v85 = vld [vmem:[#allocation2 + $0x10] sm:$0xff]
    %v86 = vld [vmem:[#allocation2 + $0x18] sm:$0xff]
    %v87 = vld [vmem:[#allocation2 + $0x20] sm:$0xff]
    %v88 = vld [vmem:[#allocation2 + $0x28] sm:$0xff]
    %v89 = vld [vmem:[#allocation2 + $0x30] sm:$0xff]
    %v90 = vld [vmem:[#allocation2 + $0x38] sm:$0xff]
    %v91 = vld [vmem:[#allocation2 + $0x40] sm:$0xff]
    %v92 = vld [vmem:[#allocation2 + $0x48] sm:$0xff]
    %v93 = vld [vmem:[#allocation2 + $0x50] sm:$0xff]
    %v94 = vld [vmem:[#allocation2 + $0x58] sm:$0xff]
    %v95 = vld [vmem:[#allocation2 + $0x60] sm:$0xff]
    %v96 = vld [vmem:[#allocation2 + $0x68] sm:$0xff]
    %v97 = vld [vmem:[#allocation2 + $0x70] sm:$0xff]
    %v98 = vld [vmem:[#allocation2 + $0x78] sm:$0xff]
    %v99 = vpack.c.bf16 %v85, %v83
    %v100 = vpack.c.bf16 %v86, %v84
    %v101 = vpack.c.bf16 %v89, %v87
    %v102 = vpack.c.bf16 %v90, %v88
    %v103 = vpack.c.bf16 %v93, %v91
    %v104 = vpack.c.bf16 %v94, %v92
    %v105 = vpack.c.bf16 %v97, %v95
    %v106 = vpack.c.bf16 %v98, %v96
    %v107 = vld [vmem:[%s3] sm:$0xf]
    %v108 = vld [vmem:[%s3 + $0x4] sm:$0xf]
    %v109 = vld [vmem:[%s3 + $0x8] sm:$0xf]
    %v110 = vld [vmem:[%s3 + $0xc] sm:$0xf]
    %v111 = vld [vmem:[%s3 + $0x10] sm:$0xf]
    %v112 = vld [vmem:[%s3 + $0x14] sm:$0xf]
    %v113 = vld [vmem:[%s3 + $0x18] sm:$0xf]
    %v114 = vld [vmem:[%s3 + $0x1c] sm:$0xf]
    %v115 = vld [vmem:[%s3 + $0x20] sm:$0xf]
    %v116 = vld [vmem:[%s3 + $0x24] sm:$0xf]
    %v117 = vld [vmem:[%s3 + $0x28] sm:$0xf]
    %v118 = vld [vmem:[%s3 + $0x2c] sm:$0xf]
    %v119 = vld [vmem:[%s3 + $0x30] sm:$0xf]
    %v120 = vld [vmem:[%s3 + $0x34] sm:$0xf]
    %v121 = vld [vmem:[%s3 + $0x38] sm:$0xf]
    %v122 = vld [vmem:[%s3 + $0x3c] sm:$0xf]
    %v123 = vld [vmem:[%s3 + $0x40] sm:$0xf]
    %v124 = vld [vmem:[%s3 + $0x44] sm:$0xf]
    %v125 = vld [vmem:[%s3 + $0x48] sm:$0xf]
    %v126 = vld [vmem:[%s3 + $0x4c] sm:$0xf]
    %v127 = vld [vmem:[%s3 + $0x50] sm:$0xf]
    %v128 = vld [vmem:[%s3 + $0x54] sm:$0xf]
    %v129 = vld [vmem:[%s3 + $0x58] sm:$0xf]
    %v130 = vld [vmem:[%s3 + $0x5c] sm:$0xf]
    %v131 = vld [vmem:[%s7] sm:$0x1]
    %v133 = vlaneseq
    %v134 = vshrl.u32 %v133, 7
    %v135 = vsub.s32 0, %v134
    %v136 = vrot.slane %v131, %v135
    %v162 = vunpack.c.l.b16 %v107
    %v163 = vunpack.c.l.b16 %v108
    %v164 = vunpack.c.l.b16 %v109
    %v165 = vunpack.c.l.b16 %v110
    %v166 = vunpack.c.l.b16 %v111
    %v167 = vunpack.c.l.b16 %v112
    %v168 = vunpack.c.l.b16 %v113
    %v169 = vunpack.c.l.b16 %v114
    %v170 = vunpack.c.l.b16 %v115
    %v171 = vunpack.c.l.b16 %v116
    %v172 = vunpack.c.l.b16 %v117
    %v173 = vunpack.c.l.b16 %v118
    %v174 = vunpack.c.l.b16 %v119
    %v175 = vunpack.c.l.b16 %v120
    %v176 = vunpack.c.l.b16 %v121
    %v177 = vunpack.c.l.b16 %v122
    %v178 = vunpack.c.l.b16 %v123
    %v179 = vunpack.c.l.b16 %v124
    %v180 = vunpack.c.l.b16 %v125
    %v181 = vunpack.c.l.b16 %v126
    %v182 = vunpack.c.l.b16 %v127
    %v183 = vunpack.c.l.b16 %v128
    %v184 = vunpack.c.l.b16 %v129
    %v185 = vunpack.c.l.b16 %v130
    %v186 = vpack.c.b16 %v163, %v162
    %v187 = vpack.c.b16 %v165, %v164
    %v188 = vpack.c.b16 %v167, %v166
    %v189 = vpack.c.b16 %v169, %v168
    %v190 = vpack.c.b16 %v171, %v170
    %v191 = vpack.c.b16 %v173, %v172
    %v192 = vpack.c.b16 %v175, %v174
    %v193 = vpack.c.b16 %v177, %v176
    %v194 = vpack.c.b16 %v179, %v178
    %v195 = vpack.c.b16 %v181, %v180
    %v196 = vpack.c.b16 %v183, %v182
    %v197 = vpack.c.b16 %v185, %v184
    %vm210 = vcmask 523264
    %v212 = vsel %vm210, %v100, 0
    %v215 = vsel %vm210, %v102, 0
    %v218 = vsel %vm210, %v104, 0
    %v221 = vsel %vm210, %v106, 0
    %223 = vmatprep.subr.bf16.mxu0 0
    %224 = vmatpush1.bf16.msra.mxu0 %v186
    %225 = vmatprep.subr.bf16.mxu0 0
    %226 = vmatpush1.bf16.msra.mxu0 %v187
    %227 = vmatprep.subr.bf16.mxu0 0
    %228 = vmatpush1.bf16.msra.mxu0 %v188
    %229 = vmatprep.subr.bf16.mxu0 0
    %230 = vmatpush1.bf16.msra.mxu0 %v189
    %231 = vmatprep.subr.bf16.mxu0 0
    %232 = vmatpush1.bf16.msra.mxu0 %v190
    %233 = vmatprep.subr.bf16.mxu0 0
    %234 = vmatpush1.bf16.msra.mxu0 %v191
    %235 = vmatprep.subr.bf16.mxu0 0
    %236 = vmatpush1.bf16.msra.mxu0 %v192
    %237 = vmatprep.subr.bf16.mxu0 0
    %238 = vmatpush1.bf16.msra.mxu0 %v193
    %239 = vmatprep.subr.bf16.mxu0 0
    %240 = vmatpush1.bf16.msra.mxu0 %v194
    %241 = vmatprep.subr.bf16.mxu0 0
    %242 = vmatpush1.bf16.msra.mxu0 %v195
    %243 = vmatprep.subr.bf16.mxu0 0
    %244 = vmatpush1.bf16.msra.mxu0 %v196
    %245 = vmatprep.subr.bf16.mxu0 0
    %246 = vmatpush1.bf16.msra.mxu0 %v197
    %247 = vmatprep.subr.bf16.mxu0 0
    %248 = vmatpush1.bf16.msra.mxu0 0
    %249 = vmatprep.subr.bf16.mxu0 0
    %250 = vmatpush1.bf16.msra.mxu0 0
    %251 = vmatprep.subr.bf16.mxu0 0
    %252 = vmatpush1.bf16.msra.mxu0 0
    %253 = vmatprep.subr.bf16.mxu0 0
    %254 = vmatpush1.bf16.msra.mxu0 0
    %255 = vmatprep.mubr.bf16.mxu0 %v212
    %256 = vmatmul.mubr.bf16.gmra.mrb[0].mxu0 %v99
    %v257 = vpop.f32.mrb[0].mxu0
    %v258 = vadd.f32 %v136, %v257
    %v259 = vpop.f32.mrb[0].mxu0
    %v260 = vpop.f32.mrb[0].mxu0
    %v261 = vadd.f32 %v136, %v260
    %v262 = vpop.f32.mrb[0].mxu0
    %263 = vmatprep.mubr.bf16.mxu0 %v215
    %264 = vmatmul.mubr.bf16.gmra.mrb[0].mxu0 %v101
    %v265 = vpop.f32.mrb[0].mxu0
    %v266 = vadd.f32 %v136, %v265
    %v267 = vpop.f32.mrb[0].mxu0
    %v268 = vpop.f32.mrb[0].mxu0
    %v269 = vadd.f32 %v136, %v268
    %v270 = vpop.f32.mrb[0].mxu0
    %271 = vmatprep.mubr.bf16.mxu0 %v218
    %272 = vmatmul.mubr.bf16.gmra.mrb[0].mxu0 %v103
    %v273 = vpop.f32.mrb[0].mxu0
    %v274 = vadd.f32 %v136, %v273
    %v275 = vpop.f32.mrb[0].mxu0
    %v276 = vpop.f32.mrb[0].mxu0
    %v277 = vadd.f32 %v136, %v276
    %v278 = vpop.f32.mrb[0].mxu0
    %279 = vmatprep.mubr.bf16.mxu0 %v221
    %280 = vmatmul.mubr.bf16.gmra.mrb[0].mxu0 %v105
    %v281 = vpop.f32.mrb[0].mxu0
    %v282 = vadd.f32 %v136, %v281
    %v283 = vpop.f32.mrb[0].mxu0
    %v284 = vpop.f32.mrb[0].mxu0
    %v285 = vadd.f32 %v136, %v284
    %v286 = vpop.f32.mrb[0].mxu0
    %287 = vdwg.mxu0
    %v288 = vmax.f32 %v258, 0.0
    %v289 = vmax.f32 %v261, 0.0
    %v290 = vmax.f32 %v266, 0.0
    %v291 = vmax.f32 %v269, 0.0
    %v292 = vmax.f32 %v274, 0.0
    %v293 = vmax.f32 %v277, 0.0
    %v294 = vmax.f32 %v282, 0.0
    %v295 = vmax.f32 %v285, 0.0
    %v296 = vpack.c.bf16 %v289, %v288
    %v297 = vpack.c.bf16 %v291, %v290
    %v298 = vpack.c.bf16 %v293, %v292
    %v299 = vpack.c.bf16 %v295, %v294
    %v300 = vld [vmem:[%s4] sm:$0xf]
    %v301 = vld [vmem:[%s4 + $0x4] sm:$0xf]
    %v302 = vld [vmem:[%s4 + $0x8] sm:$0xf]
    %v303 = vld [vmem:[%s4 + $0xc] sm:$0xf]
    %v304 = vld [vmem:[%s4 + $0x10] sm:$0xf]
    %v305 = vld [vmem:[%s4 + $0x14] sm:$0xf]
    %v306 = vld [vmem:[%s4 + $0x18] sm:$0xf]
    %v307 = vld [vmem:[%s4 + $0x1c] sm:$0xf]
    %v308 = vld [vmem:[%s4 + $0x20] sm:$0xf]
    %v309 = vld [vmem:[%s4 + $0x24] sm:$0xf]
    %v310 = vld [vmem:[%s4 + $0x28] sm:$0xf]
    %v311 = vld [vmem:[%s4 + $0x2c] sm:$0xf]
    %v312 = vld [vmem:[%s4 + $0x30] sm:$0xf]
    %v313 = vld [vmem:[%s4 + $0x34] sm:$0xf]
    %v314 = vld [vmem:[%s4 + $0x38] sm:$0xf]
    %v315 = vld [vmem:[%s4 + $0x3c] sm:$0xf]
    %s316 = scalar_lea.vmem %s7, 1
    %v317 = vld [vmem:[%s316] sm:$0x1]
    %v319 = vlaneseq
    %v320 = vshrl.u32 %v319, 7
    %v321 = vsub.s32 0, %v320
    %v322 = vrot.slane %v317, %v321
    %v340 = vunpack.c.l.b16 %v300
    %v341 = vunpack.c.l.b16 %v301
    %v342 = vunpack.c.l.b16 %v302
    %v343 = vunpack.c.l.b16 %v303
    %v344 = vunpack.c.l.b16 %v304
    %v345 = vunpack.c.l.b16 %v305
    %v346 = vunpack.c.l.b16 %v306
    %v347 = vunpack.c.l.b16 %v307
    %v348 = vunpack.c.l.b16 %v308
    %v349 = vunpack.c.l.b16 %v309
    %v350 = vunpack.c.l.b16 %v310
    %v351 = vunpack.c.l.b16 %v311
    %v352 = vunpack.c.l.b16 %v312
    %v353 = vunpack.c.l.b16 %v313
    %v354 = vunpack.c.l.b16 %v314
    %v355 = vunpack.c.l.b16 %v315
    %v356 = vpack.c.b16 %v341, %v340
    %v357 = vpack.c.b16 %v343, %v342
    %v358 = vpack.c.b16 %v345, %v344
    %v359 = vpack.c.b16 %v347, %v346
    %v360 = vpack.c.b16 %v349, %v348
    %v361 = vpack.c.b16 %v351, %v350
    %v362 = vpack.c.b16 %v353, %v352
    %v363 = vpack.c.b16 %v355, %v354
    %372 = vmatprep.subr.bf16.mxu0 0
    %373 = vmatpush1.bf16.msra.mxu0 %v356
    %374 = vmatprep.subr.bf16.mxu0 0
    %375 = vmatpush1.bf16.msra.mxu0 %v357
    %376 = vmatprep.subr.bf16.mxu0 0
    %377 = vmatpush1.bf16.msra.mxu0 %v358
    %378 = vmatprep.subr.bf16.mxu0 0
    %379 = vmatpush1.bf16.msra.mxu0 %v359
    %380 = vmatprep.subr.bf16.mxu0 0
    %381 = vmatpush1.bf16.msra.mxu0 %v360
    %382 = vmatprep.subr.bf16.mxu0 0
    %383 = vmatpush1.bf16.msra.mxu0 %v361
    %384 = vmatprep.subr.bf16.mxu0 0
    %385 = vmatpush1.bf16.msra.mxu0 %v362
    %386 = vmatprep.subr.bf16.mxu0 0
    %387 = vmatpush1.bf16.msra.mxu0 %v363
    %388 = vmatprep.subr.bf16.mxu0 0
    %389 = vmatpush1.bf16.msra.mxu0 0
    %390 = vmatprep.subr.bf16.mxu0 0
    %391 = vmatpush1.bf16.msra.mxu0 0
    %392 = vmatprep.subr.bf16.mxu0 0
    %393 = vmatpush1.bf16.msra.mxu0 0
    %394 = vmatprep.subr.bf16.mxu0 0
    %395 = vmatpush1.bf16.msra.mxu0 0
    %396 = vmatprep.subr.bf16.mxu0 0
    %397 = vmatpush1.bf16.msra.mxu0 0
    %398 = vmatprep.subr.bf16.mxu0 0
    %399 = vmatpush1.bf16.msra.mxu0 0
    %400 = vmatprep.subr.bf16.mxu0 0
    %401 = vmatpush1.bf16.msra.mxu0 0
    %402 = vmatprep.subr.bf16.mxu0 0
    %403 = vmatpush1.bf16.msra.mxu0 0
    %404 = vmatprep.mubr.bf16.mxu0 0
    %405 = vmatmul.mubr.bf16.gmra.mrb[0].mxu0 %v296
    %v406 = vpop.f32.mrb[0].mxu0
    %v407 = vadd.f32 %v322, %v406
    %v408 = vpop.f32.mrb[0].mxu0
    %v409 = vpop.f32.mrb[0].mxu0
    %v410 = vadd.f32 %v322, %v409
    %v411 = vpop.f32.mrb[0].mxu0
    %412 = vmatprep.mubr.bf16.mxu0 0
    %413 = vmatmul.mubr.bf16.gmra.mrb[0].mxu0 %v297
    %v414 = vpop.f32.mrb[0].mxu0
    %v415 = vadd.f32 %v322, %v414
    %v416 = vpop.f32.mrb[0].mxu0
    %v417 = vpop.f32.mrb[0].mxu0
    %v418 = vadd.f32 %v322, %v417
    %v419 = vpop.f32.mrb[0].mxu0
    %420 = vmatprep.mubr.bf16.mxu0 0
    %421 = vmatmul.mubr.bf16.gmra.mrb[0].mxu0 %v298
    %v422 = vpop.f32.mrb[0].mxu0
    %v423 = vadd.f32 %v322, %v422
    %v424 = vpop.f32.mrb[0].mxu0
    %v425 = vpop.f32.mrb[0].mxu0
    %v426 = vadd.f32 %v322, %v425
    %v427 = vpop.f32.mrb[0].mxu0
    %428 = vmatprep.mubr.bf16.mxu0 0
    %429 = vmatmul.mubr.bf16.gmra.mrb[0].mxu0 %v299
    %v430 = vpop.f32.mrb[0].mxu0
    %v431 = vadd.f32 %v322, %v430
    %v432 = vpop.f32.mrb[0].mxu0
    %v433 = vpop.f32.mrb[0].mxu0
    %v434 = vadd.f32 %v322, %v433
    %v435 = vpop.f32.mrb[0].mxu0
    %436 = vdwg.mxu0
    %v437 = vmax.f32 %v407, 0.0
    %v438 = vmax.f32 %v410, 0.0
    %v439 = vmax.f32 %v415, 0.0
    %v440 = vmax.f32 %v418, 0.0
    %v441 = vmax.f32 %v423, 0.0
    %v442 = vmax.f32 %v426, 0.0
    %v443 = vmax.f32 %v431, 0.0
    %v444 = vmax.f32 %v434, 0.0
    %v445 = vpack.c.bf16 %v438, %v437
    %v446 = vpack.c.bf16 %v440, %v439
    %v447 = vpack.c.bf16 %v442, %v441
    %v448 = vpack.c.bf16 %v444, %v443
    %v449 = vld [vmem:[%s5] sm:$0xff]
    %v450 = vld [vmem:[%s5 + $0x8] sm:$0xff]
    %v451 = vld [vmem:[%s5 + $0x10] sm:$0xff]
    %v452 = vld [vmem:[%s5 + $0x18] sm:$0xff]
    %v453 = vld [vmem:[%s5 + $0x20] sm:$0xff]
    %v454 = vld [vmem:[%s5 + $0x28] sm:$0xff]
    %v455 = vld [vmem:[%s5 + $0x30] sm:$0xff]
    %v456 = vld [vmem:[%s5 + $0x38] sm:$0xff]
    %v457 = vld [vmem:[%s5 + $0x40] sm:$0xff]
    %v458 = vld [vmem:[%s5 + $0x48] sm:$0xff]
    %v459 = vld [vmem:[%s5 + $0x50] sm:$0xff]
    %v460 = vld [vmem:[%s5 + $0x58] sm:$0xff]
    %v461 = vld [vmem:[%s5 + $0x60] sm:$0xff]
    %v462 = vld [vmem:[%s5 + $0x68] sm:$0xff]
    %v463 = vld [vmem:[%s5 + $0x70] sm:$0xff]
    %v464 = vld [vmem:[%s5 + $0x78] sm:$0xff]
    %v465 = vld [vmem:[%s8] sm:$0x3]
    %v467 = vlaneseq
    %v468 = vshrl.u32 %v467, 7
    %v469 = vsub.s32 0, %v468
    %v470 = vrot.slane %v465, %v469
    %v471 = vlaneseq
    %v472 = vshrl.u32 %v471, 7
    %v473 = vsub.s32 1, %v472
    %v474 = vrot.slane %v465, %v473
    %v493 = vunpack.c.l.b16 %v449
    %v494 = vunpack.c.h.b16 %v449
    %v495 = vunpack.c.l.b16 %v450
    %v496 = vunpack.c.h.b16 %v450
    %v497 = vunpack.c.l.b16 %v451
    %v498 = vunpack.c.h.b16 %v451
    %v499 = vunpack.c.l.b16 %v452
    %v500 = vunpack.c.h.b16 %v452
    %v501 = vunpack.c.l.b16 %v453
    %v502 = vunpack.c.h.b16 %v453
    %v503 = vunpack.c.l.b16 %v454
    %v504 = vunpack.c.h.b16 %v454
    %v505 = vunpack.c.l.b16 %v455
    %v506 = vunpack.c.h.b16 %v455
    %v507 = vunpack.c.l.b16 %v456
    %v508 = vunpack.c.h.b16 %v456
    %v509 = vunpack.c.l.b16 %v457
    %v510 = vunpack.c.h.b16 %v457
    %v511 = vunpack.c.l.b16 %v458
    %v512 = vunpack.c.h.b16 %v458
    %v513 = vunpack.c.l.b16 %v459
    %v514 = vunpack.c.h.b16 %v459
    %v515 = vunpack.c.l.b16 %v460
    %v516 = vunpack.c.h.b16 %v460
    %v517 = vunpack.c.l.b16 %v461
    %v518 = vunpack.c.h.b16 %v461
    %v519 = vunpack.c.l.b16 %v462
    %v520 = vunpack.c.h.b16 %v462
    %v521 = vunpack.c.l.b16 %v463
    %v522 = vunpack.c.h.b16 %v463
    %v523 = vunpack.c.l.b16 %v464
    %v524 = vunpack.c.h.b16 %v464
    %v525 = vpack.c.b16 %v495, %v493
    %v526 = vpack.c.b16 %v496, %v494
    %v527 = vpack.c.b16 %v499, %v497
    %v528 = vpack.c.b16 %v500, %v498
    %v529 = vpack.c.b16 %v503, %v501
    %v530 = vpack.c.b16 %v504, %v502
    %v531 = vpack.c.b16 %v507, %v505
    %v532 = vpack.c.b16 %v508, %v506
    %v533 = vpack.c.b16 %v511, %v509
    %v534 = vpack.c.b16 %v512, %v510
    %v535 = vpack.c.b16 %v515, %v513
    %v536 = vpack.c.b16 %v516, %v514
    %v537 = vpack.c.b16 %v519, %v517
    %v538 = vpack.c.b16 %v520, %v518
    %v539 = vpack.c.b16 %v523, %v521
    %v540 = vpack.c.b16 %v524, %v522
    %557 = vmatprep.subr.bf16.mxu0 %v526
    %558 = vmatpush1.bf16.msra.mxu0 %v525
    %559 = vmatprep.subr.bf16.mxu0 %v528
    %560 = vmatpush1.bf16.msra.mxu0 %v527
    %561 = vmatprep.subr.bf16.mxu0 %v530
    %562 = vmatpush1.bf16.msra.mxu0 %v529
    %563 = vmatprep.subr.bf16.mxu0 %v532
    %564 = vmatpush1.bf16.msra.mxu0 %v531
    %565 = vmatprep.subr.bf16.mxu0 %v534
    %566 = vmatpush1.bf16.msra.mxu0 %v533
    %567 = vmatprep.subr.bf16.mxu0 %v536
    %568 = vmatpush1.bf16.msra.mxu0 %v535
    %569 = vmatprep.subr.bf16.mxu0 %v538
    %570 = vmatpush1.bf16.msra.mxu0 %v537
    %571 = vmatprep.subr.bf16.mxu0 %v540
    %572 = vmatpush1.bf16.msra.mxu0 %v539
    %573 = vmatprep.subr.bf16.mxu0 0
    %574 = vmatpush1.bf16.msra.mxu0 0
    %575 = vmatprep.subr.bf16.mxu0 0
    %576 = vmatpush1.bf16.msra.mxu0 0
    %577 = vmatprep.subr.bf16.mxu0 0
    %578 = vmatpush1.bf16.msra.mxu0 0
    %579 = vmatprep.subr.bf16.mxu0 0
    %580 = vmatpush1.bf16.msra.mxu0 0
    %581 = vmatprep.subr.bf16.mxu0 0
    %582 = vmatpush1.bf16.msra.mxu0 0
    %583 = vmatprep.subr.bf16.mxu0 0
    %584 = vmatpush1.bf16.msra.mxu0 0
    %585 = vmatprep.subr.bf16.mxu0 0
    %586 = vmatpush1.bf16.msra.mxu0 0
    %587 = vmatprep.subr.bf16.mxu0 0
    %588 = vmatpush1.bf16.msra.mxu0 0
    %589 = vmatprep.mubr.bf16.mxu0 0
    %590 = vmatmul.mubr.bf16.gmra.mrb[0].mxu0 %v445
    %v591 = vpop.f32.mrb[0].mxu0
    %v592 = vadd.f32 %v470, %v591
    %v593 = vpop.f32.mrb[0].mxu0
    %v594 = vadd.f32 %v474, %v593
    %v595 = vpop.f32.mrb[0].mxu0
    %v596 = vadd.f32 %v470, %v595
    %v597 = vpop.f32.mrb[0].mxu0
    %v598 = vadd.f32 %v474, %v597
    %599 = vmatprep.mubr.bf16.mxu0 0
    %600 = vmatmul.mubr.bf16.gmra.mrb[0].mxu0 %v446
    %v601 = vpop.f32.mrb[0].mxu0
    %v602 = vadd.f32 %v470, %v601
    %v603 = vpop.f32.mrb[0].mxu0
    %v604 = vadd.f32 %v474, %v603
    %v605 = vpop.f32.mrb[0].mxu0
    %v606 = vadd.f32 %v470, %v605
    %v607 = vpop.f32.mrb[0].mxu0
    %v608 = vadd.f32 %v474, %v607
    %609 = vmatprep.mubr.bf16.mxu0 0
    %610 = vmatmul.mubr.bf16.gmra.mrb[0].mxu0 %v447
    %v611 = vpop.f32.mrb[0].mxu0
    %v612 = vadd.f32 %v470, %v611
    %v613 = vpop.f32.mrb[0].mxu0
    %v614 = vadd.f32 %v474, %v613
    %v615 = vpop.f32.mrb[0].mxu0
    %v616 = vadd.f32 %v470, %v615
    %v617 = vpop.f32.mrb[0].mxu0
    %v618 = vadd.f32 %v474, %v617
    %619 = vmatprep.mubr.bf16.mxu0 0
    %620 = vmatmul.mubr.bf16.gmra.mrb[0].mxu0 %v448
    %v621 = vpop.f32.mrb[0].mxu0
    %v622 = vadd.f32 %v470, %v621
    %v623 = vpop.f32.mrb[0].mxu0
    %v624 = vadd.f32 %v474, %v623
    %v625 = vpop.f32.mrb[0].mxu0
    %v626 = vadd.f32 %v470, %v625
    %v627 = vpop.f32.mrb[0].mxu0
    %v628 = vadd.f32 %v474, %v627
    %629 = vdwg.mxu0
    %v630 = vld [vmem:[%s6] sm:$0xf]
    %v631 = vld [vmem:[%s6 + $0x4] sm:$0xf]
    %v632 = vld [vmem:[%s6 + $0x8] sm:$0xf]
    %v633 = vld [vmem:[%s6 + $0xc] sm:$0xf]
    %v634 = vld [vmem:[%s6 + $0x10] sm:$0xf]
    %v635 = vld [vmem:[%s6 + $0x14] sm:$0xf]
    %v636 = vld [vmem:[%s6 + $0x18] sm:$0xf]
    %v637 = vld [vmem:[%s6 + $0x1c] sm:$0xf]
    %v638 = vld [vmem:[%s6 + $0x20] sm:$0xf]
    %v639 = vld [vmem:[%s6 + $0x24] sm:$0xf]
    %v640 = vld [vmem:[%s6 + $0x28] sm:$0xf]
    %v641 = vld [vmem:[%s6 + $0x2c] sm:$0xf]
    %v642 = vld [vmem:[%s6 + $0x30] sm:$0xf]
    %v643 = vld [vmem:[%s6 + $0x34] sm:$0xf]
    %v644 = vld [vmem:[%s6 + $0x38] sm:$0xf]
    %v645 = vld [vmem:[%s6 + $0x3c] sm:$0xf]
    %v646 = vld [vmem:[%s9] sm:$0x1]
    %v648 = vlaneseq
    %v649 = vshrl.u32 %v648, 7
    %v650 = vsub.s32 0, %v649
    %v651 = vrot.slane %v646, %v650
    %v669 = vunpack.c.l.b16 %v630
    %v670 = vunpack.c.l.b16 %v631
    %v671 = vunpack.c.l.b16 %v632
    %v672 = vunpack.c.l.b16 %v633
    %v673 = vunpack.c.l.b16 %v634
    %v674 = vunpack.c.l.b16 %v635
    %v675 = vunpack.c.l.b16 %v636
    %v676 = vunpack.c.l.b16 %v637
    %v677 = vunpack.c.l.b16 %v638
    %v678 = vunpack.c.l.b16 %v639
    %v679 = vunpack.c.l.b16 %v640
    %v680 = vunpack.c.l.b16 %v641
    %v681 = vunpack.c.l.b16 %v642
    %v682 = vunpack.c.l.b16 %v643
    %v683 = vunpack.c.l.b16 %v644
    %v684 = vunpack.c.l.b16 %v645
    %v685 = vpack.c.b16 %v670, %v669
    %v686 = vpack.c.b16 %v672, %v671
    %v687 = vpack.c.b16 %v674, %v673
    %v688 = vpack.c.b16 %v676, %v675
    %v689 = vpack.c.b16 %v678, %v677
    %v690 = vpack.c.b16 %v680, %v679
    %v691 = vpack.c.b16 %v682, %v681
    %v692 = vpack.c.b16 %v684, %v683
    %701 = vmatprep.subr.bf16.mxu0 0
    %702 = vmatpush1.bf16.msra.mxu0 %v685
    %703 = vmatprep.subr.bf16.mxu0 0
    %704 = vmatpush1.bf16.msra.mxu0 %v686
    %705 = vmatprep.subr.bf16.mxu0 0
    %706 = vmatpush1.bf16.msra.mxu0 %v687
    %707 = vmatprep.subr.bf16.mxu0 0
    %708 = vmatpush1.bf16.msra.mxu0 %v688
    %709 = vmatprep.subr.bf16.mxu0 0
    %710 = vmatpush1.bf16.msra.mxu0 %v689
    %711 = vmatprep.subr.bf16.mxu0 0
    %712 = vmatpush1.bf16.msra.mxu0 %v690
    %713 = vmatprep.subr.bf16.mxu0 0
    %714 = vmatpush1.bf16.msra.mxu0 %v691
    %715 = vmatprep.subr.bf16.mxu0 0
    %716 = vmatpush1.bf16.msra.mxu0 %v692
    %717 = vmatprep.subr.bf16.mxu0 0
    %718 = vmatpush1.bf16.msra.mxu0 0
    %719 = vmatprep.subr.bf16.mxu0 0
    %720 = vmatpush1.bf16.msra.mxu0 0
    %721 = vmatprep.subr.bf16.mxu0 0
    %722 = vmatpush1.bf16.msra.mxu0 0
    %723 = vmatprep.subr.bf16.mxu0 0
    %724 = vmatpush1.bf16.msra.mxu0 0
    %725 = vmatprep.subr.bf16.mxu0 0
    %726 = vmatpush1.bf16.msra.mxu0 0
    %727 = vmatprep.subr.bf16.mxu0 0
    %728 = vmatpush1.bf16.msra.mxu0 0
    %729 = vmatprep.subr.bf16.mxu0 0
    %730 = vmatpush1.bf16.msra.mxu0 0
    %731 = vmatprep.subr.bf16.mxu0 0
    %732 = vmatpush1.bf16.msra.mxu0 0
    %733 = vmatprep.mubr.bf16.mxu0 0
    %734 = vmatmul.mubr.bf16.gmra.mrb[0].mxu0 %v445
    %v735 = vpop.f32.mrb[0].mxu0
    %v736 = vadd.f32 %v651, %v735
    %v737 = vpop.f32.mrb[0].mxu0
    %v738 = vpop.f32.mrb[0].mxu0
    %v739 = vadd.f32 %v651, %v738
    %v740 = vpop.f32.mrb[0].mxu0
    %741 = vmatprep.mubr.bf16.mxu0 0
    %742 = vmatmul.mubr.bf16.gmra.mrb[0].mxu0 %v446
    %v743 = vpop.f32.mrb[0].mxu0
    %v744 = vadd.f32 %v651, %v743
    %v745 = vpop.f32.mrb[0].mxu0
    %v746 = vpop.f32.mrb[0].mxu0
    %v747 = vadd.f32 %v651, %v746
    %v748 = vpop.f32.mrb[0].mxu0
    %749 = vmatprep.mubr.bf16.mxu0 0
    %750 = vmatmul.mubr.bf16.gmra.mrb[0].mxu0 %v447
    %v751 = vpop.f32.mrb[0].mxu0
    %v752 = vadd.f32 %v651, %v751
    %v753 = vpop.f32.mrb[0].mxu0
    %v754 = vpop.f32.mrb[0].mxu0
    %v755 = vadd.f32 %v651, %v754
    %v756 = vpop.f32.mrb[0].mxu0
    %757 = vmatprep.mubr.bf16.mxu0 0
    %758 = vmatmul.mubr.bf16.gmra.mrb[0].mxu0 %v448
    %v759 = vpop.f32.mrb[0].mxu0
    %v760 = vadd.f32 %v651, %v759
    %v761 = vpop.f32.mrb[0].mxu0
    %v762 = vpop.f32.mrb[0].mxu0
    %v763 = vadd.f32 %v651, %v762
    %v764 = vpop.f32.mrb[0].mxu0
    %765 = vdwg.mxu0
    %v766 = vsub.f32 %v83, %v592
    %v767 = vsub.f32 %v84, %v594
    %v768 = vsub.f32 %v85, %v596
    %v769 = vsub.f32 %v86, %v598
    %v770 = vsub.f32 %v87, %v602
    %v771 = vsub.f32 %v88, %v604
    %v772 = vsub.f32 %v89, %v606
    %v773 = vsub.f32 %v90, %v608
    %v774 = vsub.f32 %v91, %v612
    %v775 = vsub.f32 %v92, %v614
    %v776 = vsub.f32 %v93, %v616
    %v777 = vsub.f32 %v94, %v618
    %v778 = vsub.f32 %v95, %v622
    %v779 = vsub.f32 %v96, %v624
    %v780 = vsub.f32 %v97, %v626
    %v781 = vsub.f32 %v98, %v628
    %782 = vst [vmem:[#allocation2] sm:$0xff] %v766
    %783 = vst.msk [vmem:[#allocation2 + $0x8] sm:$0xff] %vm210, %v767
    %784 = vst [vmem:[#allocation2 + $0x10] sm:$0xff] %v768
    %785 = vst.msk [vmem:[#allocation2 + $0x18] sm:$0xff] %vm210, %v769
    %786 = vst [vmem:[#allocation2 + $0x20] sm:$0xff] %v770
    %787 = vst.msk [vmem:[#allocation2 + $0x28] sm:$0xff] %vm210, %v771
    %788 = vst [vmem:[#allocation2 + $0x30] sm:$0xff] %v772
    %789 = vst.msk [vmem:[#allocation2 + $0x38] sm:$0xff] %vm210, %v773
    %790 = vst [vmem:[#allocation2 + $0x40] sm:$0xff] %v774
    %791 = vst.msk [vmem:[#allocation2 + $0x48] sm:$0xff] %vm210, %v775
    %792 = vst [vmem:[#allocation2 + $0x50] sm:$0xff] %v776
    %793 = vst.msk [vmem:[#allocation2 + $0x58] sm:$0xff] %vm210, %v777
    %794 = vst [vmem:[#allocation2 + $0x60] sm:$0xff] %v778
    %795 = vst.msk [vmem:[#allocation2 + $0x68] sm:$0xff] %vm210, %v779
    %796 = vst [vmem:[#allocation2 + $0x70] sm:$0xff] %v780
    %797 = vst.msk [vmem:[#allocation2 + $0x78] sm:$0xff] %vm210, %v781
    %v798 = vld [vmem:[#allocation3] sm:$0xff]
    %v799 = vld [vmem:[#allocation3 + $0x8] sm:$0xff]
    %v800 = vld [vmem:[#allocation3 + $0x10] sm:$0xff]
    %v801 = vld [vmem:[#allocation3 + $0x18] sm:$0xff]
    %v802 = vld [vmem:[#allocation3 + $0x20] sm:$0xff]
    %v803 = vld [vmem:[#allocation3 + $0x28] sm:$0xff]
    %v804 = vld [vmem:[#allocation3 + $0x30] sm:$0xff]
    %v805 = vld [vmem:[#allocation3 + $0x38] sm:$0xff]
    %v806 = vadd.f32 %v798, %v736
    %v807 = vadd.f32 %v799, %v739
    %v808 = vadd.f32 %v800, %v744
    %v809 = vadd.f32 %v801, %v747
    %v810 = vadd.f32 %v802, %v752
    %v811 = vadd.f32 %v803, %v755
    %v812 = vadd.f32 %v804, %v760
    %v813 = vadd.f32 %v805, %v763
    %vm814 = vcmask 130048
    %815 = vst.msk [vmem:[#allocation3] sm:$0xff] %vm814, %v806
    %816 = vst.msk [vmem:[#allocation3 + $0x8] sm:$0xff] %vm814, %v807
    %817 = vst.msk [vmem:[#allocation3 + $0x10] sm:$0xff] %vm814, %v808
    %818 = vst.msk [vmem:[#allocation3 + $0x18] sm:$0xff] %vm814, %v809
    %819 = vst.msk [vmem:[#allocation3 + $0x20] sm:$0xff] %vm814, %v810
    %820 = vst.msk [vmem:[#allocation3 + $0x28] sm:$0xff] %vm814, %v811
    %821 = vst.msk [vmem:[#allocation3 + $0x30] sm:$0xff] %vm814, %v812
    %822 = vst.msk [vmem:[#allocation3 + $0x38] sm:$0xff] %vm814, %v813
    %v823 = vld [vmem:[#allocation2] sm:$0xff]
    %v824 = vld [vmem:[#allocation2 + $0x8] sm:$0xff]
    %v825 = vld [vmem:[#allocation2 + $0x10] sm:$0xff]
    %v826 = vld [vmem:[#allocation2 + $0x18] sm:$0xff]
    %v827 = vld [vmem:[#allocation2 + $0x20] sm:$0xff]
    %v828 = vld [vmem:[#allocation2 + $0x28] sm:$0xff]
    %v829 = vld [vmem:[#allocation2 + $0x30] sm:$0xff]
    %v830 = vld [vmem:[#allocation2 + $0x38] sm:$0xff]
    %v831 = vld [vmem:[#allocation2 + $0x40] sm:$0xff]
    %v832 = vld [vmem:[#allocation2 + $0x48] sm:$0xff]
    %v833 = vld [vmem:[#allocation2 + $0x50] sm:$0xff]
    %v834 = vld [vmem:[#allocation2 + $0x58] sm:$0xff]
    %v835 = vld [vmem:[#allocation2 + $0x60] sm:$0xff]
    %v836 = vld [vmem:[#allocation2 + $0x68] sm:$0xff]
    %v837 = vld [vmem:[#allocation2 + $0x70] sm:$0xff]
    %v838 = vld [vmem:[#allocation2 + $0x78] sm:$0xff]
    %v839 = vpack.c.bf16 %v825, %v823
    %v840 = vpack.c.bf16 %v826, %v824
    %v841 = vpack.c.bf16 %v829, %v827
    %v842 = vpack.c.bf16 %v830, %v828
    %v843 = vpack.c.bf16 %v833, %v831
    %v844 = vpack.c.bf16 %v834, %v832
    %v845 = vpack.c.bf16 %v837, %v835
    %v846 = vpack.c.bf16 %v838, %v836
    %s847 = scalar_lea.vmem %s3, 96
    %v848 = vld [vmem:[%s847] sm:$0xf]
    %v849 = vld [vmem:[%s847 + $0x4] sm:$0xf]
    %v850 = vld [vmem:[%s847 + $0x8] sm:$0xf]
    %v851 = vld [vmem:[%s847 + $0xc] sm:$0xf]
    %v852 = vld [vmem:[%s847 + $0x10] sm:$0xf]
    %v853 = vld [vmem:[%s847 + $0x14] sm:$0xf]
    %v854 = vld [vmem:[%s847 + $0x18] sm:$0xf]
    %v855 = vld [vmem:[%s847 + $0x1c] sm:$0xf]
    %v856 = vld [vmem:[%s847 + $0x20] sm:$0xf]
    %v857 = vld [vmem:[%s847 + $0x24] sm:$0xf]
    %v858 = vld [vmem:[%s847 + $0x28] sm:$0xf]
    %v859 = vld [vmem:[%s847 + $0x2c] sm:$0xf]
    %v860 = vld [vmem:[%s847 + $0x30] sm:$0xf]
    %v861 = vld [vmem:[%s847 + $0x34] sm:$0xf]
    %v862 = vld [vmem:[%s847 + $0x38] sm:$0xf]
    %v863 = vld [vmem:[%s847 + $0x3c] sm:$0xf]
    %v864 = vld [vmem:[%s847 + $0x40] sm:$0xf]
    %v865 = vld [vmem:[%s847 + $0x44] sm:$0xf]
    %v866 = vld [vmem:[%s847 + $0x48] sm:$0xf]
    %v867 = vld [vmem:[%s847 + $0x4c] sm:$0xf]
    %v868 = vld [vmem:[%s847 + $0x50] sm:$0xf]
    %v869 = vld [vmem:[%s847 + $0x54] sm:$0xf]
    %v870 = vld [vmem:[%s847 + $0x58] sm:$0xf]
    %v871 = vld [vmem:[%s847 + $0x5c] sm:$0xf]
    %s872 = scalar_lea.vmem %s7, 2
    %v873 = vld [vmem:[%s872] sm:$0x1]
    %v875 = vlaneseq
    %v876 = vshrl.u32 %v875, 7
    %v877 = vsub.s32 0, %v876
    %v878 = vrot.slane %v873, %v877
    %v904 = vunpack.c.l.b16 %v848
    %v905 = vunpack.c.l.b16 %v849
    %v906 = vunpack.c.l.b16 %v850
    %v907 = vunpack.c.l.b16 %v851
    %v908 = vunpack.c.l.b16 %v852
    %v909 = vunpack.c.l.b16 %v853
    %v910 = vunpack.c.l.b16 %v854
    %v911 = vunpack.c.l.b16 %v855
    %v912 = vunpack.c.l.b16 %v856
    %v913 = vunpack.c.l.b16 %v857
    %v914 = vunpack.c.l.b16 %v858
    %v915 = vunpack.c.l.b16 %v859
    %v916 = vunpack.c.l.b16 %v860
    %v917 = vunpack.c.l.b16 %v861
    %v918 = vunpack.c.l.b16 %v862
    %v919 = vunpack.c.l.b16 %v863
    %v920 = vunpack.c.l.b16 %v864
    %v921 = vunpack.c.l.b16 %v865
    %v922 = vunpack.c.l.b16 %v866
    %v923 = vunpack.c.l.b16 %v867
    %v924 = vunpack.c.l.b16 %v868
    %v925 = vunpack.c.l.b16 %v869
    %v926 = vunpack.c.l.b16 %v870
    %v927 = vunpack.c.l.b16 %v871
    %v928 = vpack.c.b16 %v905, %v904
    %v929 = vpack.c.b16 %v907, %v906
    %v930 = vpack.c.b16 %v909, %v908
    %v931 = vpack.c.b16 %v911, %v910
    %v932 = vpack.c.b16 %v913, %v912
    %v933 = vpack.c.b16 %v915, %v914
    %v934 = vpack.c.b16 %v917, %v916
    %v935 = vpack.c.b16 %v919, %v918
    %v936 = vpack.c.b16 %v921, %v920
    %v937 = vpack.c.b16 %v923, %v922
    %v938 = vpack.c.b16 %v925, %v924
    %v939 = vpack.c.b16 %v927, %v926
    %v953 = vsel %vm210, %v840, 0
    %v956 = vsel %vm210, %v842, 0
    %v959 = vsel %vm210, %v844, 0
    %v962 = vsel %vm210, %v846, 0
    %964 = vmatprep.subr.bf16.mxu0 0
    %965 = vmatpush1.bf16.msra.mxu0 %v928
    %966 = vmatprep.subr.bf16.mxu0 0
    %967 = vmatpush1.bf16.msra.mxu0 %v929
    %968 = vmatprep.subr.bf16.mxu0 0
    %969 = vmatpush1.bf16.msra.mxu0 %v930
    %970 = vmatprep.subr.bf16.mxu0 0
    %971 = vmatpush1.bf16.msra.mxu0 %v931
    %972 = vmatprep.subr.bf16.mxu0 0
    %973 = vmatpush1.bf16.msra.mxu0 %v932
    %974 = vmatprep.subr.bf16.mxu0 0
    %975 = vmatpush1.bf16.msra.mxu0 %v933
    %976 = vmatprep.subr.bf16.mxu0 0
    %977 = vmatpush1.bf16.msra.mxu0 %v934
    %978 = vmatprep.subr.bf16.mxu0 0
    %979 = vmatpush1.bf16.msra.mxu0 %v935
    %980 = vmatprep.subr.bf16.mxu0 0
    %981 = vmatpush1.bf16.msra.mxu0 %v936
    %982 = vmatprep.subr.bf16.mxu0 0
    %983 = vmatpush1.bf16.msra.mxu0 %v937
    %984 = vmatprep.subr.bf16.mxu0 0
    %985 = vmatpush1.bf16.msra.mxu0 %v938
    %986 = vmatprep.subr.bf16.mxu0 0
    %987 = vmatpush1.bf16.msra.mxu0 %v939
    %988 = vmatprep.subr.bf16.mxu0 0
    %989 = vmatpush1.bf16.msra.mxu0 0
    %990 = vmatprep.subr.bf16.mxu0 0
    %991 = vmatpush1.bf16.msra.mxu0 0
    %992 = vmatprep.subr.bf16.mxu0 0
    %993 = vmatpush1.bf16.msra.mxu0 0
    %994 = vmatprep.subr.bf16.mxu0 0
    %995 = vmatpush1.bf16.msra.mxu0 0
    %996 = vmatprep.mubr.bf16.mxu0 %v953
    %997 = vmatmul.mubr.bf16.gmra.mrb[0].mxu0 %v839
    %v998 = vpop.f32.mrb[0].mxu0
    %v999 = vadd.f32 %v878, %v998
    %v1000 = vpop.f32.mrb[0].mxu0
    %v1001 = vpop.f32.mrb[0].mxu0
    %v1002 = vadd.f32 %v878, %v1001
    %v1003 = vpop.f32.mrb[0].mxu0
    %1004 = vmatprep.mubr.bf16.mxu0 %v956
    %1005 = vmatmul.mubr.bf16.gmra.mrb[0].mxu0 %v841
    %v1006 = vpop.f32.mrb[0].mxu0
    %v1007 = vadd.f32 %v878, %v1006
    %v1008 = vpop.f32.mrb[0].mxu0
    %v1009 = vpop.f32.mrb[0].mxu0
    %v1010 = vadd.f32 %v878, %v1009
    %v1011 = vpop.f32.mrb[0].mxu0
    %1012 = vmatprep.mubr.bf16.mxu0 %v959
    %1013 = vmatmul.mubr.bf16.gmra.mrb[0].mxu0 %v843
    %v1014 = vpop.f32.mrb[0].mxu0
    %v1015 = vadd.f32 %v878, %v1014
    %v1016 = vpop.f32.mrb[0].mxu0
    %v1017 = vpop.f32.mrb[0].mxu0
    %v1018 = vadd.f32 %v878, %v1017
    %v1019 = vpop.f32.mrb[0].mxu0
    %1020 = vmatprep.mubr.bf16.mxu0 %v962
    %1021 = vmatmul.mubr.bf16.gmra.mrb[0].mxu0 %v845
    %v1022 = vpop.f32.mrb[0].mxu0
    %v1023 = vadd.f32 %v878, %v1022
    %v1024 = vpop.f32.mrb[0].mxu0
    %v1025 = vpop.f32.mrb[0].mxu0
    %v1026 = vadd.f32 %v878, %v1025
    %v1027 = vpop.f32.mrb[0].mxu0
    %1028 = vdwg.mxu0
    %v1029 = vmax.f32 %v999, 0.0
    %v1030 = vmax.f32 %v1002, 0.0
    %v1031 = vmax.f32 %v1007, 0.0
    %v1032 = vmax.f32 %v1010, 0.0
    %v1033 = vmax.f32 %v1015, 0.0
    %v1034 = vmax.f32 %v1018, 0.0
    %v1035 = vmax.f32 %v1023, 0.0
    %v1036 = vmax.f32 %v1026, 0.0
    %v1037 = vpack.c.bf16 %v1030, %v1029
    %v1038 = vpack.c.bf16 %v1032, %v1031
    %v1039 = vpack.c.bf16 %v1034, %v1033
    %v1040 = vpack.c.bf16 %v1036, %v1035
    %s1041 = scalar_lea.vmem %s4, 64
    %v1042 = vld [vmem:[%s1041] sm:$0xf]
    %v1043 = vld [vmem:[%s1041 + $0x4] sm:$0xf]
    %v1044 = vld [vmem:[%s1041 + $0x8] sm:$0xf]
    %v1045 = vld [vmem:[%s1041 + $0xc] sm:$0xf]
    %v1046 = vld [vmem:[%s1041 + $0x10] sm:$0xf]
    %v1047 = vld [vmem:[%s1041 + $0x14] sm:$0xf]
    %v1048 = vld [vmem:[%s1041 + $0x18] sm:$0xf]
    %v1049 = vld [vmem:[%s1041 + $0x1c] sm:$0xf]
    %v1050 = vld [vmem:[%s1041 + $0x20] sm:$0xf]
    %v1051 = vld [vmem:[%s1041 + $0x24] sm:$0xf]
    %v1052 = vld [vmem:[%s1041 + $0x28] sm:$0xf]
    %v1053 = vld [vmem:[%s1041 + $0x2c] sm:$0xf]
    %v1054 = vld [vmem:[%s1041 + $0x30] sm:$0xf]
    %v1055 = vld [vmem:[%s1041 + $0x34] sm:$0xf]
    %v1056 = vld [vmem:[%s1041 + $0x38] sm:$0xf]
    %v1057 = vld [vmem:[%s1041 + $0x3c] sm:$0xf]
    %s1058 = scalar_lea.vmem %s7, 3
    %v1059 = vld [vmem:[%s1058] sm:$0x1]
    %v1061 = vlaneseq
    %v1062 = vshrl.u32 %v1061, 7
    %v1063 = vsub.s32 0, %v1062
    %v1064 = vrot.slane %v1059, %v1063
    %v1082 = vunpack.c.l.b16 %v1042
    %v1083 = vunpack.c.l.b16 %v1043
    %v1084 = vunpack.c.l.b16 %v1044
    %v1085 = vunpack.c.l.b16 %v1045
    %v1086 = vunpack.c.l.b16 %v1046
    %v1087 = vunpack.c.l.b16 %v1047
    %v1088 = vunpack.c.l.b16 %v1048
    %v1089 = vunpack.c.l.b16 %v1049
    %v1090 = vunpack.c.l.b16 %v1050
    %v1091 = vunpack.c.l.b16 %v1051
    %v1092 = vunpack.c.l.b16 %v1052
    %v1093 = vunpack.c.l.b16 %v1053
    %v1094 = vunpack.c.l.b16 %v1054
    %v1095 = vunpack.c.l.b16 %v1055
    %v1096 = vunpack.c.l.b16 %v1056
    %v1097 = vunpack.c.l.b16 %v1057
    %v1098 = vpack.c.b16 %v1083, %v1082
    %v1099 = vpack.c.b16 %v1085, %v1084
    %v1100 = vpack.c.b16 %v1087, %v1086
    %v1101 = vpack.c.b16 %v1089, %v1088
    %v1102 = vpack.c.b16 %v1091, %v1090
    %v1103 = vpack.c.b16 %v1093, %v1092
    %v1104 = vpack.c.b16 %v1095, %v1094
    %v1105 = vpack.c.b16 %v1097, %v1096
    %1114 = vmatprep.subr.bf16.mxu0 0
    %1115 = vmatpush1.bf16.msra.mxu0 %v1098
    %1116 = vmatprep.subr.bf16.mxu0 0
    %1117 = vmatpush1.bf16.msra.mxu0 %v1099
    %1118 = vmatprep.subr.bf16.mxu0 0
    %1119 = vmatpush1.bf16.msra.mxu0 %v1100
    %1120 = vmatprep.subr.bf16.mxu0 0
    %1121 = vmatpush1.bf16.msra.mxu0 %v1101
    %1122 = vmatprep.subr.bf16.mxu0 0
    %1123 = vmatpush1.bf16.msra.mxu0 %v1102
    %1124 = vmatprep.subr.bf16.mxu0 0
    %1125 = vmatpush1.bf16.msra.mxu0 %v1103
    %1126 = vmatprep.subr.bf16.mxu0 0
    %1127 = vmatpush1.bf16.msra.mxu0 %v1104
    %1128 = vmatprep.subr.bf16.mxu0 0
    %1129 = vmatpush1.bf16.msra.mxu0 %v1105
    %1130 = vmatprep.subr.bf16.mxu0 0
    %1131 = vmatpush1.bf16.msra.mxu0 0
    %1132 = vmatprep.subr.bf16.mxu0 0
    %1133 = vmatpush1.bf16.msra.mxu0 0
    %1134 = vmatprep.subr.bf16.mxu0 0
    %1135 = vmatpush1.bf16.msra.mxu0 0
    %1136 = vmatprep.subr.bf16.mxu0 0
    %1137 = vmatpush1.bf16.msra.mxu0 0
    %1138 = vmatprep.subr.bf16.mxu0 0
    %1139 = vmatpush1.bf16.msra.mxu0 0
    %1140 = vmatprep.subr.bf16.mxu0 0
    %1141 = vmatpush1.bf16.msra.mxu0 0
    %1142 = vmatprep.subr.bf16.mxu0 0
    %1143 = vmatpush1.bf16.msra.mxu0 0
    %1144 = vmatprep.subr.bf16.mxu0 0
    %1145 = vmatpush1.bf16.msra.mxu0 0
    %1146 = vmatprep.mubr.bf16.mxu0 0
    %1147 = vmatmul.mubr.bf16.gmra.mrb[0].mxu0 %v1037
    %v1148 = vpop.f32.mrb[0].mxu0
    %v1149 = vadd.f32 %v1064, %v1148
    %v1150 = vpop.f32.mrb[0].mxu0
    %v1151 = vpop.f32.mrb[0].mxu0
    %v1152 = vadd.f32 %v1064, %v1151
    %v1153 = vpop.f32.mrb[0].mxu0
    %1154 = vmatprep.mubr.bf16.mxu0 0
    %1155 = vmatmul.mubr.bf16.gmra.mrb[0].mxu0 %v1038
    %v1156 = vpop.f32.mrb[0].mxu0
    %v1157 = vadd.f32 %v1064, %v1156
    %v1158 = vpop.f32.mrb[0].mxu0
    %v1159 = vpop.f32.mrb[0].mxu0
    %v1160 = vadd.f32 %v1064, %v1159
    %v1161 = vpop.f32.mrb[0].mxu0
    %1162 = vmatprep.mubr.bf16.mxu0 0
    %1163 = vmatmul.mubr.bf16.gmra.mrb[0].mxu0 %v1039
    %v1164 = vpop.f32.mrb[0].mxu0
    %v1165 = vadd.f32 %v1064, %v1164
    %v1166 = vpop.f32.mrb[0].mxu0
    %v1167 = vpop.f32.mrb[0].mxu0
    %v1168 = vadd.f32 %v1064, %v1167
    %v1169 = vpop.f32.mrb[0].mxu0
    %1170 = vmatprep.mubr.bf16.mxu0 0
    %1171 = vmatmul.mubr.bf16.gmra.mrb[0].mxu0 %v1040
    %v1172 = vpop.f32.mrb[0].mxu0
    %v1173 = vadd.f32 %v1064, %v1172
    %v1174 = vpop.f32.mrb[0].mxu0
    %v1175 = vpop.f32.mrb[0].mxu0
    %v1176 = vadd.f32 %v1064, %v1175
    %v1177 = vpop.f32.mrb[0].mxu0
    %1178 = vdwg.mxu0
    %v1179 = vmax.f32 %v1149, 0.0
    %v1180 = vmax.f32 %v1152, 0.0
    %v1181 = vmax.f32 %v1157, 0.0
    %v1182 = vmax.f32 %v1160, 0.0
    %v1183 = vmax.f32 %v1165, 0.0
    %v1184 = vmax.f32 %v1168, 0.0
    %v1185 = vmax.f32 %v1173, 0.0
    %v1186 = vmax.f32 %v1176, 0.0
    %v1187 = vpack.c.bf16 %v1180, %v1179
    %v1188 = vpack.c.bf16 %v1182, %v1181
    %v1189 = vpack.c.bf16 %v1184, %v1183
    %v1190 = vpack.c.bf16 %v1186, %v1185
    %s1191 = scalar_lea.vmem %s5, 128
    %v1192 = vld [vmem:[%s1191] sm:$0xff]
    %v1193 = vld [vmem:[%s1191 + $0x8] sm:$0xff]
    %v1194 = vld [vmem:[%s1191 + $0x10] sm:$0xff]
    %v1195 = vld [vmem:[%s1191 + $0x18] sm:$0xff]
    %v1196 = vld [vmem:[%s1191 + $0x20] sm:$0xff]
    %v1197 = vld [vmem:[%s1191 + $0x28] sm:$0xff]
    %v1198 = vld [vmem:[%s1191 + $0x30] sm:$0xff]
    %v1199 = vld [vmem:[%s1191 + $0x38] sm:$0xff]
    %v1200 = vld [vmem:[%s1191 + $0x40] sm:$0xff]
    %v1201 = vld [vmem:[%s1191 + $0x48] sm:$0xff]
    %v1202 = vld [vmem:[%s1191 + $0x50] sm:$0xff]
    %v1203 = vld [vmem:[%s1191 + $0x58] sm:$0xff]
    %v1204 = vld [vmem:[%s1191 + $0x60] sm:$0xff]
    %v1205 = vld [vmem:[%s1191 + $0x68] sm:$0xff]
    %v1206 = vld [vmem:[%s1191 + $0x70] sm:$0xff]
    %v1207 = vld [vmem:[%s1191 + $0x78] sm:$0xff]
    %s1208 = scalar_lea.vmem %s8, 2
    %v1209 = vld [vmem:[%s1208] sm:$0x3]
    %v1211 = vlaneseq
    %v1212 = vshrl.u32 %v1211, 7
    %v1213 = vsub.s32 0, %v1212
    %v1214 = vrot.slane %v1209, %v1213
    %v1215 = vlaneseq
    %v1216 = vshrl.u32 %v1215, 7
    %v1217 = vsub.s32 1, %v1216
    %v1218 = vrot.slane %v1209, %v1217
    %v1237 = vunpack.c.l.b16 %v1192
    %v1238 = vunpack.c.h.b16 %v1192
    %v1239 = vunpack.c.l.b16 %v1193
    %v1240 = vunpack.c.h.b16 %v1193
    %v1241 = vunpack.c.l.b16 %v1194
    %v1242 = vunpack.c.h.b16 %v1194
    %v1243 = vunpack.c.l.b16 %v1195
    %v1244 = vunpack.c.h.b16 %v1195
    %v1245 = vunpack.c.l.b16 %v1196
    %v1246 = vunpack.c.h.b16 %v1196
    %v1247 = vunpack.c.l.b16 %v1197
    %v1248 = vunpack.c.h.b16 %v1197
    %v1249 = vunpack.c.l.b16 %v1198
    %v1250 = vunpack.c.h.b16 %v1198
    %v1251 = vunpack.c.l.b16 %v1199
    %v1252 = vunpack.c.h.b16 %v1199
    %v1253 = vunpack.c.l.b16 %v1200
    %v1254 = vunpack.c.h.b16 %v1200
    %v1255 = vunpack.c.l.b16 %v1201
    %v1256 = vunpack.c.h.b16 %v1201
    %v1257 = vunpack.c.l.b16 %v1202
    %v1258 = vunpack.c.h.b16 %v1202
    %v1259 = vunpack.c.l.b16 %v1203
    %v1260 = vunpack.c.h.b16 %v1203
    %v1261 = vunpack.c.l.b16 %v1204
    %v1262 = vunpack.c.h.b16 %v1204
    %v1263 = vunpack.c.l.b16 %v1205
    %v1264 = vunpack.c.h.b16 %v1205
    %v1265 = vunpack.c.l.b16 %v1206
    %v1266 = vunpack.c.h.b16 %v1206
    %v1267 = vunpack.c.l.b16 %v1207
    %v1268 = vunpack.c.h.b16 %v1207
    %v1269 = vpack.c.b16 %v1239, %v1237
    %v1270 = vpack.c.b16 %v1240, %v1238
    %v1271 = vpack.c.b16 %v1243, %v1241
    %v1272 = vpack.c.b16 %v1244, %v1242
    %v1273 = vpack.c.b16 %v1247, %v1245
    %v1274 = vpack.c.b16 %v1248, %v1246
    %v1275 = vpack.c.b16 %v1251, %v1249
    %v1276 = vpack.c.b16 %v1252, %v1250
    %v1277 = vpack.c.b16 %v1255, %v1253
    %v1278 = vpack.c.b16 %v1256, %v1254
    %v1279 = vpack.c.b16 %v1259, %v1257
    %v1280 = vpack.c.b16 %v1260, %v1258
    %v1281 = vpack.c.b16 %v1263, %v1261
    %v1282 = vpack.c.b16 %v1264, %v1262
    %v1283 = vpack.c.b16 %v1267, %v1265
    %v1284 = vpack.c.b16 %v1268, %v1266
    %1301 = vmatprep.subr.bf16.mxu0 %v1270
    %1302 = vmatpush1.bf16.msra.mxu0 %v1269
    %1303 = vmatprep.subr.bf16.mxu0 %v1272
    %1304 = vmatpush1.bf16.msra.mxu0 %v1271
    %1305 = vmatprep.subr.bf16.mxu0 %v1274
    %1306 = vmatpush1.bf16.msra.mxu0 %v1273
    %1307 = vmatprep.subr.bf16.mxu0 %v1276
    %1308 = vmatpush1.bf16.msra.mxu0 %v1275
    %1309 = vmatprep.subr.bf16.mxu0 %v1278
    %1310 = vmatpush1.bf16.msra.mxu0 %v1277
    %1311 = vmatprep.subr.bf16.mxu0 %v1280
    %1312 = vmatpush1.bf16.msra.mxu0 %v1279
    %1313 = vmatprep.subr.bf16.mxu0 %v1282
    %1314 = vmatpush1.bf16.msra.mxu0 %v1281
    %1315 = vmatprep.subr.bf16.mxu0 %v1284
    %1316 = vmatpush1.bf16.msra.mxu0 %v1283
    %1317 = vmatprep.subr.bf16.mxu0 0
    %1318 = vmatpush1.bf16.msra.mxu0 0
    %1319 = vmatprep.subr.bf16.mxu0 0
    %1320 = vmatpush1.bf16.msra.mxu0 0
    %1321 = vmatprep.subr.bf16.mxu0 0
    %1322 = vmatpush1.bf16.msra.mxu0 0
    %1323 = vmatprep.subr.bf16.mxu0 0
    %1324 = vmatpush1.bf16.msra.mxu0 0
    %1325 = vmatprep.subr.bf16.mxu0 0
    %1326 = vmatpush1.bf16.msra.mxu0 0
    %1327 = vmatprep.subr.bf16.mxu0 0
    %1328 = vmatpush1.bf16.msra.mxu0 0
    %1329 = vmatprep.subr.bf16.mxu0 0
    %1330 = vmatpush1.bf16.msra.mxu0 0
    %1331 = vmatprep.subr.bf16.mxu0 0
    %1332 = vmatpush1.bf16.msra.mxu0 0
    %1333 = vmatprep.mubr.bf16.mxu0 0
    %1334 = vmatmul.mubr.bf16.gmra.mrb[0].mxu0 %v1187
    %v1335 = vpop.f32.mrb[0].mxu0
    %v1336 = vadd.f32 %v1214, %v1335
    %v1337 = vpop.f32.mrb[0].mxu0
    %v1338 = vadd.f32 %v1218, %v1337
    %v1339 = vpop.f32.mrb[0].mxu0
    %v1340 = vadd.f32 %v1214, %v1339
    %v1341 = vpop.f32.mrb[0].mxu0
    %v1342 = vadd.f32 %v1218, %v1341
    %1343 = vmatprep.mubr.bf16.mxu0 0
    %1344 = vmatmul.mubr.bf16.gmra.mrb[0].mxu0 %v1188
    %v1345 = vpop.f32.mrb[0].mxu0
    %v1346 = vadd.f32 %v1214, %v1345
    %v1347 = vpop.f32.mrb[0].mxu0
    %v1348 = vadd.f32 %v1218, %v1347
    %v1349 = vpop.f32.mrb[0].mxu0
    %v1350 = vadd.f32 %v1214, %v1349
    %v1351 = vpop.f32.mrb[0].mxu0
    %v1352 = vadd.f32 %v1218, %v1351
    %1353 = vmatprep.mubr.bf16.mxu0 0
    %1354 = vmatmul.mubr.bf16.gmra.mrb[0].mxu0 %v1189
    %v1355 = vpop.f32.mrb[0].mxu0
    %v1356 = vadd.f32 %v1214, %v1355
    %v1357 = vpop.f32.mrb[0].mxu0
    %v1358 = vadd.f32 %v1218, %v1357
    %v1359 = vpop.f32.mrb[0].mxu0
    %v1360 = vadd.f32 %v1214, %v1359
    %v1361 = vpop.f32.mrb[0].mxu0
    %v1362 = vadd.f32 %v1218, %v1361
    %1363 = vmatprep.mubr.bf16.mxu0 0
    %1364 = vmatmul.mubr.bf16.gmra.mrb[0].mxu0 %v1190
    %v1365 = vpop.f32.mrb[0].mxu0
    %v1366 = vadd.f32 %v1214, %v1365
    %v1367 = vpop.f32.mrb[0].mxu0
    %v1368 = vadd.f32 %v1218, %v1367
    %v1369 = vpop.f32.mrb[0].mxu0
    %v1370 = vadd.f32 %v1214, %v1369
    %v1371 = vpop.f32.mrb[0].mxu0
    %v1372 = vadd.f32 %v1218, %v1371
    %1373 = vdwg.mxu0
    %s1374 = scalar_lea.vmem %s6, 64
    %v1375 = vld [vmem:[%s1374] sm:$0xf]
    %v1376 = vld [vmem:[%s1374 + $0x4] sm:$0xf]
    %v1377 = vld [vmem:[%s1374 + $0x8] sm:$0xf]
    %v1378 = vld [vmem:[%s1374 + $0xc] sm:$0xf]
    %v1379 = vld [vmem:[%s1374 + $0x10] sm:$0xf]
    %v1380 = vld [vmem:[%s1374 + $0x14] sm:$0xf]
    %v1381 = vld [vmem:[%s1374 + $0x18] sm:$0xf]
    %v1382 = vld [vmem:[%s1374 + $0x1c] sm:$0xf]
    %v1383 = vld [vmem:[%s1374 + $0x20] sm:$0xf]
    %v1384 = vld [vmem:[%s1374 + $0x24] sm:$0xf]
    %v1385 = vld [vmem:[%s1374 + $0x28] sm:$0xf]
    %v1386 = vld [vmem:[%s1374 + $0x2c] sm:$0xf]
    %v1387 = vld [vmem:[%s1374 + $0x30] sm:$0xf]
    %v1388 = vld [vmem:[%s1374 + $0x34] sm:$0xf]
    %v1389 = vld [vmem:[%s1374 + $0x38] sm:$0xf]
    %v1390 = vld [vmem:[%s1374 + $0x3c] sm:$0xf]
    %s1391 = scalar_lea.vmem %s9, 1
    %v1392 = vld [vmem:[%s1391] sm:$0x1]
    %v1394 = vlaneseq
    %v1395 = vshrl.u32 %v1394, 7
    %v1396 = vsub.s32 0, %v1395
    %v1397 = vrot.slane %v1392, %v1396
    %v1415 = vunpack.c.l.b16 %v1375
    %v1416 = vunpack.c.l.b16 %v1376
    %v1417 = vunpack.c.l.b16 %v1377
    %v1418 = vunpack.c.l.b16 %v1378
    %v1419 = vunpack.c.l.b16 %v1379
    %v1420 = vunpack.c.l.b16 %v1380
    %v1421 = vunpack.c.l.b16 %v1381
    %v1422 = vunpack.c.l.b16 %v1382
    %v1423 = vunpack.c.l.b16 %v1383
    %v1424 = vunpack.c.l.b16 %v1384
    %v1425 = vunpack.c.l.b16 %v1385
    %v1426 = vunpack.c.l.b16 %v1386
    %v1427 = vunpack.c.l.b16 %v1387
    %v1428 = vunpack.c.l.b16 %v1388
    %v1429 = vunpack.c.l.b16 %v1389
    %v1430 = vunpack.c.l.b16 %v1390
    %v1431 = vpack.c.b16 %v1416, %v1415
    %v1432 = vpack.c.b16 %v1418, %v1417
    %v1433 = vpack.c.b16 %v1420, %v1419
    %v1434 = vpack.c.b16 %v1422, %v1421
    %v1435 = vpack.c.b16 %v1424, %v1423
    %v1436 = vpack.c.b16 %v1426, %v1425
    %v1437 = vpack.c.b16 %v1428, %v1427
    %v1438 = vpack.c.b16 %v1430, %v1429
    %1447 = vmatprep.subr.bf16.mxu0 0
    %1448 = vmatpush1.bf16.msra.mxu0 %v1431
    %1449 = vmatprep.subr.bf16.mxu0 0
    %1450 = vmatpush1.bf16.msra.mxu0 %v1432
    %1451 = vmatprep.subr.bf16.mxu0 0
    %1452 = vmatpush1.bf16.msra.mxu0 %v1433
    %1453 = vmatprep.subr.bf16.mxu0 0
    %1454 = vmatpush1.bf16.msra.mxu0 %v1434
    %1455 = vmatprep.subr.bf16.mxu0 0
    %1456 = vmatpush1.bf16.msra.mxu0 %v1435
    %1457 = vmatprep.subr.bf16.mxu0 0
    %1458 = vmatpush1.bf16.msra.mxu0 %v1436
    %1459 = vmatprep.subr.bf16.mxu0 0
    %1460 = vmatpush1.bf16.msra.mxu0 %v1437
    %1461 = vmatprep.subr.bf16.mxu0 0
    %1462 = vmatpush1.bf16.msra.mxu0 %v1438
    %1463 = vmatprep.subr.bf16.mxu0 0
    %1464 = vmatpush1.bf16.msra.mxu0 0
    %1465 = vmatprep.subr.bf16.mxu0 0
    %1466 = vmatpush1.bf16.msra.mxu0 0
    %1467 = vmatprep.subr.bf16.mxu0 0
    %1468 = vmatpush1.bf16.msra.mxu0 0
    %1469 = vmatprep.subr.bf16.mxu0 0
    %1470 = vmatpush1.bf16.msra.mxu0 0
    %1471 = vmatprep.subr.bf16.mxu0 0
    %1472 = vmatpush1.bf16.msra.mxu0 0
    %1473 = vmatprep.subr.bf16.mxu0 0
    %1474 = vmatpush1.bf16.msra.mxu0 0
    %1475 = vmatprep.subr.bf16.mxu0 0
    %1476 = vmatpush1.bf16.msra.mxu0 0
    %1477 = vmatprep.subr.bf16.mxu0 0
    %1478 = vmatpush1.bf16.msra.mxu0 0
    %1479 = vmatprep.mubr.bf16.mxu0 0
    %1480 = vmatmul.mubr.bf16.gmra.mrb[0].mxu0 %v1187
    %v1481 = vpop.f32.mrb[0].mxu0
    %v1482 = vadd.f32 %v1397, %v1481
    %v1483 = vpop.f32.mrb[0].mxu0
    %v1484 = vpop.f32.mrb[0].mxu0
    %v1485 = vadd.f32 %v1397, %v1484
    %v1486 = vpop.f32.mrb[0].mxu0
    %1487 = vmatprep.mubr.bf16.mxu0 0
    %1488 = vmatmul.mubr.bf16.gmra.mrb[0].mxu0 %v1188
    %v1489 = vpop.f32.mrb[0].mxu0
    %v1490 = vadd.f32 %v1397, %v1489
    %v1491 = vpop.f32.mrb[0].mxu0
    %v1492 = vpop.f32.mrb[0].mxu0
    %v1493 = vadd.f32 %v1397, %v1492
    %v1494 = vpop.f32.mrb[0].mxu0
    %1495 = vmatprep.mubr.bf16.mxu0 0
    %1496 = vmatmul.mubr.bf16.gmra.mrb[0].mxu0 %v1189
    %v1497 = vpop.f32.mrb[0].mxu0
    %v1498 = vadd.f32 %v1397, %v1497
    %v1499 = vpop.f32.mrb[0].mxu0
    %v1500 = vpop.f32.mrb[0].mxu0
    %v1501 = vadd.f32 %v1397, %v1500
    %v1502 = vpop.f32.mrb[0].mxu0
    %1503 = vmatprep.mubr.bf16.mxu0 0
    %1504 = vmatmul.mubr.bf16.gmra.mrb[0].mxu0 %v1190
    %v1505 = vpop.f32.mrb[0].mxu0
    %v1506 = vadd.f32 %v1397, %v1505
    %v1507 = vpop.f32.mrb[0].mxu0
    %v1508 = vpop.f32.mrb[0].mxu0
    %v1509 = vadd.f32 %v1397, %v1508
    %v1510 = vpop.f32.mrb[0].mxu0
    %1511 = vdwg.mxu0
    %v1512 = vsub.f32 %v823, %v1336
    %v1513 = vsub.f32 %v824, %v1338
    %v1514 = vsub.f32 %v825, %v1340
    %v1515 = vsub.f32 %v826, %v1342
    %v1516 = vsub.f32 %v827, %v1346
    %v1517 = vsub.f32 %v828, %v1348
    %v1518 = vsub.f32 %v829, %v1350
    %v1519 = vsub.f32 %v830, %v1352
    %v1520 = vsub.f32 %v831, %v1356
    %v1521 = vsub.f32 %v832, %v1358
    %v1522 = vsub.f32 %v833, %v1360
    %v1523 = vsub.f32 %v834, %v1362
    %v1524 = vsub.f32 %v835, %v1366
    %v1525 = vsub.f32 %v836, %v1368
    %v1526 = vsub.f32 %v837, %v1370
    %v1527 = vsub.f32 %v838, %v1372
    %1528 = vst [vmem:[#allocation2] sm:$0xff] %v1512
    %1529 = vst.msk [vmem:[#allocation2 + $0x8] sm:$0xff] %vm210, %v1513
    %1530 = vst [vmem:[#allocation2 + $0x10] sm:$0xff] %v1514
    %1531 = vst.msk [vmem:[#allocation2 + $0x18] sm:$0xff] %vm210, %v1515
    %1532 = vst [vmem:[#allocation2 + $0x20] sm:$0xff] %v1516
    %1533 = vst.msk [vmem:[#allocation2 + $0x28] sm:$0xff] %vm210, %v1517
    %1534 = vst [vmem:[#allocation2 + $0x30] sm:$0xff] %v1518
    %1535 = vst.msk [vmem:[#allocation2 + $0x38] sm:$0xff] %vm210, %v1519
    %1536 = vst [vmem:[#allocation2 + $0x40] sm:$0xff] %v1520
    %1537 = vst.msk [vmem:[#allocation2 + $0x48] sm:$0xff] %vm210, %v1521
    %1538 = vst [vmem:[#allocation2 + $0x50] sm:$0xff] %v1522
    %1539 = vst.msk [vmem:[#allocation2 + $0x58] sm:$0xff] %vm210, %v1523
    %1540 = vst [vmem:[#allocation2 + $0x60] sm:$0xff] %v1524
    %1541 = vst.msk [vmem:[#allocation2 + $0x68] sm:$0xff] %vm210, %v1525
    %1542 = vst [vmem:[#allocation2 + $0x70] sm:$0xff] %v1526
    %1543 = vst.msk [vmem:[#allocation2 + $0x78] sm:$0xff] %vm210, %v1527
    %v1544 = vld [vmem:[#allocation3] sm:$0xff]
    %v1545 = vld [vmem:[#allocation3 + $0x8] sm:$0xff]
    %v1546 = vld [vmem:[#allocation3 + $0x10] sm:$0xff]
    %v1547 = vld [vmem:[#allocation3 + $0x18] sm:$0xff]
    %v1548 = vld [vmem:[#allocation3 + $0x20] sm:$0xff]
    %v1549 = vld [vmem:[#allocation3 + $0x28] sm:$0xff]
    %v1550 = vld [vmem:[#allocation3 + $0x30] sm:$0xff]
    %v1551 = vld [vmem:[#allocation3 + $0x38] sm:$0xff]
    %v1552 = vadd.f32 %v1544, %v1482
    %v1553 = vadd.f32 %v1545, %v1485
    %v1554 = vadd.f32 %v1546, %v1490
    %v1555 = vadd.f32 %v1547, %v1493
    %v1556 = vadd.f32 %v1548, %v1498
    %v1557 = vadd.f32 %v1549, %v1501
    %v1558 = vadd.f32 %v1550, %v1506
    %v1559 = vadd.f32 %v1551, %v1509
    %1560 = vst.msk [vmem:[#allocation3] sm:$0xff] %vm814, %v1552
    %1561 = vst.msk [vmem:[#allocation3 + $0x8] sm:$0xff] %vm814, %v1553
    %1562 = vst.msk [vmem:[#allocation3 + $0x10] sm:$0xff] %vm814, %v1554
    %1563 = vst.msk [vmem:[#allocation3 + $0x18] sm:$0xff] %vm814, %v1555
    %1564 = vst.msk [vmem:[#allocation3 + $0x20] sm:$0xff] %vm814, %v1556
    %1565 = vst.msk [vmem:[#allocation3 + $0x28] sm:$0xff] %vm814, %v1557
    %1566 = vst.msk [vmem:[#allocation3 + $0x30] sm:$0xff] %vm814, %v1558
    %1567 = vst.msk [vmem:[#allocation3 + $0x38] sm:$0xff] %vm814, %v1559
    %v1568 = vld [vmem:[#allocation2] sm:$0xff]
    %v1569 = vld [vmem:[#allocation2 + $0x8] sm:$0xff]
    %v1570 = vld [vmem:[#allocation2 + $0x10] sm:$0xff]
    %v1571 = vld [vmem:[#allocation2 + $0x18] sm:$0xff]
    %v1572 = vld [vmem:[#allocation2 + $0x20] sm:$0xff]
    %v1573 = vld [vmem:[#allocation2 + $0x28] sm:$0xff]
    %v1574 = vld [vmem:[#allocation2 + $0x30] sm:$0xff]
    %v1575 = vld [vmem:[#allocation2 + $0x38] sm:$0xff]
    %v1576 = vld [vmem:[#allocation2 + $0x40] sm:$0xff]
    %v1577 = vld [vmem:[#allocation2 + $0x48] sm:$0xff]
    %v1578 = vld [vmem:[#allocation2 + $0x50] sm:$0xff]
    %v1579 = vld [vmem:[#allocation2 + $0x58] sm:$0xff]
    %v1580 = vld [vmem:[#allocation2 + $0x60] sm:$0xff]
    %v1581 = vld [vmem:[#allocation2 + $0x68] sm:$0xff]
    %v1582 = vld [vmem:[#allocation2 + $0x70] sm:$0xff]
    %v1583 = vld [vmem:[#allocation2 + $0x78] sm:$0xff]
    %v1584 = vpack.c.bf16 %v1570, %v1568
    %v1585 = vpack.c.bf16 %v1571, %v1569
    %v1586 = vpack.c.bf16 %v1574, %v1572
    %v1587 = vpack.c.bf16 %v1575, %v1573
    %v1588 = vpack.c.bf16 %v1578, %v1576
    %v1589 = vpack.c.bf16 %v1579, %v1577
    %v1590 = vpack.c.bf16 %v1582, %v1580
    %v1591 = vpack.c.bf16 %v1583, %v1581
    %s1592 = scalar_lea.vmem %s3, 192
    %v1593 = vld [vmem:[%s1592] sm:$0xf]
    %v1594 = vld [vmem:[%s1592 + $0x4] sm:$0xf]
    %v1595 = vld [vmem:[%s1592 + $0x8] sm:$0xf]
    %v1596 = vld [vmem:[%s1592 + $0xc] sm:$0xf]
    %v1597 = vld [vmem:[%s1592 + $0x10] sm:$0xf]
    %v1598 = vld [vmem:[%s1592 + $0x14] sm:$0xf]
    %v1599 = vld [vmem:[%s1592 + $0x18] sm:$0xf]
    %v1600 = vld [vmem:[%s1592 + $0x1c] sm:$0xf]
    %v1601 = vld [vmem:[%s1592 + $0x20] sm:$0xf]
    %v1602 = vld [vmem:[%s1592 + $0x24] sm:$0xf]
    %v1603 = vld [vmem:[%s1592 + $0x28] sm:$0xf]
    %v1604 = vld [vmem:[%s1592 + $0x2c] sm:$0xf]
    %v1605 = vld [vmem:[%s1592 + $0x30] sm:$0xf]
    %v1606 = vld [vmem:[%s1592 + $0x34] sm:$0xf]
    %v1607 = vld [vmem:[%s1592 + $0x38] sm:$0xf]
    %v1608 = vld [vmem:[%s1592 + $0x3c] sm:$0xf]
    %v1609 = vld [vmem:[%s1592 + $0x40] sm:$0xf]
    %v1610 = vld [vmem:[%s1592 + $0x44] sm:$0xf]
    %v1611 = vld [vmem:[%s1592 + $0x48] sm:$0xf]
    %v1612 = vld [vmem:[%s1592 + $0x4c] sm:$0xf]
    %v1613 = vld [vmem:[%s1592 + $0x50] sm:$0xf]
    %v1614 = vld [vmem:[%s1592 + $0x54] sm:$0xf]
    %v1615 = vld [vmem:[%s1592 + $0x58] sm:$0xf]
    %v1616 = vld [vmem:[%s1592 + $0x5c] sm:$0xf]
    %s1617 = scalar_lea.vmem %s7, 4
    %v1618 = vld [vmem:[%s1617] sm:$0x1]
    %v1620 = vlaneseq
    %v1621 = vshrl.u32 %v1620, 7
    %v1622 = vsub.s32 0, %v1621
    %v1623 = vrot.slane %v1618, %v1622
    %v1649 = vunpack.c.l.b16 %v1593
    %v1650 = vunpack.c.l.b16 %v1594
    %v1651 = vunpack.c.l.b16 %v1595
    %v1652 = vunpack.c.l.b16 %v1596
    %v1653 = vunpack.c.l.b16 %v1597
    %v1654 = vunpack.c.l.b16 %v1598
    %v1655 = vunpack.c.l.b16 %v1599
    %v1656 = vunpack.c.l.b16 %v1600
    %v1657 = vunpack.c.l.b16 %v1601
    %v1658 = vunpack.c.l.b16 %v1602
    %v1659 = vunpack.c.l.b16 %v1603
    %v1660 = vunpack.c.l.b16 %v1604
    %v1661 = vunpack.c.l.b16 %v1605
    %v1662 = vunpack.c.l.b16 %v1606
    %v1663 = vunpack.c.l.b16 %v1607
    %v1664 = vunpack.c.l.b16 %v1608
    %v1665 = vunpack.c.l.b16 %v1609
    %v1666 = vunpack.c.l.b16 %v1610
    %v1667 = vunpack.c.l.b16 %v1611
    %v1668 = vunpack.c.l.b16 %v1612
    %v1669 = vunpack.c.l.b16 %v1613
    %v1670 = vunpack.c.l.b16 %v1614
    %v1671 = vunpack.c.l.b16 %v1615
    %v1672 = vunpack.c.l.b16 %v1616
    %v1673 = vpack.c.b16 %v1650, %v1649
    %v1674 = vpack.c.b16 %v1652, %v1651
    %v1675 = vpack.c.b16 %v1654, %v1653
    %v1676 = vpack.c.b16 %v1656, %v1655
    %v1677 = vpack.c.b16 %v1658, %v1657
    %v1678 = vpack.c.b16 %v1660, %v1659
    %v1679 = vpack.c.b16 %v1662, %v1661
    %v1680 = vpack.c.b16 %v1664, %v1663
    %v1681 = vpack.c.b16 %v1666, %v1665
    %v1682 = vpack.c.b16 %v1668, %v1667
    %v1683 = vpack.c.b16 %v1670, %v1669
    %v1684 = vpack.c.b16 %v1672, %v1671
    %v1698 = vsel %vm210, %v1585, 0
    %v1701 = vsel %vm210, %v1587, 0
    %v1704 = vsel %vm210, %v1589, 0
    %v1707 = vsel %vm210, %v1591, 0
    %1709 = vmatprep.subr.bf16.mxu0 0
    %1710 = vmatpush1.bf16.msra.mxu0 %v1673
    %1711 = vmatprep.subr.bf16.mxu0 0
    %1712 = vmatpush1.bf16.msra.mxu0 %v1674
    %1713 = vmatprep.subr.bf16.mxu0 0
    %1714 = vmatpush1.bf16.msra.mxu0 %v1675
    %1715 = vmatprep.subr.bf16.mxu0 0
    %1716 = vmatpush1.bf16.msra.mxu0 %v1676
    %1717 = vmatprep.subr.bf16.mxu0 0
    %1718 = vmatpush1.bf16.msra.mxu0 %v1677
    %1719 = vmatprep.subr.bf16.mxu0 0
    %1720 = vmatpush1.bf16.msra.mxu0 %v1678
    %1721 = vmatprep.subr.bf16.mxu0 0
    %1722 = vmatpush1.bf16.msra.mxu0 %v1679
    %1723 = vmatprep.subr.bf16.mxu0 0
    %1724 = vmatpush1.bf16.msra.mxu0 %v1680
    %1725 = vmatprep.subr.bf16.mxu0 0
    %1726 = vmatpush1.bf16.msra.mxu0 %v1681
    %1727 = vmatprep.subr.bf16.mxu0 0
    %1728 = vmatpush1.bf16.msra.mxu0 %v1682
    %1729 = vmatprep.subr.bf16.mxu0 0
    %1730 = vmatpush1.bf16.msra.mxu0 %v1683
    %1731 = vmatprep.subr.bf16.mxu0 0
    %1732 = vmatpush1.bf16.msra.mxu0 %v1684
    %1733 = vmatprep.subr.bf16.mxu0 0
    %1734 = vmatpush1.bf16.msra.mxu0 0
    %1735 = vmatprep.subr.bf16.mxu0 0
    %1736 = vmatpush1.bf16.msra.mxu0 0
    %1737 = vmatprep.subr.bf16.mxu0 0
    %1738 = vmatpush1.bf16.msra.mxu0 0
    %1739 = vmatprep.subr.bf16.mxu0 0
    %1740 = vmatpush1.bf16.msra.mxu0 0
    %1741 = vmatprep.mubr.bf16.mxu0 %v1698
    %1742 = vmatmul.mubr.bf16.gmra.mrb[0].mxu0 %v1584
    %v1743 = vpop.f32.mrb[0].mxu0
    %v1744 = vadd.f32 %v1623, %v1743
    %v1745 = vpop.f32.mrb[0].mxu0
    %v1746 = vpop.f32.mrb[0].mxu0
    %v1747 = vadd.f32 %v1623, %v1746
    %v1748 = vpop.f32.mrb[0].mxu0
    %1749 = vmatprep.mubr.bf16.mxu0 %v1701
    %1750 = vmatmul.mubr.bf16.gmra.mrb[0].mxu0 %v1586
    %v1751 = vpop.f32.mrb[0].mxu0
    %v1752 = vadd.f32 %v1623, %v1751
    %v1753 = vpop.f32.mrb[0].mxu0
    %v1754 = vpop.f32.mrb[0].mxu0
    %v1755 = vadd.f32 %v1623, %v1754
    %v1756 = vpop.f32.mrb[0].mxu0
    %1757 = vmatprep.mubr.bf16.mxu0 %v1704
    %1758 = vmatmul.mubr.bf16.gmra.mrb[0].mxu0 %v1588
    %v1759 = vpop.f32.mrb[0].mxu0
    %v1760 = vadd.f32 %v1623, %v1759
    %v1761 = vpop.f32.mrb[0].mxu0
    %v1762 = vpop.f32.mrb[0].mxu0
    %v1763 = vadd.f32 %v1623, %v1762
    %v1764 = vpop.f32.mrb[0].mxu0
    %1765 = vmatprep.mubr.bf16.mxu0 %v1707
    %1766 = vmatmul.mubr.bf16.gmra.mrb[0].mxu0 %v1590
    %v1767 = vpop.f32.mrb[0].mxu0
    %v1768 = vadd.f32 %v1623, %v1767
    %v1769 = vpop.f32.mrb[0].mxu0
    %v1770 = vpop.f32.mrb[0].mxu0
    %v1771 = vadd.f32 %v1623, %v1770
    %v1772 = vpop.f32.mrb[0].mxu0
    %1773 = vdwg.mxu0
    %v1774 = vmax.f32 %v1744, 0.0
    %v1775 = vmax.f32 %v1747, 0.0
    %v1776 = vmax.f32 %v1752, 0.0
    %v1777 = vmax.f32 %v1755, 0.0
    %v1778 = vmax.f32 %v1760, 0.0
    %v1779 = vmax.f32 %v1763, 0.0
    %v1780 = vmax.f32 %v1768, 0.0
    %v1781 = vmax.f32 %v1771, 0.0
    %v1782 = vpack.c.bf16 %v1775, %v1774
    %v1783 = vpack.c.bf16 %v1777, %v1776
    %v1784 = vpack.c.bf16 %v1779, %v1778
    %v1785 = vpack.c.bf16 %v1781, %v1780
    %s1786 = scalar_lea.vmem %s4, 128
    %v1787 = vld [vmem:[%s1786] sm:$0xf]
    %v1788 = vld [vmem:[%s1786 + $0x4] sm:$0xf]
    %v1789 = vld [vmem:[%s1786 + $0x8] sm:$0xf]
    %v1790 = vld [vmem:[%s1786 + $0xc] sm:$0xf]
    %v1791 = vld [vmem:[%s1786 + $0x10] sm:$0xf]
    %v1792 = vld [vmem:[%s1786 + $0x14] sm:$0xf]
    %v1793 = vld [vmem:[%s1786 + $0x18] sm:$0xf]
    %v1794 = vld [vmem:[%s1786 + $0x1c] sm:$0xf]
    %v1795 = vld [vmem:[%s1786 + $0x20] sm:$0xf]
    %v1796 = vld [vmem:[%s1786 + $0x24] sm:$0xf]
    %v1797 = vld [vmem:[%s1786 + $0x28] sm:$0xf]
    %v1798 = vld [vmem:[%s1786 + $0x2c] sm:$0xf]
    %v1799 = vld [vmem:[%s1786 + $0x30] sm:$0xf]
    %v1800 = vld [vmem:[%s1786 + $0x34] sm:$0xf]
    %v1801 = vld [vmem:[%s1786 + $0x38] sm:$0xf]
    %v1802 = vld [vmem:[%s1786 + $0x3c] sm:$0xf]
    %s1803 = scalar_lea.vmem %s7, 5
    %v1804 = vld [vmem:[%s1803] sm:$0x1]
    %v1806 = vlaneseq
    %v1807 = vshrl.u32 %v1806, 7
    %v1808 = vsub.s32 0, %v1807
    %v1809 = vrot.slane %v1804, %v1808
    %v1827 = vunpack.c.l.b16 %v1787
    %v1828 = vunpack.c.l.b16 %v1788
    %v1829 = vunpack.c.l.b16 %v1789
    %v1830 = vunpack.c.l.b16 %v1790
    %v1831 = vunpack.c.l.b16 %v1791
    %v1832 = vunpack.c.l.b16 %v1792
    %v1833 = vunpack.c.l.b16 %v1793
    %v1834 = vunpack.c.l.b16 %v1794
    %v1835 = vunpack.c.l.b16 %v1795
    %v1836 = vunpack.c.l.b16 %v1796
    %v1837 = vunpack.c.l.b16 %v1797
    %v1838 = vunpack.c.l.b16 %v1798
    %v1839 = vunpack.c.l.b16 %v1799
    %v1840 = vunpack.c.l.b16 %v1800
    %v1841 = vunpack.c.l.b16 %v1801
    %v1842 = vunpack.c.l.b16 %v1802
    %v1843 = vpack.c.b16 %v1828, %v1827
    %v1844 = vpack.c.b16 %v1830, %v1829
    %v1845 = vpack.c.b16 %v1832, %v1831
    %v1846 = vpack.c.b16 %v1834, %v1833
    %v1847 = vpack.c.b16 %v1836, %v1835
    %v1848 = vpack.c.b16 %v1838, %v1837
    %v1849 = vpack.c.b16 %v1840, %v1839
    %v1850 = vpack.c.b16 %v1842, %v1841
    %1859 = vmatprep.subr.bf16.mxu0 0
    %1860 = vmatpush1.bf16.msra.mxu0 %v1843
    %1861 = vmatprep.subr.bf16.mxu0 0
    %1862 = vmatpush1.bf16.msra.mxu0 %v1844
    %1863 = vmatprep.subr.bf16.mxu0 0
    %1864 = vmatpush1.bf16.msra.mxu0 %v1845
    %1865 = vmatprep.subr.bf16.mxu0 0
    %1866 = vmatpush1.bf16.msra.mxu0 %v1846
    %1867 = vmatprep.subr.bf16.mxu0 0
    %1868 = vmatpush1.bf16.msra.mxu0 %v1847
    %1869 = vmatprep.subr.bf16.mxu0 0
    %1870 = vmatpush1.bf16.msra.mxu0 %v1848
    %1871 = vmatprep.subr.bf16.mxu0 0
    %1872 = vmatpush1.bf16.msra.mxu0 %v1849
    %1873 = vmatprep.subr.bf16.mxu0 0
    %1874 = vmatpush1.bf16.msra.mxu0 %v1850
    %1875 = vmatprep.subr.bf16.mxu0 0
    %1876 = vmatpush1.bf16.msra.mxu0 0
    %1877 = vmatprep.subr.bf16.mxu0 0
    %1878 = vmatpush1.bf16.msra.mxu0 0
    %1879 = vmatprep.subr.bf16.mxu0 0
    %1880 = vmatpush1.bf16.msra.mxu0 0
    %1881 = vmatprep.subr.bf16.mxu0 0
    %1882 = vmatpush1.bf16.msra.mxu0 0
    %1883 = vmatprep.subr.bf16.mxu0 0
    %1884 = vmatpush1.bf16.msra.mxu0 0
    %1885 = vmatprep.subr.bf16.mxu0 0
    %1886 = vmatpush1.bf16.msra.mxu0 0
    %1887 = vmatprep.subr.bf16.mxu0 0
    %1888 = vmatpush1.bf16.msra.mxu0 0
    %1889 = vmatprep.subr.bf16.mxu0 0
    %1890 = vmatpush1.bf16.msra.mxu0 0
    %1891 = vmatprep.mubr.bf16.mxu0 0
    %1892 = vmatmul.mubr.bf16.gmra.mrb[0].mxu0 %v1782
    %v1893 = vpop.f32.mrb[0].mxu0
    %v1894 = vadd.f32 %v1809, %v1893
    %v1895 = vpop.f32.mrb[0].mxu0
    %v1896 = vpop.f32.mrb[0].mxu0
    %v1897 = vadd.f32 %v1809, %v1896
    %v1898 = vpop.f32.mrb[0].mxu0
    %1899 = vmatprep.mubr.bf16.mxu0 0
    %1900 = vmatmul.mubr.bf16.gmra.mrb[0].mxu0 %v1783
    %v1901 = vpop.f32.mrb[0].mxu0
    %v1902 = vadd.f32 %v1809, %v1901
    %v1903 = vpop.f32.mrb[0].mxu0
    %v1904 = vpop.f32.mrb[0].mxu0
    %v1905 = vadd.f32 %v1809, %v1904
    %v1906 = vpop.f32.mrb[0].mxu0
    %1907 = vmatprep.mubr.bf16.mxu0 0
    %1908 = vmatmul.mubr.bf16.gmra.mrb[0].mxu0 %v1784
    %v1909 = vpop.f32.mrb[0].mxu0
    %v1910 = vadd.f32 %v1809, %v1909
    %v1911 = vpop.f32.mrb[0].mxu0
    %v1912 = vpop.f32.mrb[0].mxu0
    %v1913 = vadd.f32 %v1809, %v1912
    %v1914 = vpop.f32.mrb[0].mxu0
    %1915 = vmatprep.mubr.bf16.mxu0 0
    %1916 = vmatmul.mubr.bf16.gmra.mrb[0].mxu0 %v1785
    %v1917 = vpop.f32.mrb[0].mxu0
    %v1918 = vadd.f32 %v1809, %v1917
    %v1919 = vpop.f32.mrb[0].mxu0
    %v1920 = vpop.f32.mrb[0].mxu0
    %v1921 = vadd.f32 %v1809, %v1920
    %v1922 = vpop.f32.mrb[0].mxu0
    %1923 = vdwg.mxu0
    %v1924 = vmax.f32 %v1894, 0.0
    %v1925 = vmax.f32 %v1897, 0.0
    %v1926 = vmax.f32 %v1902, 0.0
    %v1927 = vmax.f32 %v1905, 0.0
    %v1928 = vmax.f32 %v1910, 0.0
    %v1929 = vmax.f32 %v1913, 0.0
    %v1930 = vmax.f32 %v1918, 0.0
    %v1931 = vmax.f32 %v1921, 0.0
    %v1932 = vpack.c.bf16 %v1925, %v1924
    %v1933 = vpack.c.bf16 %v1927, %v1926
    %v1934 = vpack.c.bf16 %v1929, %v1928
    %v1935 = vpack.c.bf16 %v1931, %v1930
    %s1936 = scalar_lea.vmem %s5, 256
    %v1937 = vld [vmem:[%s1936] sm:$0xff]
    %v1938 = vld [vmem:[%s1936 + $0x8] sm:$0xff]
    %v1939 = vld [vmem:[%s1936 + $0x10] sm:$0xff]
    %v1940 = vld [vmem:[%s1936 + $0x18] sm:$0xff]
    %v1941 = vld [vmem:[%s1936 + $0x20] sm:$0xff]
    %v1942 = vld [vmem:[%s1936 + $0x28] sm:$0xff]
    %v1943 = vld [vmem:[%s1936 + $0x30] sm:$0xff]
    %v1944 = vld [vmem:[%s1936 + $0x38] sm:$0xff]
    %v1945 = vld [vmem:[%s1936 + $0x40] sm:$0xff]
    %v1946 = vld [vmem:[%s1936 + $0x48] sm:$0xff]
    %v1947 = vld [vmem:[%s1936 + $0x50] sm:$0xff]
    %v1948 = vld [vmem:[%s1936 + $0x58] sm:$0xff]
    %v1949 = vld [vmem:[%s1936 + $0x60] sm:$0xff]
    %v1950 = vld [vmem:[%s1936 + $0x68] sm:$0xff]
    %v1951 = vld [vmem:[%s1936 + $0x70] sm:$0xff]
    %v1952 = vld [vmem:[%s1936 + $0x78] sm:$0xff]
    %s1953 = scalar_lea.vmem %s8, 4
    %v1954 = vld [vmem:[%s1953] sm:$0x3]
    %v1956 = vlaneseq
    %v1957 = vshrl.u32 %v1956, 7
    %v1958 = vsub.s32 0, %v1957
    %v1959 = vrot.slane %v1954, %v1958
    %v1960 = vlaneseq
    %v1961 = vshrl.u32 %v1960, 7
    %v1962 = vsub.s32 1, %v1961
    %v1963 = vrot.slane %v1954, %v1962
    %v1982 = vunpack.c.l.b16 %v1937
    %v1983 = vunpack.c.h.b16 %v1937
    %v1984 = vunpack.c.l.b16 %v1938
    %v1985 = vunpack.c.h.b16 %v1938
    %v1986 = vunpack.c.l.b16 %v1939
    %v1987 = vunpack.c.h.b16 %v1939
    %v1988 = vunpack.c.l.b16 %v1940
    %v1989 = vunpack.c.h.b16 %v1940
    %v1990 = vunpack.c.l.b16 %v1941
    %v1991 = vunpack.c.h.b16 %v1941
    %v1992 = vunpack.c.l.b16 %v1942
    %v1993 = vunpack.c.h.b16 %v1942
    %v1994 = vunpack.c.l.b16 %v1943
    %v1995 = vunpack.c.h.b16 %v1943
    %v1996 = vunpack.c.l.b16 %v1944
    %v1997 = vunpack.c.h.b16 %v1944
    %v1998 = vunpack.c.l.b16 %v1945
    %v1999 = vunpack.c.h.b16 %v1945
    %v2000 = vunpack.c.l.b16 %v1946
    %v2001 = vunpack.c.h.b16 %v1946
    %v2002 = vunpack.c.l.b16 %v1947
    %v2003 = vunpack.c.h.b16 %v1947
    %v2004 = vunpack.c.l.b16 %v1948
    %v2005 = vunpack.c.h.b16 %v1948
    %v2006 = vunpack.c.l.b16 %v1949
    %v2007 = vunpack.c.h.b16 %v1949
    %v2008 = vunpack.c.l.b16 %v1950
    %v2009 = vunpack.c.h.b16 %v1950
    %v2010 = vunpack.c.l.b16 %v1951
    %v2011 = vunpack.c.h.b16 %v1951
    %v2012 = vunpack.c.l.b16 %v1952
    %v2013 = vunpack.c.h.b16 %v1952
    %v2014 = vpack.c.b16 %v1984, %v1982
    %v2015 = vpack.c.b16 %v1985, %v1983
    %v2016 = vpack.c.b16 %v1988, %v1986
    %v2017 = vpack.c.b16 %v1989, %v1987
    %v2018 = vpack.c.b16 %v1992, %v1990
    %v2019 = vpack.c.b16 %v1993, %v1991
    %v2020 = vpack.c.b16 %v1996, %v1994
    %v2021 = vpack.c.b16 %v1997, %v1995
    %v2022 = vpack.c.b16 %v2000, %v1998
    %v2023 = vpack.c.b16 %v2001, %v1999
    %v2024 = vpack.c.b16 %v2004, %v2002
    %v2025 = vpack.c.b16 %v2005, %v2003
    %v2026 = vpack.c.b16 %v2008, %v2006
    %v2027 = vpack.c.b16 %v2009, %v2007
    %v2028 = vpack.c.b16 %v2012, %v2010
    %v2029 = vpack.c.b16 %v2013, %v2011
    %2046 = vmatprep.subr.bf16.mxu0 %v2015
    %2047 = vmatpush1.bf16.msra.mxu0 %v2014
    %2048 = vmatprep.subr.bf16.mxu0 %v2017
    %2049 = vmatpush1.bf16.msra.mxu0 %v2016
    %2050 = vmatprep.subr.bf16.mxu0 %v2019
    %2051 = vmatpush1.bf16.msra.mxu0 %v2018
    %2052 = vmatprep.subr.bf16.mxu0 %v2021
    %2053 = vmatpush1.bf16.msra.mxu0 %v2020
    %2054 = vmatprep.subr.bf16.mxu0 %v2023
    %2055 = vmatpush1.bf16.msra.mxu0 %v2022
    %2056 = vmatprep.subr.bf16.mxu0 %v2025
    %2057 = vmatpush1.bf16.msra.mxu0 %v2024
    %2058 = vmatprep.subr.bf16.mxu0 %v2027
    %2059 = vmatpush1.bf16.msra.mxu0 %v2026
    %2060 = vmatprep.subr.bf16.mxu0 %v2029
    %2061 = vmatpush1.bf16.msra.mxu0 %v2028
    %2062 = vmatprep.subr.bf16.mxu0 0
    %2063 = vmatpush1.bf16.msra.mxu0 0
    %2064 = vmatprep.subr.bf16.mxu0 0
    %2065 = vmatpush1.bf16.msra.mxu0 0
    %2066 = vmatprep.subr.bf16.mxu0 0
    %2067 = vmatpush1.bf16.msra.mxu0 0
    %2068 = vmatprep.subr.bf16.mxu0 0
    %2069 = vmatpush1.bf16.msra.mxu0 0
    %2070 = vmatprep.subr.bf16.mxu0 0
    %2071 = vmatpush1.bf16.msra.mxu0 0
    %2072 = vmatprep.subr.bf16.mxu0 0
    %2073 = vmatpush1.bf16.msra.mxu0 0
    %2074 = vmatprep.subr.bf16.mxu0 0
    %2075 = vmatpush1.bf16.msra.mxu0 0
    %2076 = vmatprep.subr.bf16.mxu0 0
    %2077 = vmatpush1.bf16.msra.mxu0 0
    %2078 = vmatprep.mubr.bf16.mxu0 0
    %2079 = vmatmul.mubr.bf16.gmra.mrb[0].mxu0 %v1932
    %v2080 = vpop.f32.mrb[0].mxu0
    %v2081 = vadd.f32 %v1959, %v2080
    %v2082 = vpop.f32.mrb[0].mxu0
    %v2083 = vadd.f32 %v1963, %v2082
    %v2084 = vpop.f32.mrb[0].mxu0
    %v2085 = vadd.f32 %v1959, %v2084
    %v2086 = vpop.f32.mrb[0].mxu0
    %v2087 = vadd.f32 %v1963, %v2086
    %2088 = vmatprep.mubr.bf16.mxu0 0
    %2089 = vmatmul.mubr.bf16.gmra.mrb[0].mxu0 %v1933
    %v2090 = vpop.f32.mrb[0].mxu0
    %v2091 = vadd.f32 %v1959, %v2090
    %v2092 = vpop.f32.mrb[0].mxu0
    %v2093 = vadd.f32 %v1963, %v2092
    %v2094 = vpop.f32.mrb[0].mxu0
    %v2095 = vadd.f32 %v1959, %v2094
    %v2096 = vpop.f32.mrb[0].mxu0
    %v2097 = vadd.f32 %v1963, %v2096
    %2098 = vmatprep.mubr.bf16.mxu0 0
    %2099 = vmatmul.mubr.bf16.gmra.mrb[0].mxu0 %v1934
    %v2100 = vpop.f32.mrb[0].mxu0
    %v2101 = vadd.f32 %v1959, %v2100
    %v2102 = vpop.f32.mrb[0].mxu0
    %v2103 = vadd.f32 %v1963, %v2102
    %v2104 = vpop.f32.mrb[0].mxu0
    %v2105 = vadd.f32 %v1959, %v2104
    %v2106 = vpop.f32.mrb[0].mxu0
    %v2107 = vadd.f32 %v1963, %v2106
    %2108 = vmatprep.mubr.bf16.mxu0 0
    %2109 = vmatmul.mubr.bf16.gmra.mrb[0].mxu0 %v1935
    %v2110 = vpop.f32.mrb[0].mxu0
    %v2111 = vadd.f32 %v1959, %v2110
    %v2112 = vpop.f32.mrb[0].mxu0
    %v2113 = vadd.f32 %v1963, %v2112
    %v2114 = vpop.f32.mrb[0].mxu0
    %v2115 = vadd.f32 %v1959, %v2114
    %v2116 = vpop.f32.mrb[0].mxu0
    %v2117 = vadd.f32 %v1963, %v2116
    %2118 = vdwg.mxu0
    %s2119 = scalar_lea.vmem %s6, 128
    %v2120 = vld [vmem:[%s2119] sm:$0xf]
    %v2121 = vld [vmem:[%s2119 + $0x4] sm:$0xf]
    %v2122 = vld [vmem:[%s2119 + $0x8] sm:$0xf]
    %v2123 = vld [vmem:[%s2119 + $0xc] sm:$0xf]
    %v2124 = vld [vmem:[%s2119 + $0x10] sm:$0xf]
    %v2125 = vld [vmem:[%s2119 + $0x14] sm:$0xf]
    %v2126 = vld [vmem:[%s2119 + $0x18] sm:$0xf]
    %v2127 = vld [vmem:[%s2119 + $0x1c] sm:$0xf]
    %v2128 = vld [vmem:[%s2119 + $0x20] sm:$0xf]
    %v2129 = vld [vmem:[%s2119 + $0x24] sm:$0xf]
    %v2130 = vld [vmem:[%s2119 + $0x28] sm:$0xf]
    %v2131 = vld [vmem:[%s2119 + $0x2c] sm:$0xf]
    %v2132 = vld [vmem:[%s2119 + $0x30] sm:$0xf]
    %v2133 = vld [vmem:[%s2119 + $0x34] sm:$0xf]
    %v2134 = vld [vmem:[%s2119 + $0x38] sm:$0xf]
    %v2135 = vld [vmem:[%s2119 + $0x3c] sm:$0xf]
    %s2136 = scalar_lea.vmem %s9, 2
    %v2137 = vld [vmem:[%s2136] sm:$0x1]
    %v2139 = vlaneseq
    %v2140 = vshrl.u32 %v2139, 7
    %v2141 = vsub.s32 0, %v2140
    %v2142 = vrot.slane %v2137, %v2141
    %v2160 = vunpack.c.l.b16 %v2120
    %v2161 = vunpack.c.l.b16 %v2121
    %v2162 = vunpack.c.l.b16 %v2122
    %v2163 = vunpack.c.l.b16 %v2123
    %v2164 = vunpack.c.l.b16 %v2124
    %v2165 = vunpack.c.l.b16 %v2125
    %v2166 = vunpack.c.l.b16 %v2126
    %v2167 = vunpack.c.l.b16 %v2127
    %v2168 = vunpack.c.l.b16 %v2128
    %v2169 = vunpack.c.l.b16 %v2129
    %v2170 = vunpack.c.l.b16 %v2130
    %v2171 = vunpack.c.l.b16 %v2131
    %v2172 = vunpack.c.l.b16 %v2132
    %v2173 = vunpack.c.l.b16 %v2133
    %v2174 = vunpack.c.l.b16 %v2134
    %v2175 = vunpack.c.l.b16 %v2135
    %v2176 = vpack.c.b16 %v2161, %v2160
    %v2177 = vpack.c.b16 %v2163, %v2162
    %v2178 = vpack.c.b16 %v2165, %v2164
    %v2179 = vpack.c.b16 %v2167, %v2166
    %v2180 = vpack.c.b16 %v2169, %v2168
    %v2181 = vpack.c.b16 %v2171, %v2170
    %v2182 = vpack.c.b16 %v2173, %v2172
    %v2183 = vpack.c.b16 %v2175, %v2174
    %2192 = vmatprep.subr.bf16.mxu0 0
    %2193 = vmatpush1.bf16.msra.mxu0 %v2176
    %2194 = vmatprep.subr.bf16.mxu0 0
    %2195 = vmatpush1.bf16.msra.mxu0 %v2177
    %2196 = vmatprep.subr.bf16.mxu0 0
    %2197 = vmatpush1.bf16.msra.mxu0 %v2178
    %2198 = vmatprep.subr.bf16.mxu0 0
    %2199 = vmatpush1.bf16.msra.mxu0 %v2179
    %2200 = vmatprep.subr.bf16.mxu0 0
    %2201 = vmatpush1.bf16.msra.mxu0 %v2180
    %2202 = vmatprep.subr.bf16.mxu0 0
    %2203 = vmatpush1.bf16.msra.mxu0 %v2181
    %2204 = vmatprep.subr.bf16.mxu0 0
    %2205 = vmatpush1.bf16.msra.mxu0 %v2182
    %2206 = vmatprep.subr.bf16.mxu0 0
    %2207 = vmatpush1.bf16.msra.mxu0 %v2183
    %2208 = vmatprep.subr.bf16.mxu0 0
    %2209 = vmatpush1.bf16.msra.mxu0 0
    %2210 = vmatprep.subr.bf16.mxu0 0
    %2211 = vmatpush1.bf16.msra.mxu0 0
    %2212 = vmatprep.subr.bf16.mxu0 0
    %2213 = vmatpush1.bf16.msra.mxu0 0
    %2214 = vmatprep.subr.bf16.mxu0 0
    %2215 = vmatpush1.bf16.msra.mxu0 0
    %2216 = vmatprep.subr.bf16.mxu0 0
    %2217 = vmatpush1.bf16.msra.mxu0 0
    %2218 = vmatprep.subr.bf16.mxu0 0
    %2219 = vmatpush1.bf16.msra.mxu0 0
    %2220 = vmatprep.subr.bf16.mxu0 0
    %2221 = vmatpush1.bf16.msra.mxu0 0
    %2222 = vmatprep.subr.bf16.mxu0 0
    %2223 = vmatpush1.bf16.msra.mxu0 0
    %2224 = vmatprep.mubr.bf16.mxu0 0
    %2225 = vmatmul.mubr.bf16.gmra.mrb[0].mxu0 %v1932
    %v2226 = vpop.f32.mrb[0].mxu0
    %v2227 = vadd.f32 %v2142, %v2226
    %v2228 = vpop.f32.mrb[0].mxu0
    %v2229 = vpop.f32.mrb[0].mxu0
    %v2230 = vadd.f32 %v2142, %v2229
    %v2231 = vpop.f32.mrb[0].mxu0
    %2232 = vmatprep.mubr.bf16.mxu0 0
    %2233 = vmatmul.mubr.bf16.gmra.mrb[0].mxu0 %v1933
    %v2234 = vpop.f32.mrb[0].mxu0
    %v2235 = vadd.f32 %v2142, %v2234
    %v2236 = vpop.f32.mrb[0].mxu0
    %v2237 = vpop.f32.mrb[0].mxu0
    %v2238 = vadd.f32 %v2142, %v2237
    %v2239 = vpop.f32.mrb[0].mxu0
    %2240 = vmatprep.mubr.bf16.mxu0 0
    %2241 = vmatmul.mubr.bf16.gmra.mrb[0].mxu0 %v1934
    %v2242 = vpop.f32.mrb[0].mxu0
    %v2243 = vadd.f32 %v2142, %v2242
    %v2244 = vpop.f32.mrb[0].mxu0
    %v2245 = vpop.f32.mrb[0].mxu0
    %v2246 = vadd.f32 %v2142, %v2245
    %v2247 = vpop.f32.mrb[0].mxu0
    %2248 = vmatprep.mubr.bf16.mxu0 0
    %2249 = vmatmul.mubr.bf16.gmra.mrb[0].mxu0 %v1935
    %v2250 = vpop.f32.mrb[0].mxu0
    %v2251 = vadd.f32 %v2142, %v2250
    %v2252 = vpop.f32.mrb[0].mxu0
    %v2253 = vpop.f32.mrb[0].mxu0
    %v2254 = vadd.f32 %v2142, %v2253
    %v2255 = vpop.f32.mrb[0].mxu0
    %2256 = vdwg.mxu0
    %v2257 = vsub.f32 %v1568, %v2081
    %v2258 = vsub.f32 %v1569, %v2083
    %v2259 = vsub.f32 %v1570, %v2085
    %v2260 = vsub.f32 %v1571, %v2087
    %v2261 = vsub.f32 %v1572, %v2091
    %v2262 = vsub.f32 %v1573, %v2093
    %v2263 = vsub.f32 %v1574, %v2095
    %v2264 = vsub.f32 %v1575, %v2097
    %v2265 = vsub.f32 %v1576, %v2101
    %v2266 = vsub.f32 %v1577, %v2103
    %v2267 = vsub.f32 %v1578, %v2105
    %v2268 = vsub.f32 %v1579, %v2107
    %v2269 = vsub.f32 %v1580, %v2111
    %v2270 = vsub.f32 %v1581, %v2113
    %v2271 = vsub.f32 %v1582, %v2115
    %v2272 = vsub.f32 %v1583, %v2117
    %2273 = vst [vmem:[#allocation2] sm:$0xff] %v2257
    %2274 = vst.msk [vmem:[#allocation2 + $0x8] sm:$0xff] %vm210, %v2258
    %2275 = vst [vmem:[#allocation2 + $0x10] sm:$0xff] %v2259
    %2276 = vst.msk [vmem:[#allocation2 + $0x18] sm:$0xff] %vm210, %v2260
    %2277 = vst [vmem:[#allocation2 + $0x20] sm:$0xff] %v2261
    %2278 = vst.msk [vmem:[#allocation2 + $0x28] sm:$0xff] %vm210, %v2262
    %2279 = vst [vmem:[#allocation2 + $0x30] sm:$0xff] %v2263
    %2280 = vst.msk [vmem:[#allocation2 + $0x38] sm:$0xff] %vm210, %v2264
    %2281 = vst [vmem:[#allocation2 + $0x40] sm:$0xff] %v2265
    %2282 = vst.msk [vmem:[#allocation2 + $0x48] sm:$0xff] %vm210, %v2266
    %2283 = vst [vmem:[#allocation2 + $0x50] sm:$0xff] %v2267
    %2284 = vst.msk [vmem:[#allocation2 + $0x58] sm:$0xff] %vm210, %v2268
    %2285 = vst [vmem:[#allocation2 + $0x60] sm:$0xff] %v2269
    %2286 = vst.msk [vmem:[#allocation2 + $0x68] sm:$0xff] %vm210, %v2270
    %2287 = vst [vmem:[#allocation2 + $0x70] sm:$0xff] %v2271
    %2288 = vst.msk [vmem:[#allocation2 + $0x78] sm:$0xff] %vm210, %v2272
    %v2289 = vld [vmem:[#allocation3] sm:$0xff]
    %v2290 = vld [vmem:[#allocation3 + $0x8] sm:$0xff]
    %v2291 = vld [vmem:[#allocation3 + $0x10] sm:$0xff]
    %v2292 = vld [vmem:[#allocation3 + $0x18] sm:$0xff]
    %v2293 = vld [vmem:[#allocation3 + $0x20] sm:$0xff]
    %v2294 = vld [vmem:[#allocation3 + $0x28] sm:$0xff]
    %v2295 = vld [vmem:[#allocation3 + $0x30] sm:$0xff]
    %v2296 = vld [vmem:[#allocation3 + $0x38] sm:$0xff]
    %v2297 = vadd.f32 %v2289, %v2227
    %v2298 = vadd.f32 %v2290, %v2230
    %v2299 = vadd.f32 %v2291, %v2235
    %v2300 = vadd.f32 %v2292, %v2238
    %v2301 = vadd.f32 %v2293, %v2243
    %v2302 = vadd.f32 %v2294, %v2246
    %v2303 = vadd.f32 %v2295, %v2251
    %v2304 = vadd.f32 %v2296, %v2254
    %2305 = vst.msk [vmem:[#allocation3] sm:$0xff] %vm814, %v2297
    %2306 = vst.msk [vmem:[#allocation3 + $0x8] sm:$0xff] %vm814, %v2298
    %2307 = vst.msk [vmem:[#allocation3 + $0x10] sm:$0xff] %vm814, %v2299
    %2308 = vst.msk [vmem:[#allocation3 + $0x18] sm:$0xff] %vm814, %v2300
    %2309 = vst.msk [vmem:[#allocation3 + $0x20] sm:$0xff] %vm814, %v2301
    %2310 = vst.msk [vmem:[#allocation3 + $0x28] sm:$0xff] %vm814, %v2302
    %2311 = vst.msk [vmem:[#allocation3 + $0x30] sm:$0xff] %vm814, %v2303
    %2312 = vst.msk [vmem:[#allocation3 + $0x38] sm:$0xff] %vm814, %v2304
    %v2313 = vld [vmem:[#allocation2] sm:$0xff]
    %v2314 = vld [vmem:[#allocation2 + $0x8] sm:$0xff]
    %v2315 = vld [vmem:[#allocation2 + $0x10] sm:$0xff]
    %v2316 = vld [vmem:[#allocation2 + $0x18] sm:$0xff]
    %v2317 = vld [vmem:[#allocation2 + $0x20] sm:$0xff]
    %v2318 = vld [vmem:[#allocation2 + $0x28] sm:$0xff]
    %v2319 = vld [vmem:[#allocation2 + $0x30] sm:$0xff]
    %v2320 = vld [vmem:[#allocation2 + $0x38] sm:$0xff]
    %v2321 = vld [vmem:[#allocation2 + $0x40] sm:$0xff]
    %v2322 = vld [vmem:[#allocation2 + $0x48] sm:$0xff]
    %v2323 = vld [vmem:[#allocation2 + $0x50] sm:$0xff]
    %v2324 = vld [vmem:[#allocation2 + $0x58] sm:$0xff]
    %v2325 = vld [vmem:[#allocation2 + $0x60] sm:$0xff]
    %v2326 = vld [vmem:[#allocation2 + $0x68] sm:$0xff]
    %v2327 = vld [vmem:[#allocation2 + $0x70] sm:$0xff]
    %v2328 = vld [vmem:[#allocation2 + $0x78] sm:$0xff]
    %v2329 = vpack.c.bf16 %v2315, %v2313
    %v2330 = vpack.c.bf16 %v2316, %v2314
    %v2331 = vpack.c.bf16 %v2319, %v2317
    %v2332 = vpack.c.bf16 %v2320, %v2318
    %v2333 = vpack.c.bf16 %v2323, %v2321
    %v2334 = vpack.c.bf16 %v2324, %v2322
    %v2335 = vpack.c.bf16 %v2327, %v2325
    %v2336 = vpack.c.bf16 %v2328, %v2326
    %s2337 = scalar_lea.vmem %s3, 288
    %v2338 = vld [vmem:[%s2337] sm:$0xf]
    %v2339 = vld [vmem:[%s2337 + $0x4] sm:$0xf]
    %v2340 = vld [vmem:[%s2337 + $0x8] sm:$0xf]
    %v2341 = vld [vmem:[%s2337 + $0xc] sm:$0xf]
    %v2342 = vld [vmem:[%s2337 + $0x10] sm:$0xf]
    %v2343 = vld [vmem:[%s2337 + $0x14] sm:$0xf]
    %v2344 = vld [vmem:[%s2337 + $0x18] sm:$0xf]
    %v2345 = vld [vmem:[%s2337 + $0x1c] sm:$0xf]
    %v2346 = vld [vmem:[%s2337 + $0x20] sm:$0xf]
    %v2347 = vld [vmem:[%s2337 + $0x24] sm:$0xf]
    %v2348 = vld [vmem:[%s2337 + $0x28] sm:$0xf]
    %v2349 = vld [vmem:[%s2337 + $0x2c] sm:$0xf]
    %v2350 = vld [vmem:[%s2337 + $0x30] sm:$0xf]
    %v2351 = vld [vmem:[%s2337 + $0x34] sm:$0xf]
    %v2352 = vld [vmem:[%s2337 + $0x38] sm:$0xf]
    %v2353 = vld [vmem:[%s2337 + $0x3c] sm:$0xf]
    %v2354 = vld [vmem:[%s2337 + $0x40] sm:$0xf]
    %v2355 = vld [vmem:[%s2337 + $0x44] sm:$0xf]
    %v2356 = vld [vmem:[%s2337 + $0x48] sm:$0xf]
    %v2357 = vld [vmem:[%s2337 + $0x4c] sm:$0xf]
    %v2358 = vld [vmem:[%s2337 + $0x50] sm:$0xf]
    %v2359 = vld [vmem:[%s2337 + $0x54] sm:$0xf]
    %v2360 = vld [vmem:[%s2337 + $0x58] sm:$0xf]
    %v2361 = vld [vmem:[%s2337 + $0x5c] sm:$0xf]
    %s2362 = scalar_lea.vmem %s7, 6
    %v2363 = vld [vmem:[%s2362] sm:$0x1]
    %v2365 = vlaneseq
    %v2366 = vshrl.u32 %v2365, 7
    %v2367 = vsub.s32 0, %v2366
    %v2368 = vrot.slane %v2363, %v2367
    %v2394 = vunpack.c.l.b16 %v2338
    %v2395 = vunpack.c.l.b16 %v2339
    %v2396 = vunpack.c.l.b16 %v2340
    %v2397 = vunpack.c.l.b16 %v2341
    %v2398 = vunpack.c.l.b16 %v2342
    %v2399 = vunpack.c.l.b16 %v2343
    %v2400 = vunpack.c.l.b16 %v2344
    %v2401 = vunpack.c.l.b16 %v2345
    %v2402 = vunpack.c.l.b16 %v2346
    %v2403 = vunpack.c.l.b16 %v2347
    %v2404 = vunpack.c.l.b16 %v2348
    %v2405 = vunpack.c.l.b16 %v2349
    %v2406 = vunpack.c.l.b16 %v2350
    %v2407 = vunpack.c.l.b16 %v2351
    %v2408 = vunpack.c.l.b16 %v2352
    %v2409 = vunpack.c.l.b16 %v2353
    %v2410 = vunpack.c.l.b16 %v2354
    %v2411 = vunpack.c.l.b16 %v2355
    %v2412 = vunpack.c.l.b16 %v2356
    %v2413 = vunpack.c.l.b16 %v2357
    %v2414 = vunpack.c.l.b16 %v2358
    %v2415 = vunpack.c.l.b16 %v2359
    %v2416 = vunpack.c.l.b16 %v2360
    %v2417 = vunpack.c.l.b16 %v2361
    %v2418 = vpack.c.b16 %v2395, %v2394
    %v2419 = vpack.c.b16 %v2397, %v2396
    %v2420 = vpack.c.b16 %v2399, %v2398
    %v2421 = vpack.c.b16 %v2401, %v2400
    %v2422 = vpack.c.b16 %v2403, %v2402
    %v2423 = vpack.c.b16 %v2405, %v2404
    %v2424 = vpack.c.b16 %v2407, %v2406
    %v2425 = vpack.c.b16 %v2409, %v2408
    %v2426 = vpack.c.b16 %v2411, %v2410
    %v2427 = vpack.c.b16 %v2413, %v2412
    %v2428 = vpack.c.b16 %v2415, %v2414
    %v2429 = vpack.c.b16 %v2417, %v2416
    %v2443 = vsel %vm210, %v2330, 0
    %v2446 = vsel %vm210, %v2332, 0
    %v2449 = vsel %vm210, %v2334, 0
    %v2452 = vsel %vm210, %v2336, 0
    %2454 = vmatprep.subr.bf16.mxu0 0
    %2455 = vmatpush1.bf16.msra.mxu0 %v2418
    %2456 = vmatprep.subr.bf16.mxu0 0
    %2457 = vmatpush1.bf16.msra.mxu0 %v2419
    %2458 = vmatprep.subr.bf16.mxu0 0
    %2459 = vmatpush1.bf16.msra.mxu0 %v2420
    %2460 = vmatprep.subr.bf16.mxu0 0
    %2461 = vmatpush1.bf16.msra.mxu0 %v2421
    %2462 = vmatprep.subr.bf16.mxu0 0
    %2463 = vmatpush1.bf16.msra.mxu0 %v2422
    %2464 = vmatprep.subr.bf16.mxu0 0
    %2465 = vmatpush1.bf16.msra.mxu0 %v2423
    %2466 = vmatprep.subr.bf16.mxu0 0
    %2467 = vmatpush1.bf16.msra.mxu0 %v2424
    %2468 = vmatprep.subr.bf16.mxu0 0
    %2469 = vmatpush1.bf16.msra.mxu0 %v2425
    %2470 = vmatprep.subr.bf16.mxu0 0
    %2471 = vmatpush1.bf16.msra.mxu0 %v2426
    %2472 = vmatprep.subr.bf16.mxu0 0
    %2473 = vmatpush1.bf16.msra.mxu0 %v2427
    %2474 = vmatprep.subr.bf16.mxu0 0
    %2475 = vmatpush1.bf16.msra.mxu0 %v2428
    %2476 = vmatprep.subr.bf16.mxu0 0
    %2477 = vmatpush1.bf16.msra.mxu0 %v2429
    %2478 = vmatprep.subr.bf16.mxu0 0
    %2479 = vmatpush1.bf16.msra.mxu0 0
    %2480 = vmatprep.subr.bf16.mxu0 0
    %2481 = vmatpush1.bf16.msra.mxu0 0
    %2482 = vmatprep.subr.bf16.mxu0 0
    %2483 = vmatpush1.bf16.msra.mxu0 0
    %2484 = vmatprep.subr.bf16.mxu0 0
    %2485 = vmatpush1.bf16.msra.mxu0 0
    %2486 = vmatprep.mubr.bf16.mxu0 %v2443
    %2487 = vmatmul.mubr.bf16.gmra.mrb[0].mxu0 %v2329
    %v2488 = vpop.f32.mrb[0].mxu0
    %v2489 = vadd.f32 %v2368, %v2488
    %v2490 = vpop.f32.mrb[0].mxu0
    %v2491 = vpop.f32.mrb[0].mxu0
    %v2492 = vadd.f32 %v2368, %v2491
    %v2493 = vpop.f32.mrb[0].mxu0
    %2494 = vmatprep.mubr.bf16.mxu0 %v2446
    %2495 = vmatmul.mubr.bf16.gmra.mrb[0].mxu0 %v2331
    %v2496 = vpop.f32.mrb[0].mxu0
    %v2497 = vadd.f32 %v2368, %v2496
    %v2498 = vpop.f32.mrb[0].mxu0
    %v2499 = vpop.f32.mrb[0].mxu0
    %v2500 = vadd.f32 %v2368, %v2499
    %v2501 = vpop.f32.mrb[0].mxu0
    %2502 = vmatprep.mubr.bf16.mxu0 %v2449
    %2503 = vmatmul.mubr.bf16.gmra.mrb[0].mxu0 %v2333
    %v2504 = vpop.f32.mrb[0].mxu0
    %v2505 = vadd.f32 %v2368, %v2504
    %v2506 = vpop.f32.mrb[0].mxu0
    %v2507 = vpop.f32.mrb[0].mxu0
    %v2508 = vadd.f32 %v2368, %v2507
    %v2509 = vpop.f32.mrb[0].mxu0
    %2510 = vmatprep.mubr.bf16.mxu0 %v2452
    %2511 = vmatmul.mubr.bf16.gmra.mrb[0].mxu0 %v2335
    %v2512 = vpop.f32.mrb[0].mxu0
    %v2513 = vadd.f32 %v2368, %v2512
    %v2514 = vpop.f32.mrb[0].mxu0
    %v2515 = vpop.f32.mrb[0].mxu0
    %v2516 = vadd.f32 %v2368, %v2515
    %v2517 = vpop.f32.mrb[0].mxu0
    %2518 = vdwg.mxu0
    %v2519 = vmax.f32 %v2489, 0.0
    %v2520 = vmax.f32 %v2492, 0.0
    %v2521 = vmax.f32 %v2497, 0.0
    %v2522 = vmax.f32 %v2500, 0.0
    %v2523 = vmax.f32 %v2505, 0.0
    %v2524 = vmax.f32 %v2508, 0.0
    %v2525 = vmax.f32 %v2513, 0.0
    %v2526 = vmax.f32 %v2516, 0.0
    %v2527 = vpack.c.bf16 %v2520, %v2519
    %v2528 = vpack.c.bf16 %v2522, %v2521
    %v2529 = vpack.c.bf16 %v2524, %v2523
    %v2530 = vpack.c.bf16 %v2526, %v2525
    %s2531 = scalar_lea.vmem %s4, 192
    %v2532 = vld [vmem:[%s2531] sm:$0xf]
    %v2533 = vld [vmem:[%s2531 + $0x4] sm:$0xf]
    %v2534 = vld [vmem:[%s2531 + $0x8] sm:$0xf]
    %v2535 = vld [vmem:[%s2531 + $0xc] sm:$0xf]
    %v2536 = vld [vmem:[%s2531 + $0x10] sm:$0xf]
    %v2537 = vld [vmem:[%s2531 + $0x14] sm:$0xf]
    %v2538 = vld [vmem:[%s2531 + $0x18] sm:$0xf]
    %v2539 = vld [vmem:[%s2531 + $0x1c] sm:$0xf]
    %v2540 = vld [vmem:[%s2531 + $0x20] sm:$0xf]
    %v2541 = vld [vmem:[%s2531 + $0x24] sm:$0xf]
    %v2542 = vld [vmem:[%s2531 + $0x28] sm:$0xf]
    %v2543 = vld [vmem:[%s2531 + $0x2c] sm:$0xf]
    %v2544 = vld [vmem:[%s2531 + $0x30] sm:$0xf]
    %v2545 = vld [vmem:[%s2531 + $0x34] sm:$0xf]
    %v2546 = vld [vmem:[%s2531 + $0x38] sm:$0xf]
    %v2547 = vld [vmem:[%s2531 + $0x3c] sm:$0xf]
    %s2548 = scalar_lea.vmem %s7, 7
    %v2549 = vld [vmem:[%s2548] sm:$0x1]
    %v2551 = vlaneseq
    %v2552 = vshrl.u32 %v2551, 7
    %v2553 = vsub.s32 0, %v2552
    %v2554 = vrot.slane %v2549, %v2553
    %v2572 = vunpack.c.l.b16 %v2532
    %v2573 = vunpack.c.l.b16 %v2533
    %v2574 = vunpack.c.l.b16 %v2534
    %v2575 = vunpack.c.l.b16 %v2535
    %v2576 = vunpack.c.l.b16 %v2536
    %v2577 = vunpack.c.l.b16 %v2537
    %v2578 = vunpack.c.l.b16 %v2538
    %v2579 = vunpack.c.l.b16 %v2539
    %v2580 = vunpack.c.l.b16 %v2540
    %v2581 = vunpack.c.l.b16 %v2541
    %v2582 = vunpack.c.l.b16 %v2542
    %v2583 = vunpack.c.l.b16 %v2543
    %v2584 = vunpack.c.l.b16 %v2544
    %v2585 = vunpack.c.l.b16 %v2545
    %v2586 = vunpack.c.l.b16 %v2546
    %v2587 = vunpack.c.l.b16 %v2547
    %v2588 = vpack.c.b16 %v2573, %v2572
    %v2589 = vpack.c.b16 %v2575, %v2574
    %v2590 = vpack.c.b16 %v2577, %v2576
    %v2591 = vpack.c.b16 %v2579, %v2578
    %v2592 = vpack.c.b16 %v2581, %v2580
    %v2593 = vpack.c.b16 %v2583, %v2582
    %v2594 = vpack.c.b16 %v2585, %v2584
    %v2595 = vpack.c.b16 %v2587, %v2586
    %2604 = vmatprep.subr.bf16.mxu0 0
    %2605 = vmatpush1.bf16.msra.mxu0 %v2588
    %2606 = vmatprep.subr.bf16.mxu0 0
    %2607 = vmatpush1.bf16.msra.mxu0 %v2589
    %2608 = vmatprep.subr.bf16.mxu0 0
    %2609 = vmatpush1.bf16.msra.mxu0 %v2590
    %2610 = vmatprep.subr.bf16.mxu0 0
    %2611 = vmatpush1.bf16.msra.mxu0 %v2591
    %2612 = vmatprep.subr.bf16.mxu0 0
    %2613 = vmatpush1.bf16.msra.mxu0 %v2592
    %2614 = vmatprep.subr.bf16.mxu0 0
    %2615 = vmatpush1.bf16.msra.mxu0 %v2593
    %2616 = vmatprep.subr.bf16.mxu0 0
    %2617 = vmatpush1.bf16.msra.mxu0 %v2594
    %2618 = vmatprep.subr.bf16.mxu0 0
    %2619 = vmatpush1.bf16.msra.mxu0 %v2595
    %2620 = vmatprep.subr.bf16.mxu0 0
    %2621 = vmatpush1.bf16.msra.mxu0 0
    %2622 = vmatprep.subr.bf16.mxu0 0
    %2623 = vmatpush1.bf16.msra.mxu0 0
    %2624 = vmatprep.subr.bf16.mxu0 0
    %2625 = vmatpush1.bf16.msra.mxu0 0
    %2626 = vmatprep.subr.bf16.mxu0 0
    %2627 = vmatpush1.bf16.msra.mxu0 0
    %2628 = vmatprep.subr.bf16.mxu0 0
    %2629 = vmatpush1.bf16.msra.mxu0 0
    %2630 = vmatprep.subr.bf16.mxu0 0
    %2631 = vmatpush1.bf16.msra.mxu0 0
    %2632 = vmatprep.subr.bf16.mxu0 0
    %2633 = vmatpush1.bf16.msra.mxu0 0
    %2634 = vmatprep.subr.bf16.mxu0 0
    %2635 = vmatpush1.bf16.msra.mxu0 0
    %2636 = vmatprep.mubr.bf16.mxu0 0
    %2637 = vmatmul.mubr.bf16.gmra.mrb[0].mxu0 %v2527
    %v2638 = vpop.f32.mrb[0].mxu0
    %v2639 = vadd.f32 %v2554, %v2638
    %v2640 = vpop.f32.mrb[0].mxu0
    %v2641 = vpop.f32.mrb[0].mxu0
    %v2642 = vadd.f32 %v2554, %v2641
    %v2643 = vpop.f32.mrb[0].mxu0
    %2644 = vmatprep.mubr.bf16.mxu0 0
    %2645 = vmatmul.mubr.bf16.gmra.mrb[0].mxu0 %v2528
    %v2646 = vpop.f32.mrb[0].mxu0
    %v2647 = vadd.f32 %v2554, %v2646
    %v2648 = vpop.f32.mrb[0].mxu0
    %v2649 = vpop.f32.mrb[0].mxu0
    %v2650 = vadd.f32 %v2554, %v2649
    %v2651 = vpop.f32.mrb[0].mxu0
    %2652 = vmatprep.mubr.bf16.mxu0 0
    %2653 = vmatmul.mubr.bf16.gmra.mrb[0].mxu0 %v2529
    %v2654 = vpop.f32.mrb[0].mxu0
    %v2655 = vadd.f32 %v2554, %v2654
    %v2656 = vpop.f32.mrb[0].mxu0
    %v2657 = vpop.f32.mrb[0].mxu0
    %v2658 = vadd.f32 %v2554, %v2657
    %v2659 = vpop.f32.mrb[0].mxu0
    %2660 = vmatprep.mubr.bf16.mxu0 0
    %2661 = vmatmul.mubr.bf16.gmra.mrb[0].mxu0 %v2530
    %v2662 = vpop.f32.mrb[0].mxu0
    %v2663 = vadd.f32 %v2554, %v2662
    %v2664 = vpop.f32.mrb[0].mxu0
    %v2665 = vpop.f32.mrb[0].mxu0
    %v2666 = vadd.f32 %v2554, %v2665
    %v2667 = vpop.f32.mrb[0].mxu0
    %2668 = vdwg.mxu0
    %v2669 = vmax.f32 %v2639, 0.0
    %v2670 = vmax.f32 %v2642, 0.0
    %v2671 = vmax.f32 %v2647, 0.0
    %v2672 = vmax.f32 %v2650, 0.0
    %v2673 = vmax.f32 %v2655, 0.0
    %v2674 = vmax.f32 %v2658, 0.0
    %v2675 = vmax.f32 %v2663, 0.0
    %v2676 = vmax.f32 %v2666, 0.0
    %v2677 = vpack.c.bf16 %v2670, %v2669
    %v2678 = vpack.c.bf16 %v2672, %v2671
    %v2679 = vpack.c.bf16 %v2674, %v2673
    %v2680 = vpack.c.bf16 %v2676, %v2675
    %s2681 = scalar_lea.vmem %s5, 384
    %v2682 = vld [vmem:[%s2681] sm:$0xff]
    %v2683 = vld [vmem:[%s2681 + $0x8] sm:$0xff]
    %v2684 = vld [vmem:[%s2681 + $0x10] sm:$0xff]
    %v2685 = vld [vmem:[%s2681 + $0x18] sm:$0xff]
    %v2686 = vld [vmem:[%s2681 + $0x20] sm:$0xff]
    %v2687 = vld [vmem:[%s2681 + $0x28] sm:$0xff]
    %v2688 = vld [vmem:[%s2681 + $0x30] sm:$0xff]
    %v2689 = vld [vmem:[%s2681 + $0x38] sm:$0xff]
    %v2690 = vld [vmem:[%s2681 + $0x40] sm:$0xff]
    %v2691 = vld [vmem:[%s2681 + $0x48] sm:$0xff]
    %v2692 = vld [vmem:[%s2681 + $0x50] sm:$0xff]
    %v2693 = vld [vmem:[%s2681 + $0x58] sm:$0xff]
    %v2694 = vld [vmem:[%s2681 + $0x60] sm:$0xff]
    %v2695 = vld [vmem:[%s2681 + $0x68] sm:$0xff]
    %v2696 = vld [vmem:[%s2681 + $0x70] sm:$0xff]
    %v2697 = vld [vmem:[%s2681 + $0x78] sm:$0xff]
    %s2698 = scalar_lea.vmem %s8, 6
    %v2699 = vld [vmem:[%s2698] sm:$0x3]
    %v2701 = vlaneseq
    %v2702 = vshrl.u32 %v2701, 7
    %v2703 = vsub.s32 0, %v2702
    %v2704 = vrot.slane %v2699, %v2703
    %v2705 = vlaneseq
    %v2706 = vshrl.u32 %v2705, 7
    %v2707 = vsub.s32 1, %v2706
    %v2708 = vrot.slane %v2699, %v2707
    %v2727 = vunpack.c.l.b16 %v2682
    %v2728 = vunpack.c.h.b16 %v2682
    %v2729 = vunpack.c.l.b16 %v2683
    %v2730 = vunpack.c.h.b16 %v2683
    %v2731 = vunpack.c.l.b16 %v2684
    %v2732 = vunpack.c.h.b16 %v2684
    %v2733 = vunpack.c.l.b16 %v2685
    %v2734 = vunpack.c.h.b16 %v2685
    %v2735 = vunpack.c.l.b16 %v2686
    %v2736 = vunpack.c.h.b16 %v2686
    %v2737 = vunpack.c.l.b16 %v2687
    %v2738 = vunpack.c.h.b16 %v2687
    %v2739 = vunpack.c.l.b16 %v2688
    %v2740 = vunpack.c.h.b16 %v2688
    %v2741 = vunpack.c.l.b16 %v2689
    %v2742 = vunpack.c.h.b16 %v2689
    %v2743 = vunpack.c.l.b16 %v2690
    %v2744 = vunpack.c.h.b16 %v2690
    %v2745 = vunpack.c.l.b16 %v2691
    %v2746 = vunpack.c.h.b16 %v2691
    %v2747 = vunpack.c.l.b16 %v2692
    %v2748 = vunpack.c.h.b16 %v2692
    %v2749 = vunpack.c.l.b16 %v2693
    %v2750 = vunpack.c.h.b16 %v2693
    %v2751 = vunpack.c.l.b16 %v2694
    %v2752 = vunpack.c.h.b16 %v2694
    %v2753 = vunpack.c.l.b16 %v2695
    %v2754 = vunpack.c.h.b16 %v2695
    %v2755 = vunpack.c.l.b16 %v2696
    %v2756 = vunpack.c.h.b16 %v2696
    %v2757 = vunpack.c.l.b16 %v2697
    %v2758 = vunpack.c.h.b16 %v2697
    %v2759 = vpack.c.b16 %v2729, %v2727
    %v2760 = vpack.c.b16 %v2730, %v2728
    %v2761 = vpack.c.b16 %v2733, %v2731
    %v2762 = vpack.c.b16 %v2734, %v2732
    %v2763 = vpack.c.b16 %v2737, %v2735
    %v2764 = vpack.c.b16 %v2738, %v2736
    %v2765 = vpack.c.b16 %v2741, %v2739
    %v2766 = vpack.c.b16 %v2742, %v2740
    %v2767 = vpack.c.b16 %v2745, %v2743
    %v2768 = vpack.c.b16 %v2746, %v2744
    %v2769 = vpack.c.b16 %v2749, %v2747
    %v2770 = vpack.c.b16 %v2750, %v2748
    %v2771 = vpack.c.b16 %v2753, %v2751
    %v2772 = vpack.c.b16 %v2754, %v2752
    %v2773 = vpack.c.b16 %v2757, %v2755
    %v2774 = vpack.c.b16 %v2758, %v2756
    %2791 = vmatprep.subr.bf16.mxu0 %v2760
    %2792 = vmatpush1.bf16.msra.mxu0 %v2759
    %2793 = vmatprep.subr.bf16.mxu0 %v2762
    %2794 = vmatpush1.bf16.msra.mxu0 %v2761
    %2795 = vmatprep.subr.bf16.mxu0 %v2764
    %2796 = vmatpush1.bf16.msra.mxu0 %v2763
    %2797 = vmatprep.subr.bf16.mxu0 %v2766
    %2798 = vmatpush1.bf16.msra.mxu0 %v2765
    %2799 = vmatprep.subr.bf16.mxu0 %v2768
    %2800 = vmatpush1.bf16.msra.mxu0 %v2767
    %2801 = vmatprep.subr.bf16.mxu0 %v2770
    %2802 = vmatpush1.bf16.msra.mxu0 %v2769
    %2803 = vmatprep.subr.bf16.mxu0 %v2772
    %2804 = vmatpush1.bf16.msra.mxu0 %v2771
    %2805 = vmatprep.subr.bf16.mxu0 %v2774
    %2806 = vmatpush1.bf16.msra.mxu0 %v2773
    %2807 = vmatprep.subr.bf16.mxu0 0
    %2808 = vmatpush1.bf16.msra.mxu0 0
    %2809 = vmatprep.subr.bf16.mxu0 0
    %2810 = vmatpush1.bf16.msra.mxu0 0
    %2811 = vmatprep.subr.bf16.mxu0 0
    %2812 = vmatpush1.bf16.msra.mxu0 0
    %2813 = vmatprep.subr.bf16.mxu0 0
    %2814 = vmatpush1.bf16.msra.mxu0 0
    %2815 = vmatprep.subr.bf16.mxu0 0
    %2816 = vmatpush1.bf16.msra.mxu0 0
    %2817 = vmatprep.subr.bf16.mxu0 0
    %2818 = vmatpush1.bf16.msra.mxu0 0
    %2819 = vmatprep.subr.bf16.mxu0 0
    %2820 = vmatpush1.bf16.msra.mxu0 0
    %2821 = vmatprep.subr.bf16.mxu0 0
    %2822 = vmatpush1.bf16.msra.mxu0 0
    %2823 = vmatprep.mubr.bf16.mxu0 0
    %2824 = vmatmul.mubr.bf16.gmra.mrb[0].mxu0 %v2677
    %v2825 = vpop.f32.mrb[0].mxu0
    %v2826 = vadd.f32 %v2704, %v2825
    %v2827 = vpop.f32.mrb[0].mxu0
    %v2828 = vadd.f32 %v2708, %v2827
    %v2829 = vpop.f32.mrb[0].mxu0
    %v2830 = vadd.f32 %v2704, %v2829
    %v2831 = vpop.f32.mrb[0].mxu0
    %v2832 = vadd.f32 %v2708, %v2831
    %2833 = vmatprep.mubr.bf16.mxu0 0
    %2834 = vmatmul.mubr.bf16.gmra.mrb[0].mxu0 %v2678
    %v2835 = vpop.f32.mrb[0].mxu0
    %v2836 = vadd.f32 %v2704, %v2835
    %v2837 = vpop.f32.mrb[0].mxu0
    %v2838 = vadd.f32 %v2708, %v2837
    %v2839 = vpop.f32.mrb[0].mxu0
    %v2840 = vadd.f32 %v2704, %v2839
    %v2841 = vpop.f32.mrb[0].mxu0
    %v2842 = vadd.f32 %v2708, %v2841
    %2843 = vmatprep.mubr.bf16.mxu0 0
    %2844 = vmatmul.mubr.bf16.gmra.mrb[0].mxu0 %v2679
    %v2845 = vpop.f32.mrb[0].mxu0
    %v2846 = vadd.f32 %v2704, %v2845
    %v2847 = vpop.f32.mrb[0].mxu0
    %v2848 = vadd.f32 %v2708, %v2847
    %v2849 = vpop.f32.mrb[0].mxu0
    %v2850 = vadd.f32 %v2704, %v2849
    %v2851 = vpop.f32.mrb[0].mxu0
    %v2852 = vadd.f32 %v2708, %v2851
    %2853 = vmatprep.mubr.bf16.mxu0 0
    %2854 = vmatmul.mubr.bf16.gmra.mrb[0].mxu0 %v2680
    %v2855 = vpop.f32.mrb[0].mxu0
    %v2856 = vadd.f32 %v2704, %v2855
    %v2857 = vpop.f32.mrb[0].mxu0
    %v2858 = vadd.f32 %v2708, %v2857
    %v2859 = vpop.f32.mrb[0].mxu0
    %v2860 = vadd.f32 %v2704, %v2859
    %v2861 = vpop.f32.mrb[0].mxu0
    %v2862 = vadd.f32 %v2708, %v2861
    %2863 = vdwg.mxu0
    %s2864 = scalar_lea.vmem %s6, 192
    %v2865 = vld [vmem:[%s2864] sm:$0xf]
    %v2866 = vld [vmem:[%s2864 + $0x4] sm:$0xf]
    %v2867 = vld [vmem:[%s2864 + $0x8] sm:$0xf]
    %v2868 = vld [vmem:[%s2864 + $0xc] sm:$0xf]
    %v2869 = vld [vmem:[%s2864 + $0x10] sm:$0xf]
    %v2870 = vld [vmem:[%s2864 + $0x14] sm:$0xf]
    %v2871 = vld [vmem:[%s2864 + $0x18] sm:$0xf]
    %v2872 = vld [vmem:[%s2864 + $0x1c] sm:$0xf]
    %v2873 = vld [vmem:[%s2864 + $0x20] sm:$0xf]
    %v2874 = vld [vmem:[%s2864 + $0x24] sm:$0xf]
    %v2875 = vld [vmem:[%s2864 + $0x28] sm:$0xf]
    %v2876 = vld [vmem:[%s2864 + $0x2c] sm:$0xf]
    %v2877 = vld [vmem:[%s2864 + $0x30] sm:$0xf]
    %v2878 = vld [vmem:[%s2864 + $0x34] sm:$0xf]
    %v2879 = vld [vmem:[%s2864 + $0x38] sm:$0xf]
    %v2880 = vld [vmem:[%s2864 + $0x3c] sm:$0xf]
    %s2881 = scalar_lea.vmem %s9, 3
    %v2882 = vld [vmem:[%s2881] sm:$0x1]
    %v2884 = vlaneseq
    %v2885 = vshrl.u32 %v2884, 7
    %v2886 = vsub.s32 0, %v2885
    %v2887 = vrot.slane %v2882, %v2886
    %v2905 = vunpack.c.l.b16 %v2865
    %v2906 = vunpack.c.l.b16 %v2866
    %v2907 = vunpack.c.l.b16 %v2867
    %v2908 = vunpack.c.l.b16 %v2868
    %v2909 = vunpack.c.l.b16 %v2869
    %v2910 = vunpack.c.l.b16 %v2870
    %v2911 = vunpack.c.l.b16 %v2871
    %v2912 = vunpack.c.l.b16 %v2872
    %v2913 = vunpack.c.l.b16 %v2873
    %v2914 = vunpack.c.l.b16 %v2874
    %v2915 = vunpack.c.l.b16 %v2875
    %v2916 = vunpack.c.l.b16 %v2876
    %v2917 = vunpack.c.l.b16 %v2877
    %v2918 = vunpack.c.l.b16 %v2878
    %v2919 = vunpack.c.l.b16 %v2879
    %v2920 = vunpack.c.l.b16 %v2880
    %v2921 = vpack.c.b16 %v2906, %v2905
    %v2922 = vpack.c.b16 %v2908, %v2907
    %v2923 = vpack.c.b16 %v2910, %v2909
    %v2924 = vpack.c.b16 %v2912, %v2911
    %v2925 = vpack.c.b16 %v2914, %v2913
    %v2926 = vpack.c.b16 %v2916, %v2915
    %v2927 = vpack.c.b16 %v2918, %v2917
    %v2928 = vpack.c.b16 %v2920, %v2919
    %2937 = vmatprep.subr.bf16.mxu0 0
    %2938 = vmatpush1.bf16.msra.mxu0 %v2921
    %2939 = vmatprep.subr.bf16.mxu0 0
    %2940 = vmatpush1.bf16.msra.mxu0 %v2922
    %2941 = vmatprep.subr.bf16.mxu0 0
    %2942 = vmatpush1.bf16.msra.mxu0 %v2923
    %2943 = vmatprep.subr.bf16.mxu0 0
    %2944 = vmatpush1.bf16.msra.mxu0 %v2924
    %2945 = vmatprep.subr.bf16.mxu0 0
    %2946 = vmatpush1.bf16.msra.mxu0 %v2925
    %2947 = vmatprep.subr.bf16.mxu0 0
    %2948 = vmatpush1.bf16.msra.mxu0 %v2926
    %2949 = vmatprep.subr.bf16.mxu0 0
    %2950 = vmatpush1.bf16.msra.mxu0 %v2927
    %2951 = vmatprep.subr.bf16.mxu0 0
    %2952 = vmatpush1.bf16.msra.mxu0 %v2928
    %2953 = vmatprep.subr.bf16.mxu0 0
    %2954 = vmatpush1.bf16.msra.mxu0 0
    %2955 = vmatprep.subr.bf16.mxu0 0
    %2956 = vmatpush1.bf16.msra.mxu0 0
    %2957 = vmatprep.subr.bf16.mxu0 0
    %2958 = vmatpush1.bf16.msra.mxu0 0
    %2959 = vmatprep.subr.bf16.mxu0 0
    %2960 = vmatpush1.bf16.msra.mxu0 0
    %2961 = vmatprep.subr.bf16.mxu0 0
    %2962 = vmatpush1.bf16.msra.mxu0 0
    %2963 = vmatprep.subr.bf16.mxu0 0
    %2964 = vmatpush1.bf16.msra.mxu0 0
    %2965 = vmatprep.subr.bf16.mxu0 0
    %2966 = vmatpush1.bf16.msra.mxu0 0
    %2967 = vmatprep.subr.bf16.mxu0 0
    %2968 = vmatpush1.bf16.msra.mxu0 0
    %2969 = vmatprep.mubr.bf16.mxu0 0
    %2970 = vmatmul.mubr.bf16.gmra.mrb[0].mxu0 %v2677
    %v2971 = vpop.f32.mrb[0].mxu0
    %v2972 = vadd.f32 %v2887, %v2971
    %v2973 = vpop.f32.mrb[0].mxu0
    %v2974 = vpop.f32.mrb[0].mxu0
    %v2975 = vadd.f32 %v2887, %v2974
    %v2976 = vpop.f32.mrb[0].mxu0
    %2977 = vmatprep.mubr.bf16.mxu0 0
    %2978 = vmatmul.mubr.bf16.gmra.mrb[0].mxu0 %v2678
    %v2979 = vpop.f32.mrb[0].mxu0
    %v2980 = vadd.f32 %v2887, %v2979
    %v2981 = vpop.f32.mrb[0].mxu0
    %v2982 = vpop.f32.mrb[0].mxu0
    %v2983 = vadd.f32 %v2887, %v2982
    %v2984 = vpop.f32.mrb[0].mxu0
    %2985 = vmatprep.mubr.bf16.mxu0 0
    %2986 = vmatmul.mubr.bf16.gmra.mrb[0].mxu0 %v2679
    %v2987 = vpop.f32.mrb[0].mxu0
    %v2988 = vadd.f32 %v2887, %v2987
    %v2989 = vpop.f32.mrb[0].mxu0
    %v2990 = vpop.f32.mrb[0].mxu0
    %v2991 = vadd.f32 %v2887, %v2990
    %v2992 = vpop.f32.mrb[0].mxu0
    %2993 = vmatprep.mubr.bf16.mxu0 0
    %2994 = vmatmul.mubr.bf16.gmra.mrb[0].mxu0 %v2680
    %v2995 = vpop.f32.mrb[0].mxu0
    %v2996 = vadd.f32 %v2887, %v2995
    %v2997 = vpop.f32.mrb[0].mxu0
    %v2998 = vpop.f32.mrb[0].mxu0
    %v2999 = vadd.f32 %v2887, %v2998
    %v3000 = vpop.f32.mrb[0].mxu0
    %3001 = vdwg.mxu0
    %v3002 = vsub.f32 %v2313, %v2826
    %v3003 = vsub.f32 %v2314, %v2828
    %v3004 = vsub.f32 %v2315, %v2830
    %v3005 = vsub.f32 %v2316, %v2832
    %v3006 = vsub.f32 %v2317, %v2836
    %v3007 = vsub.f32 %v2318, %v2838
    %v3008 = vsub.f32 %v2319, %v2840
    %v3009 = vsub.f32 %v2320, %v2842
    %v3010 = vsub.f32 %v2321, %v2846
    %v3011 = vsub.f32 %v2322, %v2848
    %v3012 = vsub.f32 %v2323, %v2850
    %v3013 = vsub.f32 %v2324, %v2852
    %v3014 = vsub.f32 %v2325, %v2856
    %v3015 = vsub.f32 %v2326, %v2858
    %v3016 = vsub.f32 %v2327, %v2860
    %v3017 = vsub.f32 %v2328, %v2862
    %3018 = vst [vmem:[#allocation2] sm:$0xff] %v3002
    %3019 = vst.msk [vmem:[#allocation2 + $0x8] sm:$0xff] %vm210, %v3003
    %3020 = vst [vmem:[#allocation2 + $0x10] sm:$0xff] %v3004
    %3021 = vst.msk [vmem:[#allocation2 + $0x18] sm:$0xff] %vm210, %v3005
    %3022 = vst [vmem:[#allocation2 + $0x20] sm:$0xff] %v3006
    %3023 = vst.msk [vmem:[#allocation2 + $0x28] sm:$0xff] %vm210, %v3007
    %3024 = vst [vmem:[#allocation2 + $0x30] sm:$0xff] %v3008
    %3025 = vst.msk [vmem:[#allocation2 + $0x38] sm:$0xff] %vm210, %v3009
    %3026 = vst [vmem:[#allocation2 + $0x40] sm:$0xff] %v3010
    %3027 = vst.msk [vmem:[#allocation2 + $0x48] sm:$0xff] %vm210, %v3011
    %3028 = vst [vmem:[#allocation2 + $0x50] sm:$0xff] %v3012
    %3029 = vst.msk [vmem:[#allocation2 + $0x58] sm:$0xff] %vm210, %v3013
    %3030 = vst [vmem:[#allocation2 + $0x60] sm:$0xff] %v3014
    %3031 = vst.msk [vmem:[#allocation2 + $0x68] sm:$0xff] %vm210, %v3015
    %3032 = vst [vmem:[#allocation2 + $0x70] sm:$0xff] %v3016
    %3033 = vst.msk [vmem:[#allocation2 + $0x78] sm:$0xff] %vm210, %v3017
    %v3034 = vld [vmem:[#allocation3] sm:$0xff]
    %v3035 = vld [vmem:[#allocation3 + $0x8] sm:$0xff]
    %v3036 = vld [vmem:[#allocation3 + $0x10] sm:$0xff]
    %v3037 = vld [vmem:[#allocation3 + $0x18] sm:$0xff]
    %v3038 = vld [vmem:[#allocation3 + $0x20] sm:$0xff]
    %v3039 = vld [vmem:[#allocation3 + $0x28] sm:$0xff]
    %v3040 = vld [vmem:[#allocation3 + $0x30] sm:$0xff]
    %v3041 = vld [vmem:[#allocation3 + $0x38] sm:$0xff]
    %v3042 = vadd.f32 %v3034, %v2972
    %v3043 = vadd.f32 %v3035, %v2975
    %v3044 = vadd.f32 %v3036, %v2980
    %v3045 = vadd.f32 %v3037, %v2983
    %v3046 = vadd.f32 %v3038, %v2988
    %v3047 = vadd.f32 %v3039, %v2991
    %v3048 = vadd.f32 %v3040, %v2996
    %v3049 = vadd.f32 %v3041, %v2999
    %3050 = vst.msk [vmem:[#allocation3] sm:$0xff] %vm814, %v3042
    %3051 = vst.msk [vmem:[#allocation3 + $0x8] sm:$0xff] %vm814, %v3043
    %3052 = vst.msk [vmem:[#allocation3 + $0x10] sm:$0xff] %vm814, %v3044
    %3053 = vst.msk [vmem:[#allocation3 + $0x18] sm:$0xff] %vm814, %v3045
    %3054 = vst.msk [vmem:[#allocation3 + $0x20] sm:$0xff] %vm814, %v3046
    %3055 = vst.msk [vmem:[#allocation3 + $0x28] sm:$0xff] %vm814, %v3047
    %3056 = vst.msk [vmem:[#allocation3 + $0x30] sm:$0xff] %vm814, %v3048
    %3057 = vst.msk [vmem:[#allocation3 + $0x38] sm:$0xff] %vm814, %v3049
    // Predicated region
    $region46: #{tpu_custom_call.1} parent=1 // pred_check
      %p3058 = pneg %p37
    $region47: #{tpu_custom_call.1} parent=1 // pred_check_branch
      %3060 = sbr.rel (%p3058) target = $region49
    $region48: #{tpu_custom_call.1} parent=1 // pred_region
      %v3061 = vld [vmem:[#allocation3] sm:$0xff]
      %v3062 = vld [vmem:[#allocation3 + $0x8] sm:$0xff]
      %v3063 = vld [vmem:[#allocation3 + $0x10] sm:$0xff]
      %v3064 = vld [vmem:[#allocation3 + $0x18] sm:$0xff]
      %v3065 = vld [vmem:[#allocation3 + $0x20] sm:$0xff]
      %v3066 = vld [vmem:[#allocation3 + $0x28] sm:$0xff]
      %v3067 = vld [vmem:[#allocation3 + $0x30] sm:$0xff]
      %v3068 = vld [vmem:[#allocation3 + $0x38] sm:$0xff]
      %v3069 = vld [vmem:[%s1] sm:$0xff]
      %v3070 = vld [vmem:[%s1 + $0x8] sm:$0xff]
      %v3071 = vld [vmem:[%s1 + $0x10] sm:$0xff]
      %v3072 = vld [vmem:[%s1 + $0x18] sm:$0xff]
      %v3073 = vld [vmem:[%s1 + $0x20] sm:$0xff]
      %v3074 = vld [vmem:[%s1 + $0x28] sm:$0xff]
      %v3075 = vld [vmem:[%s1 + $0x30] sm:$0xff]
      %v3076 = vld [vmem:[%s1 + $0x38] sm:$0xff]
      %v3077 = vmul.f32 %v3061, %v3069
      %v3078 = vmul.f32 %v3062, %v3070
      %v3079 = vmul.f32 %v3063, %v3071
      %v3080 = vmul.f32 %v3064, %v3072
      %v3081 = vmul.f32 %v3065, %v3073
      %v3082 = vmul.f32 %v3066, %v3074
      %v3083 = vmul.f32 %v3067, %v3075
      %v3084 = vmul.f32 %v3068, %v3076
      %v3085 = vld [vmem:[%s2] sm:$0xff]
      %v3086 = vld [vmem:[%s2 + $0x8] sm:$0xff]
      %v3087 = vld [vmem:[%s2 + $0x10] sm:$0xff]
      %v3088 = vld [vmem:[%s2 + $0x18] sm:$0xff]
      %v3089 = vld [vmem:[%s2 + $0x20] sm:$0xff]
      %v3090 = vld [vmem:[%s2 + $0x28] sm:$0xff]
      %v3091 = vld [vmem:[%s2 + $0x30] sm:$0xff]
      %v3092 = vld [vmem:[%s2 + $0x38] sm:$0xff]
      %v3093 = vand.u32 2147483647, %v3085
      %v3094 = vand.u32 2147483647, %v3086
      %v3095 = vand.u32 2147483647, %v3087
      %v3096 = vand.u32 2147483647, %v3088
      %v3097 = vand.u32 2147483647, %v3089
      %v3098 = vand.u32 2147483647, %v3090
      %v3099 = vand.u32 2147483647, %v3091
      %v3100 = vand.u32 2147483647, %v3092
      %v3101 = vand.u32 2147483647, %v3077
      %v3102 = vand.u32 2147483647, %v3078
      %v3103 = vand.u32 2147483647, %v3079
      %v3104 = vand.u32 2147483647, %v3080
      %v3105 = vand.u32 2147483647, %v3081
      %v3106 = vand.u32 2147483647, %v3082
      %v3107 = vand.u32 2147483647, %v3083
      %v3108 = vand.u32 2147483647, %v3084
      %v3109 = vadd.f32 %v3093, %v3101
      %v3110 = vadd.f32 %v3094, %v3102
      %v3111 = vadd.f32 %v3095, %v3103
      %v3112 = vadd.f32 %v3096, %v3104
      %v3113 = vadd.f32 %v3097, %v3105
      %v3114 = vadd.f32 %v3098, %v3106
      %v3115 = vadd.f32 %v3099, %v3107
      %v3116 = vadd.f32 %v3100, %v3108
      %vm3117 = vcmp.eq.f32.partialorder %v3109, 0.0
      %vm3118 = vcmp.eq.f32.partialorder %v3110, 0.0
      %vm3119 = vcmp.eq.f32.partialorder %v3111, 0.0
      %vm3120 = vcmp.eq.f32.partialorder %v3112, 0.0
      %vm3121 = vcmp.eq.f32.partialorder %v3113, 0.0
      %vm3122 = vcmp.eq.f32.partialorder %v3114, 0.0
      %vm3123 = vcmp.eq.f32.partialorder %v3115, 0.0
      %vm3124 = vcmp.eq.f32.partialorder %v3116, 0.0
      %v3125 = vsel %vm3117, 1, 0
      %v3126 = vsel %vm3118, 1, 0
      %v3127 = vsel %vm3119, 1, 0
      %v3128 = vsel %vm3120, 1, 0
      %v3129 = vsel %vm3121, 1, 0
      %v3130 = vsel %vm3122, 1, 0
      %v3131 = vsel %vm3123, 1, 0
      %v3132 = vsel %vm3124, 1, 0
      %v3133 = vcvt.s32.f32 %v3125
      %v3134 = vcvt.s32.f32 %v3126
      %v3135 = vcvt.s32.f32 %v3127
      %v3136 = vcvt.s32.f32 %v3128
      %v3137 = vcvt.s32.f32 %v3129
      %v3138 = vcvt.s32.f32 %v3130
      %v3139 = vcvt.s32.f32 %v3131
      %v3140 = vcvt.s32.f32 %v3132
      %v3141 = vsub.f32 %v3085, %v3077
      %v3142 = vsub.f32 %v3086, %v3078
      %v3143 = vsub.f32 %v3087, %v3079
      %v3144 = vsub.f32 %v3088, %v3080
      %v3145 = vsub.f32 %v3089, %v3081
      %v3146 = vsub.f32 %v3090, %v3082
      %v3147 = vsub.f32 %v3091, %v3083
      %v3148 = vsub.f32 %v3092, %v3084
      %v3149 = vand.u32 2147483647, %v3141
      %v3150 = vand.u32 2147483647, %v3142
      %v3151 = vand.u32 2147483647, %v3143
      %v3152 = vand.u32 2147483647, %v3144
      %v3153 = vand.u32 2147483647, %v3145
      %v3154 = vand.u32 2147483647, %v3146
      %v3155 = vand.u32 2147483647, %v3147
      %v3156 = vand.u32 2147483647, %v3148
      %v3157 = vsub.f32 1.0, %v3133
      %v3158 = vsub.f32 1.0, %v3134
      %v3159 = vsub.f32 1.0, %v3135
      %v3160 = vsub.f32 1.0, %v3136
      %v3161 = vsub.f32 1.0, %v3137
      %v3162 = vsub.f32 1.0, %v3138
      %v3163 = vsub.f32 1.0, %v3139
      %v3164 = vsub.f32 1.0, %v3140
      %v3165 = vmul.f32 %v3149, %v3157
      %v3166 = vmul.f32 %v3150, %v3158
      %v3167 = vmul.f32 %v3151, %v3159
      %v3168 = vmul.f32 %v3152, %v3160
      %v3169 = vmul.f32 %v3153, %v3161
      %v3170 = vmul.f32 %v3154, %v3162
      %v3171 = vmul.f32 %v3155, %v3163
      %v3172 = vmul.f32 %v3156, %v3164
      %v3173 = vadd.f32 %v3109, %v3133
      %v3174 = vadd.f32 %v3110, %v3134
      %v3175 = vadd.f32 %v3111, %v3135
      %v3176 = vadd.f32 %v3112, %v3136
      %v3177 = vadd.f32 %v3113, %v3137
      %v3178 = vadd.f32 %v3114, %v3138
      %v3179 = vadd.f32 %v3115, %v3139
      %v3180 = vadd.f32 %v3116, %v3140
      %v3181 = vrcp.pop %v3173
      %v3182 = vmul.f32 %v3165, %v3181
      %v3183 = vrcp.pop %v3174
      %v3184 = vmul.f32 %v3166, %v3183
      %v3185 = vrcp.pop %v3175
      %v3186 = vmul.f32 %v3167, %v3185
      %v3187 = vrcp.pop %v3176
      %v3188 = vmul.f32 %v3168, %v3187
      %v3189 = vrcp.pop %v3177
      %v3190 = vmul.f32 %v3169, %v3189
      %v3191 = vrcp.pop %v3178
      %v3192 = vmul.f32 %v3170, %v3191
      %v3193 = vrcp.pop %v3179
      %v3194 = vmul.f32 %v3171, %v3193
      %v3195 = vrcp.pop %v3180
      %v3196 = vmul.f32 %v3172, %v3195
      %v3197 = vlaneseq
      %v3198 = vshrl.u32 %v3197, 7
      %v3199 = vadd.s32 %v3198, 8
      %v3200 = vadd.s32 %v3198, 16
      %v3201 = vadd.s32 %v3198, 24
      %v3202 = vadd.s32 %v3198, 32
      %v3203 = vadd.s32 %v3198, 40
      %v3204 = vadd.s32 %v3198, 48
      %v3205 = vadd.s32 %v3198, 56
      %vm3206 = vcmp.lt.s32.totalorder %v3198, 64
      %vm3207 = vcmp.lt.s32.totalorder %v3199, 64
      %vm3208 = vcmp.lt.s32.totalorder %v3200, 64
      %vm3209 = vcmp.lt.s32.totalorder %v3201, 64
      %vm3210 = vcmp.lt.s32.totalorder %v3202, 64
      %vm3211 = vcmp.lt.s32.totalorder %v3203, 64
      %vm3212 = vcmp.lt.s32.totalorder %v3204, 64
      %vm3213 = vcmp.lt.s32.totalorder %v3205, 64
      %v3214 = vsel %vm3206, 1, 0
      %v3215 = vsel %vm3207, 1, 0
      %v3216 = vsel %vm3208, 1, 0
      %v3217 = vsel %vm3209, 1, 0
      %v3218 = vsel %vm3210, 1, 0
      %v3219 = vsel %vm3211, 1, 0
      %v3220 = vsel %vm3212, 1, 0
      %v3221 = vsel %vm3213, 1, 0
      %v3222 = vcvt.s32.f32 %v3214
      %v3223 = vcvt.s32.f32 %v3215
      %v3224 = vcvt.s32.f32 %v3216
      %v3225 = vcvt.s32.f32 %v3217
      %v3226 = vcvt.s32.f32 %v3218
      %v3227 = vcvt.s32.f32 %v3219
      %v3228 = vcvt.s32.f32 %v3220
      %v3229 = vcvt.s32.f32 %v3221
      %v3230 = vmul.f32 %v3182, %v3222
      %v3231 = vmul.f32 %v3184, %v3223
      %v3232 = vmul.f32 %v3186, %v3224
      %v3233 = vmul.f32 %v3188, %v3225
      %v3234 = vmul.f32 %v3190, %v3226
      %v3235 = vmul.f32 %v3192, %v3227
      %v3236 = vmul.f32 %v3194, %v3228
      %v3237 = vmul.f32 %v3196, %v3229
      %v3238 = vsel %vm814, %v3230, 0.0
      %v3239 = vsel %vm814, %v3231, 0.0
      %v3240 = vadd.f32 %v3238, %v3239
      %v3241 = vsel %vm814, %v3232, 0.0
      %v3242 = vadd.f32 %v3240, %v3241
      %v3243 = vsel %vm814, %v3233, 0.0
      %v3244 = vadd.f32 %v3242, %v3243
      %v3245 = vsel %vm814, %v3234, 0.0
      %v3246 = vadd.f32 %v3244, %v3245
      %v3247 = vsel %vm814, %v3235, 0.0
      %v3248 = vadd.f32 %v3246, %v3247
      %v3249 = vsel %vm814, %v3236, 0.0
      %v3250 = vadd.f32 %v3248, %v3249
      %v3251 = vsel %vm814, %v3237, 0.0
      %v3252 = vadd.f32 %v3250, %v3251
      %3253 = vadd.xlane.f32.xlu0 %v3252
      %v3254 = vpop.xlane.xlu0 %3253
      %v3255 = vrot.slane %v3254, 4
      %v3256 = vadd.f32 %v3254, %v3255
      %v3257 = vrot.slane %v3256, 2
      %v3258 = vadd.f32 %v3256, %v3257
      %v3259 = vrot.slane %v3258, 1
      %v3260 = vadd.f32 %v3258, %v3259
      %s3261 = vtos %v3260
      %s3262 = smul.f32 %s3261, 25.0
      %v3263 = vrcp.pop 1024.0
      %s3264 = vtos %v3263
      %s3265 = smul.f32 %s3262, %s3264
      %s3266 = scalar_lea.smem [#allocation4], 0
      %3267 = sst [smem:[%s3266]] %s3265
    $region49: #{tpu_custom_call.1} parent=1 // pred_fallthru
      _
    // Predicated region
    $region50: #{tpu_custom_call.1} parent=1 // pred_check
      _
    $region51: #{tpu_custom_call.1} parent=1 // pred_check_branch
      %3269 = sbr.rel (0) target = $region53
    $region52: #{tpu_custom_call.1} parent=1 // pred_region
      %s3271 = ssub.s32 16, 16
      %3272 = vsyncadd [#allocation5], %s3271
      %3275 = dma.smem_to_hbm [#allocation4], 16, %s10, [#allocation5]
    $region53: #{tpu_custom_call.1} parent=1 // pred_fallthru
      _
    // Predicated region
    $region54: #{tpu_custom_call.1} parent=1 // pred_check
      _
    $region55: #{tpu_custom_call.1} parent=1 // pred_check_branch
      %3277 = sbr.rel (0) target = $region57
    $region56: #{tpu_custom_call.1} parent=1 // pred_region
      %3278 = dma.done [#allocation5], 16
    $region57: #{tpu_custom_call.1} parent=1 // pred_fallthru
      _
    %3279 = sfence
    %3280 = vsyncpa [#allocation5], 1

</llo_original>
